<compile_context>
chip_gen: v6e
topology: v6e:2x2x1
jax: 0.10.0
libtpu: 0.0.40
codegen_flags: <defaults>
</compile_context>

<pallas_src>
import functools

import jax
import jax.numpy as jnp
from jax.experimental import pallas as pl
from jax.experimental.pallas import tpu as pltpu


def _round_up(x, m):
    return (x + m - 1) // m * m


def _tpu_kind():
    try:
        return jax.devices()[0].device_kind.lower()
    except Exception:
        return ""


def _gru_fused_kernel(x_ref, wih_ref, whh_ref, bx_ref, bhn_ref, h_ref, gx_ref,
                      *, seq_len, ts):
    """One grid step == `ts` GRU timesteps with the input projection fused in.

    x_ref:   (ts, bb, ip)    bf16  input chunk (seq-major, batch on sublanes)
    wih_ref: (ip, 3*hp)      bf16  input weight (transposed), grid-invariant
    whh_ref: (hp, 3*hp)      bf16  recurrent weight (transposed), grid-invariant
    bx_ref:  (1, 3*hp)       f32   b_ih + [b_hr, b_hz, 0]
    bhn_ref: (1, hp)         f32   b_hn (sits under the reset gate)
    h_ref:   (bb, hp)        f32   hidden state, resident across seq chunks
    gx_ref:  (ts, bb, 3*hp)  f32   VMEM scratch for this chunk's gate inputs
    """
    c = pl.program_id(1)

    @pl.when(c == 0)
    def _():
        h_ref[...] = jnp.zeros(h_ref.shape, h_ref.dtype)

    bb, hp = h_ref.shape
    ip = x_ref.shape[-1]

    # Fused input projection: one bf16 MXU matmul for the whole chunk
    # (f32 accumulation), bias folded in, result staged in VMEM scratch.
    x2d = x_ref[...].reshape(ts * bb, ip)
    gx = jnp.dot(x2d, wih_ref[...], preferred_element_type=jnp.float32)
    gx = gx + bx_ref[...]
    gx_ref[...] = gx.reshape(ts, bb, 3 * hp)

    # Hoisted: JAX does not CSE broadcast_in_dim, keep it out of the step loop.
    bhn_b = jnp.broadcast_to(bhn_ref[...], (bb, hp))

    needs_mask = (seq_len % ts) != 0  # static

    def step(i, h):
        g = gx_ref[i]                                          # (bb, 3hp) f32
        # Read W_hh from VMEM per use (already resident); holding it live
        # across the unrolled loop would spill vregs for large hp.
        gh = jnp.dot(h.astype(jnp.bfloat16), whh_ref[...],
                     preferred_element_type=jnp.float32)       # (bb, 3hp) f32
        # Gate boundaries are 128-aligned -> free lane-aligned views.
        i_r, i_z, i_n = g[:, :hp], g[:, hp:2 * hp], g[:, 2 * hp:]
        h_r, h_z, h_n = gh[:, :hp], gh[:, hp:2 * hp], gh[:, 2 * hp:]
        r = jax.nn.sigmoid(i_r + h_r)
        z = jax.nn.sigmoid(i_z + h_z)
        n = jnp.tanh(i_n + r * (h_n + bhn_b))
        h_new = n + z * (h - n)
        if needs_mask:
            # Tail chunk: steps past seq_len must leave h exactly unchanged
            # (a zero-input GRU step is NOT an identity).
            h_new = jnp.where(c * ts + i < seq_len, h_new, h)
        return h_new

    h_ref[...] = jax.lax.fori_loop(0, ts, step, h_ref[...], unroll=True)


def _gru_forward_impl(inputs, w_ih, w_hh, b_ih, b_hh, *, seq_chunk_cap,
                      single_buffer_weights):
    batch, seq_len, input_size = inputs.shape
    hidden = w_hh.shape[1]
    f32 = jnp.float32

    bp = _round_up(batch, 8)          # sublane alignment
    hp = _round_up(hidden, 128)       # lane alignment (gates on 128 multiples)
    ip = _round_up(input_size, 128)

    kind = _tpu_kind()
    is_v7 = "v7" in kind
    # v7x: 64 MiB physical VMEM/TC -> keep scoped limit <= ~48 MiB.
    # v5e/v6e: 128 MiB physical -> 64 MiB scoped limit is comfortable.
    vmem_limit = (48 if is_v7 else 64) * 1024 * 1024

    # Re-lay the fused 3H gate axis on hp-aligned boundaries, transpose for
    # right-multiplication, and fold b_ih (+ r/z parts of b_hh) into the
    # fused input-projection bias.  Only b_hn (under the reset gate) stays
    # separate.  Padded hidden columns stay exactly zero through the
    # recurrence (zero weight columns => r=z=0.5, n=0 => h stays 0).
    wih_t = jnp.zeros((ip, 3 * hp), f32)
    whh_t = jnp.zeros((hp, 3 * hp), f32)
    bias_x = jnp.zeros((1, 3 * hp), f32)
    bhn = jnp.zeros((1, hp), f32)
    for g in range(3):
        wih_t = wih_t.at[:input_size, g * hp:g * hp + hidden].set(
            w_ih[g * hidden:(g + 1) * hidden, :].T)
        whh_t = whh_t.at[:hidden, g * hp:g * hp + hidden].set(
            w_hh[g * hidden:(g + 1) * hidden, :].T)
        fold = b_ih[g * hidden:(g + 1) * hidden]
        if g < 2:   # b_hr / b_hz commute with the recurrence; b_hn does not.
            fold = fold + b_hh[g * hidden:(g + 1) * hidden]
        bias_x = bias_x.at[0, g * hp:g * hp + hidden].set(fold)
    bhn = bhn.at[0, :hidden].set(b_hh[2 * hidden:3 * hidden])
    # bf16 MXU operands (native rate, half the VMEM/DMA); f32 accumulation.
    wih_bf16 = wih_t.astype(jnp.bfloat16)
    whh_bf16 = whh_t.astype(jnp.bfloat16)

    # Batch blocking: only split when a second TensorCore exists (v7x) so the
    # "parallel" batch axis actually feeds both cores; one block otherwise.
    if is_v7 and bp >= 16 and bp % 16 == 0:
        bb = bp // 2
    else:
        bb = bp

    # Seq chunk size from a VMEM budget (double-buffered bf16 x chunk + f32
    # gate scratch per step), capped.  No divisor requirement: the tail is
    # masked in-kernel, so awkward/prime seq lengths never collapse to ts=1.
    weight_bytes = (ip + hp) * 3 * hp * 2 * (1 if single_buffer_weights else 2)
    fixed_bytes = weight_bytes + 2 * bb * hp * 4 + 4 * (3 * hp + hp)
    budget = max(vmem_limit - fixed_bytes - (4 << 20), vmem_limit // 4)
    per_step_bytes = bb * (4 * ip + 12 * hp)
    ts = int(max(1, min(seq_chunk_cap, seq_len, budget // per_step_bytes)))
    n_chunks = pl.cdiv(seq_len, ts)
    seq_pad = n_chunks * ts

    # (B,S,I) -> (S,B,I) bf16, one jnp.pad to the aligned/chunked shape.
    x = jnp.transpose(inputs, (1, 0, 2)).astype(jnp.bfloat16)
    x = jnp.pad(x, ((0, seq_pad - seq_len),
                    (0, bp - batch),
                    (0, ip - input_size)))

    def weight_spec(shape):
        if single_buffer_weights:
            # Grid-invariant block: double-buffering buys nothing; halve VMEM.
            return pl.BlockSpec(shape, lambda b, c: (0, 0),
                                pipeline_mode=pl.Buffered(1))
        return pl.BlockSpec(shape, lambda b, c: (0, 0))

    kernel = functools.partial(_gru_fused_kernel, seq_len=seq_len, ts=ts)

    h_out = pl.pallas_call(
        kernel,
        out_shape=jax.ShapeDtypeStruct((bp, hp), f32),
        grid_spec=pltpu.PrefetchScalarGridSpec(
            num_scalar_prefetch=0,
            grid=(bp // bb, n_chunks),
            in_specs=[
                pl.BlockSpec((ts, bb, ip), lambda b, c: (c, b, 0)),
                weight_spec((ip, 3 * hp)),
                weight_spec((hp, 3 * hp)),
                weight_spec((1, 3 * hp)),
                weight_spec((1, hp)),
            ],
            out_specs=pl.BlockSpec((bb, hp), lambda b, c: (b, 0)),
            scratch_shapes=[pltpu.VMEM((ts, bb, 3 * hp), f32)],
        ),
        compiler_params=pltpu.CompilerParams(
            dimension_semantics=("parallel", "arbitrary"),
            vmem_limit_bytes=vmem_limit,
        ),
    )(x, wih_bf16, whh_bf16, bias_x, bhn)

    return h_out[:batch, :hidden]


def gru_forward(inputs, w_ih, w_hh, b_ih, b_hh, *, seq_chunk_cap=32):
    """inputs: (B, S, I) f32; w_ih: (3H, I); w_hh: (3H, H); b_*: (3H,).
    Returns the final hidden state (B, H) f32 with h0 = 0 (PyTorch GRU module
    semantics)."""
    try:
        return _gru_forward_impl(inputs, w_ih, w_hh, b_ih, b_hh,
                                 seq_chunk_cap=seq_chunk_cap,
                                 single_buffer_weights=True)
    except Exception:
        # pl.Buffered(1) rejected by this JAX build -> default buffering.
        return _gru_forward_impl(inputs, w_ih, w_hh, b_ih, b_hh,
                                 seq_chunk_cap=seq_chunk_cap,
                                 single_buffer_weights=False)


def gru_reference(inputs, w_ih, w_hh, b_ih, b_hh):
    """Pure-JAX f32 reference matching the PyTorch forward exactly."""
    batch, seq_len, _ = inputs.shape
    hidden = w_hh.shape[1]
    h = jnp.zeros((batch, hidden), jnp.float32)
    for t in range(seq_len):
        x_t = inputs[:, t, :]
        gate_x = x_t @ w_ih.T + b_ih
        gate_h = h @ w_hh.T + b_hh
        i_r, i_i, i_n = jnp.split(gate_x, 3, axis=1)
        h_r, h_i, h_n = jnp.split(gate_h, 3, axis=1)
        resetgate = jax.nn.sigmoid(i_r + h_r)
        inputgate = jax.nn.sigmoid(i_i + h_i)
        newgate = jnp.tanh(i_n + resetgate * h_n)
        h = newgate + inputgate * (h - newgate)
    return h


def _make_params(key, input_size, hidden):
    k_wih, k_whh, k_bih, k_bhh = jax.random.split(key, 4)
    bound_ih = 1.0 / (input_size ** 0.5)
    bound_hh = 1.0 / (hidden ** 0.5)
    w_ih = jax.random.uniform(k_wih, (3 * hidden, input_size), jnp.float32,
                              -bound_ih, bound_ih)
    b_ih = jax.random.uniform(k_bih, (3 * hidden,), jnp.float32,
                              -bound_ih, bound_ih)
    w_hh = jax.random.uniform(k_whh, (3 * hidden, hidden), jnp.float32,
                              -bound_hh, bound_hh)
    b_hh = jax.random.uniform(k_bhh, (3 * hidden,), jnp.float32,
                              -bound_hh, bound_hh)
    return w_ih, w_hh, b_ih, b_hh


if __name__ == "__main__":
    key = jax.random.PRNGKey(0)

    # Case 1: the module's nominal small shape.
    batch, seq_len, input_size, hidden = 2, 8, 16, 32
    k_p, k_x, key = jax.random.split(key, 3)
    w_ih, w_hh, b_ih, b_hh = _make_params(k_p, input_size, hidden)
    inputs = jax.random.normal(k_x, (batch, seq_len, input_size), jnp.float32)
    out = jax.block_until_ready(gru_forward(inputs, w_ih, w_hh, b_ih, b_hh))
    ref = gru_reference(inputs, w_ih, w_hh, b_ih, b_hh)
    assert out.shape == (batch, hidden)
    # bf16 MXU operands (f32 accumulation / gate math) -> bf16-level tolerance.
    assert jnp.allclose(out, ref, atol=3e-2, rtol=3e-2), \
        float(jnp.max(jnp.abs(out - ref)))

    # Case 2: awkward sizes exercising padding + the in-kernel seq tail mask
    # (seq_len not a multiple of the chunk size).
    batch2, seq_len2, input_size2, hidden2 = 3, 7, 10, 20
    k_p2, k_x2, key = jax.random.split(key, 3)
    w_ih2, w_hh2, b_ih2, b_hh2 = _make_params(k_p2, input_size2, hidden2)
    inputs2 = jax.random.normal(k_x2, (batch2, seq_len2, input_size2),
                                jnp.float32)
    out2 = jax.block_until_ready(
        gru_forward(inputs2, w_ih2, w_hh2, b_ih2, b_hh2, seq_chunk_cap=4))
    ref2 = gru_reference(inputs2, w_ih2, w_hh2, b_ih2, b_hh2)
    assert out2.shape == (batch2, hidden2)
    assert jnp.allclose(out2, ref2, atol=3e-2, rtol=3e-2), \
        float(jnp.max(jnp.abs(out2 - ref2)))

    print("KERNEL_OK")
</pallas_src>

<mosaic_0001>
module attributes {stable_mosaic.version = 11 : i64} {
  func.func @_gru_fused_kernel(%arg0: i32, %arg1: i32, %arg2: memref<8x8x128xbf16, #tpu.memory_space<vmem>>, %arg3: memref<128x384xbf16, #tpu.memory_space<vmem>>, %arg4: memref<128x384xbf16, #tpu.memory_space<vmem>>, %arg5: memref<1x384xf32, #tpu.memory_space<vmem>>, %arg6: memref<1x128xf32, #tpu.memory_space<vmem>>, %arg7: memref<8x128xf32, #tpu.memory_space<vmem>>, %arg8: memref<8x8x384xf32, #tpu.memory_space<vmem>>) attributes {dimension_semantics = [#tpu.dimension_semantics<parallel>, #tpu.dimension_semantics<arbitrary>], iteration_bounds = array<i64: 1, 1>, scalar_prefetch = 0 : i64, scratch_operands = 1 : i64, tpu.core_type = #tpu.core_type<tc>, window_params = [{transform_indices = @transform_0, window_bounds = array<i64: 8, 8, 128>}, {pipeline_mode = #tpu.pipeline_mode<synchronous>, transform_indices = @transform_1, window_bounds = array<i64: 128, 384>}, {pipeline_mode = #tpu.pipeline_mode<synchronous>, transform_indices = @transform_2, window_bounds = array<i64: 128, 384>}, {pipeline_mode = #tpu.pipeline_mode<synchronous>, transform_indices = @transform_3, window_bounds = array<i64: 1, 384>}, {pipeline_mode = #tpu.pipeline_mode<synchronous>, transform_indices = @transform_4, window_bounds = array<i64: 1, 128>}, {transform_indices = @transform_5, window_bounds = array<i64: 8, 128>}]} {
    %c0_i32 = arith.constant 0 : i32
    %0 = arith.cmpi eq, %arg1, %c0_i32 : i32
    %1 = arith.extui %0 : i1 to i32
    %c0_i32_0 = arith.constant 0 : i32
    %2 = arith.cmpi ne, %1, %c0_i32_0 : i32
    scf.if %2 {
      %cst_73 = arith.constant 0.000000e+00 : f32
      %265 = vector.broadcast %cst_73 : f32 to vector<8x128xf32>
      %c0_74 = arith.constant 0 : index
      %c0_75 = arith.constant 0 : index
      %266 = vector.load %arg7[%c0_74, %c0_75] : memref<8x128xf32, #tpu.memory_space<vmem>>, vector<8x128xf32>
      tpu.vector_store %arg7[%c0_74, %c0_75], %265 {strides = array<i32>} : memref<8x128xf32, #tpu.memory_space<vmem>>, vector<8x128xf32>,
    } else {
    }
    %c0 = arith.constant 0 : index
    %c0_1 = arith.constant 0 : index
    %c0_2 = arith.constant 0 : index
    %3 = vector.load %arg2[%c0, %c0_1, %c0_2] : memref<8x8x128xbf16, #tpu.memory_space<vmem>>, vector<8x8x128xbf16>
    %4 = vector.shape_cast %3 : vector<8x8x128xbf16> to vector<64x128xbf16>
    %c0_3 = arith.constant 0 : index
    %c0_4 = arith.constant 0 : index
    %5 = vector.load %arg3[%c0_3, %c0_4] : memref<128x384xbf16, #tpu.memory_space<vmem>>, vector<128x384xbf16>
    %cst = arith.constant dense<0.000000e+00> : vector<64x384xf32>
    %6 = tpu.matmul %4, %5, %cst {dimension_numbers = #tpu.dot_dimension_numbers<[1], [0], [0], [1], [0, 0, 1, 1], [], []>} : vector<64x128xbf16>, vector<128x384xbf16>, vector<64x384xf32> -> vector<64x384xf32>
    %c0_5 = arith.constant 0 : index
    %c0_6 = arith.constant 0 : index
    %7 = vector.load %arg5[%c0_5, %c0_6] : memref<1x384xf32, #tpu.memory_space<vmem>>, vector<1x384xf32>
    %8 = vector.broadcast %7 : vector<1x384xf32> to vector<64x384xf32>
    %9 = arith.addf %6, %8 : vector<64x384xf32>
    %10 = vector.shape_cast %9 : vector<64x384xf32> to vector<8x8x384xf32>
    %c0_7 = arith.constant 0 : index
    %c0_8 = arith.constant 0 : index
    %c0_9 = arith.constant 0 : index
    %11 = vector.load %arg8[%c0_7, %c0_8, %c0_9] : memref<8x8x384xf32, #tpu.memory_space<vmem>>, vector<8x8x384xf32>
    tpu.vector_store %arg8[%c0_7, %c0_8, %c0_9], %10 {strides = array<i32>} : memref<8x8x384xf32, #tpu.memory_space<vmem>>, vector<8x8x384xf32>,
    %c0_10 = arith.constant 0 : index
    %c0_11 = arith.constant 0 : index
    %12 = vector.load %arg6[%c0_10, %c0_11] : memref<1x128xf32, #tpu.memory_space<vmem>>, vector<1x128xf32>
    %13 = vector.shape_cast %12 : vector<1x128xf32> to vector<1x128xf32>
    %14 = vector.broadcast %13 : vector<1x128xf32> to vector<8x128xf32>
    %c0_12 = arith.constant 0 : index
    %c0_13 = arith.constant 0 : index
    %15 = vector.load %arg7[%c0_12, %c0_13] : memref<8x128xf32, #tpu.memory_space<vmem>>, vector<8x128xf32>
    %c0_i32_14 = arith.constant 0 : i32
    %16 = arith.index_cast %c0_i32_14 : i32 to index
    %c0_15 = arith.constant 0 : index
    %c0_16 = arith.constant 0 : index
    %17 = vector.load %arg8[%16, %c0_15, %c0_16] : memref<8x8x384xf32, #tpu.memory_space<vmem>>, vector<1x8x384xf32>
    %18 = vector.shape_cast %17 : vector<1x8x384xf32> to vector<8x384xf32>
    %19 = arith.truncf %15 : vector<8x128xf32> to vector<8x128xbf16>
    %c0_17 = arith.constant 0 : index
    %c0_18 = arith.constant 0 : index
    %20 = vector.load %arg4[%c0_17, %c0_18] : memref<128x384xbf16, #tpu.memory_space<vmem>>, vector<128x384xbf16>
    %cst_19 = arith.constant dense<0.000000e+00> : vector<8x384xf32>
    %21 = tpu.matmul %19, %20, %cst_19 {dimension_numbers = #tpu.dot_dimension_numbers<[1], [0], [0], [1], [0, 0, 1, 1], [], []>} : vector<8x128xbf16>, vector<128x384xbf16>, vector<8x384xf32> -> vector<8x384xf32>
    %22 = vector.extract_strided_slice %18 {offsets = [0, 0], sizes = [8, 128], strides = [1, 1]} : vector<8x384xf32> to vector<8x128xf32>
    %23 = vector.extract_strided_slice %18 {offsets = [0, 128], sizes = [8, 128], strides = [1, 1]} : vector<8x384xf32> to vector<8x128xf32>
    %24 = vector.extract_strided_slice %18 {offsets = [0, 256], sizes = [8, 128], strides = [1, 1]} : vector<8x384xf32> to vector<8x128xf32>
    %25 = vector.extract_strided_slice %21 {offsets = [0, 0], sizes = [8, 128], strides = [1, 1]} : vector<8x384xf32> to vector<8x128xf32>
    %26 = vector.extract_strided_slice %21 {offsets = [0, 128], sizes = [8, 128], strides = [1, 1]} : vector<8x384xf32> to vector<8x128xf32>
    %27 = vector.extract_strided_slice %21 {offsets = [0, 256], sizes = [8, 128], strides = [1, 1]} : vector<8x384xf32> to vector<8x128xf32>
    %28 = arith.addf %22, %25 : vector<8x128xf32>
    %29 = arith.negf %28 : vector<8x128xf32>
    %30 = math.exp %29 : vector<8x128xf32>
    %cst_20 = arith.constant 1.000000e+00 : f32
    %31 = vector.broadcast %cst_20 : f32 to vector<8x128xf32>
    %32 = arith.addf %31, %30 : vector<8x128xf32>
    %33 = arith.divf %31, %32 : vector<8x128xf32>
    %34 = arith.addf %23, %26 : vector<8x128xf32>
    %35 = arith.negf %34 : vector<8x128xf32>
    %36 = math.exp %35 : vector<8x128xf32>
    %cst_21 = arith.constant 1.000000e+00 : f32
    %37 = vector.broadcast %cst_21 : f32 to vector<8x128xf32>
    %38 = arith.addf %37, %36 : vector<8x128xf32>
    %39 = arith.divf %37, %38 : vector<8x128xf32>
    %40 = arith.addf %27, %14 : vector<8x128xf32>
    %41 = arith.mulf %33, %40 : vector<8x128xf32>
    %42 = arith.addf %24, %41 : vector<8x128xf32>
    %43 = math.tanh %42 : vector<8x128xf32>
    %44 = arith.subf %15, %43 : vector<8x128xf32>
    %45 = arith.mulf %39, %44 : vector<8x128xf32>
    %46 = arith.addf %43, %45 : vector<8x128xf32>
    %c1_i32 = arith.constant 1 : i32
    %47 = arith.index_cast %c1_i32 : i32 to index
    %c0_22 = arith.constant 0 : index
    %c0_23 = arith.constant 0 : index
    %48 = vector.load %arg8[%47, %c0_22, %c0_23] : memref<8x8x384xf32, #tpu.memory_space<vmem>>, vector<1x8x384xf32>
    %49 = vector.shape_cast %48 : vector<1x8x384xf32> to vector<8x384xf32>
    %50 = arith.truncf %46 : vector<8x128xf32> to vector<8x128xbf16>
    %c0_24 = arith.constant 0 : index
    %c0_25 = arith.constant 0 : index
    %51 = vector.load %arg4[%c0_24, %c0_25] : memref<128x384xbf16, #tpu.memory_space<vmem>>, vector<128x384xbf16>
    %cst_26 = arith.constant dense<0.000000e+00> : vector<8x384xf32>
    %52 = tpu.matmul %50, %51, %cst_26 {dimension_numbers = #tpu.dot_dimension_numbers<[1], [0], [0], [1], [0, 0, 1, 1], [], []>} : vector<8x128xbf16>, vector<128x384xbf16>, vector<8x384xf32> -> vector<8x384xf32>
    %53 = vector.extract_strided_slice %49 {offsets = [0, 0], sizes = [8, 128], strides = [1, 1]} : vector<8x384xf32> to vector<8x128xf32>
    %54 = vector.extract_strided_slice %49 {offsets = [0, 128], sizes = [8, 128], strides = [1, 1]} : vector<8x384xf32> to vector<8x128xf32>
    %55 = vector.extract_strided_slice %49 {offsets = [0, 256], sizes = [8, 128], strides = [1, 1]} : vector<8x384xf32> to vector<8x128xf32>
    %56 = vector.extract_strided_slice %52 {offsets = [0, 0], sizes = [8, 128], strides = [1, 1]} : vector<8x384xf32> to vector<8x128xf32>
    %57 = vector.extract_strided_slice %52 {offsets = [0, 128], sizes = [8, 128], strides = [1, 1]} : vector<8x384xf32> to vector<8x128xf32>
    %58 = vector.extract_strided_slice %52 {offsets = [0, 256], sizes = [8, 128], strides = [1, 1]} : vector<8x384xf32> to vector<8x128xf32>
    %59 = arith.addf %53, %56 : vector<8x128xf32>
    %60 = arith.negf %59 : vector<8x128xf32>
    %61 = math.exp %60 : vector<8x128xf32>
    %cst_27 = arith.constant 1.000000e+00 : f32
    %62 = vector.broadcast %cst_27 : f32 to vector<8x128xf32>
    %63 = arith.addf %62, %61 : vector<8x128xf32>
    %64 = arith.divf %62, %63 : vector<8x128xf32>
    %65 = arith.addf %54, %57 : vector<8x128xf32>
    %66 = arith.negf %65 : vector<8x128xf32>
    %67 = math.exp %66 : vector<8x128xf32>
    %cst_28 = arith.constant 1.000000e+00 : f32
    %68 = vector.broadcast %cst_28 : f32 to vector<8x128xf32>
    %69 = arith.addf %68, %67 : vector<8x128xf32>
    %70 = arith.divf %68, %69 : vector<8x128xf32>
    %71 = arith.addf %58, %14 : vector<8x128xf32>
    %72 = arith.mulf %64, %71 : vector<8x128xf32>
    %73 = arith.addf %55, %72 : vector<8x128xf32>
    %74 = math.tanh %73 : vector<8x128xf32>
    %75 = arith.subf %46, %74 : vector<8x128xf32>
    %76 = arith.mulf %70, %75 : vector<8x128xf32>
    %77 = arith.addf %74, %76 : vector<8x128xf32>
    %c2_i32 = arith.constant 2 : i32
    %78 = arith.index_cast %c2_i32 : i32 to index
    %c0_29 = arith.constant 0 : index
    %c0_30 = arith.constant 0 : index
    %79 = vector.load %arg8[%78, %c0_29, %c0_30] : memref<8x8x384xf32, #tpu.memory_space<vmem>>, vector<1x8x384xf32>
    %80 = vector.shape_cast %79 : vector<1x8x384xf32> to vector<8x384xf32>
    %81 = arith.truncf %77 : vector<8x128xf32> to vector<8x128xbf16>
    %c0_31 = arith.constant 0 : index
    %c0_32 = arith.constant 0 : index
    %82 = vector.load %arg4[%c0_31, %c0_32] : memref<128x384xbf16, #tpu.memory_space<vmem>>, vector<128x384xbf16>
    %cst_33 = arith.constant dense<0.000000e+00> : vector<8x384xf32>
    %83 = tpu.matmul %81, %82, %cst_33 {dimension_numbers = #tpu.dot_dimension_numbers<[1], [0], [0], [1], [0, 0, 1, 1], [], []>} : vector<8x128xbf16>, vector<128x384xbf16>, vector<8x384xf32> -> vector<8x384xf32>
    %84 = vector.extract_strided_slice %80 {offsets = [0, 0], sizes = [8, 128], strides = [1, 1]} : vector<8x384xf32> to vector<8x128xf32>
    %85 = vector.extract_strided_slice %80 {offsets = [0, 128], sizes = [8, 128], strides = [1, 1]} : vector<8x384xf32> to vector<8x128xf32>
    %86 = vector.extract_strided_slice %80 {offsets = [0, 256], sizes = [8, 128], strides = [1, 1]} : vector<8x384xf32> to vector<8x128xf32>
    %87 = vector.extract_strided_slice %83 {offsets = [0, 0], sizes = [8, 128], strides = [1, 1]} : vector<8x384xf32> to vector<8x128xf32>
    %88 = vector.extract_strided_slice %83 {offsets = [0, 128], sizes = [8, 128], strides = [1, 1]} : vector<8x384xf32> to vector<8x128xf32>
    %89 = vector.extract_strided_slice %83 {offsets = [0, 256], sizes = [8, 128], strides = [1, 1]} : vector<8x384xf32> to vector<8x128xf32>
    %90 = arith.addf %84, %87 : vector<8x128xf32>
    %91 = arith.negf %90 : vector<8x128xf32>
    %92 = math.exp %91 : vector<8x128xf32>
    %cst_34 = arith.constant 1.000000e+00 : f32
    %93 = vector.broadcast %cst_34 : f32 to vector<8x128xf32>
    %94 = arith.addf %93, %92 : vector<8x128xf32>
    %95 = arith.divf %93, %94 : vector<8x128xf32>
    %96 = arith.addf %85, %88 : vector<8x128xf32>
    %97 = arith.negf %96 : vector<8x128xf32>
    %98 = math.exp %97 : vector<8x128xf32>
    %cst_35 = arith.constant 1.000000e+00 : f32
    %99 = vector.broadcast %cst_35 : f32 to vector<8x128xf32>
    %100 = arith.addf %99, %98 : vector<8x128xf32>
    %101 = arith.divf %99, %100 : vector<8x128xf32>
    %102 = arith.addf %89, %14 : vector<8x128xf32>
    %103 = arith.mulf %95, %102 : vector<8x128xf32>
    %104 = arith.addf %86, %103 : vector<8x128xf32>
    %105 = math.tanh %104 : vector<8x128xf32>
    %106 = arith.subf %77, %105 : vector<8x128xf32>
    %107 = arith.mulf %101, %106 : vector<8x128xf32>
    %108 = arith.addf %105, %107 : vector<8x128xf32>
    %c3_i32 = arith.constant 3 : i32
    %109 = arith.index_cast %c3_i32 : i32 to index
    %c0_36 = arith.constant 0 : index
    %c0_37 = arith.constant 0 : index
    %110 = vector.load %arg8[%109, %c0_36, %c0_37] : memref<8x8x384xf32, #tpu.memory_space<vmem>>, vector<1x8x384xf32>
    %111 = vector.shape_cast %110 : vector<1x8x384xf32> to vector<8x384xf32>
    %112 = arith.truncf %108 : vector<8x128xf32> to vector<8x128xbf16>
    %c0_38 = arith.constant 0 : index
    %c0_39 = arith.constant 0 : index
    %113 = vector.load %arg4[%c0_38, %c0_39] : memref<128x384xbf16, #tpu.memory_space<vmem>>, vector<128x384xbf16>
    %cst_40 = arith.constant dense<0.000000e+00> : vector<8x384xf32>
    %114 = tpu.matmul %112, %113, %cst_40 {dimension_numbers = #tpu.dot_dimension_numbers<[1], [0], [0], [1], [0, 0, 1, 1], [], []>} : vector<8x128xbf16>, vector<128x384xbf16>, vector<8x384xf32> -> vector<8x384xf32>
    %115 = vector.extract_strided_slice %111 {offsets = [0, 0], sizes = [8, 128], strides = [1, 1]} : vector<8x384xf32> to vector<8x128xf32>
    %116 = vector.extract_strided_slice %111 {offsets = [0, 128], sizes = [8, 128], strides = [1, 1]} : vector<8x384xf32> to vector<8x128xf32>
    %117 = vector.extract_strided_slice %111 {offsets = [0, 256], sizes = [8, 128], strides = [1, 1]} : vector<8x384xf32> to vector<8x128xf32>
    %118 = vector.extract_strided_slice %114 {offsets = [0, 0], sizes = [8, 128], strides = [1, 1]} : vector<8x384xf32> to vector<8x128xf32>
    %119 = vector.extract_strided_slice %114 {offsets = [0, 128], sizes = [8, 128], strides = [1, 1]} : vector<8x384xf32> to vector<8x128xf32>
    %120 = vector.extract_strided_slice %114 {offsets = [0, 256], sizes = [8, 128], strides = [1, 1]} : vector<8x384xf32> to vector<8x128xf32>
    %121 = arith.addf %115, %118 : vector<8x128xf32>
    %122 = arith.negf %121 : vector<8x128xf32>
    %123 = math.exp %122 : vector<8x128xf32>
    %cst_41 = arith.constant 1.000000e+00 : f32
    %124 = vector.broadcast %cst_41 : f32 to vector<8x128xf32>
    %125 = arith.addf %124, %123 : vector<8x128xf32>
    %126 = arith.divf %124, %125 : vector<8x128xf32>
    %127 = arith.addf %116, %119 : vector<8x128xf32>
    %128 = arith.negf %127 : vector<8x128xf32>
    %129 = math.exp %128 : vector<8x128xf32>
    %cst_42 = arith.constant 1.000000e+00 : f32
    %130 = vector.broadcast %cst_42 : f32 to vector<8x128xf32>
    %131 = arith.addf %130, %129 : vector<8x128xf32>
    %132 = arith.divf %130, %131 : vector<8x128xf32>
    %133 = arith.addf %120, %14 : vector<8x128xf32>
    %134 = arith.mulf %126, %133 : vector<8x128xf32>
    %135 = arith.addf %117, %134 : vector<8x128xf32>
    %136 = math.tanh %135 : vector<8x128xf32>
    %137 = arith.subf %108, %136 : vector<8x128xf32>
    %138 = arith.mulf %132, %137 : vector<8x128xf32>
    %139 = arith.addf %136, %138 : vector<8x128xf32>
    %c4_i32 = arith.constant 4 : i32
    %140 = arith.index_cast %c4_i32 : i32 to index
    %c0_43 = arith.constant 0 : index
    %c0_44 = arith.constant 0 : index
    %141 = vector.load %arg8[%140, %c0_43, %c0_44] : memref<8x8x384xf32, #tpu.memory_space<vmem>>, vector<1x8x384xf32>
    %142 = vector.shape_cast %141 : vector<1x8x384xf32> to vector<8x384xf32>
    %143 = arith.truncf %139 : vector<8x128xf32> to vector<8x128xbf16>
    %c0_45 = arith.constant 0 : index
    %c0_46 = arith.constant 0 : index
    %144 = vector.load %arg4[%c0_45, %c0_46] : memref<128x384xbf16, #tpu.memory_space<vmem>>, vector<128x384xbf16>
    %cst_47 = arith.constant dense<0.000000e+00> : vector<8x384xf32>
    %145 = tpu.matmul %143, %144, %cst_47 {dimension_numbers = #tpu.dot_dimension_numbers<[1], [0], [0], [1], [0, 0, 1, 1], [], []>} : vector<8x128xbf16>, vector<128x384xbf16>, vector<8x384xf32> -> vector<8x384xf32>
    %146 = vector.extract_strided_slice %142 {offsets = [0, 0], sizes = [8, 128], strides = [1, 1]} : vector<8x384xf32> to vector<8x128xf32>
    %147 = vector.extract_strided_slice %142 {offsets = [0, 128], sizes = [8, 128], strides = [1, 1]} : vector<8x384xf32> to vector<8x128xf32>
    %148 = vector.extract_strided_slice %142 {offsets = [0, 256], sizes = [8, 128], strides = [1, 1]} : vector<8x384xf32> to vector<8x128xf32>
    %149 = vector.extract_strided_slice %145 {offsets = [0, 0], sizes = [8, 128], strides = [1, 1]} : vector<8x384xf32> to vector<8x128xf32>
    %150 = vector.extract_strided_slice %145 {offsets = [0, 128], sizes = [8, 128], strides = [1, 1]} : vector<8x384xf32> to vector<8x128xf32>
    %151 = vector.extract_strided_slice %145 {offsets = [0, 256], sizes = [8, 128], strides = [1, 1]} : vector<8x384xf32> to vector<8x128xf32>
    %152 = arith.addf %146, %149 : vector<8x128xf32>
    %153 = arith.negf %152 : vector<8x128xf32>
    %154 = math.exp %153 : vector<8x128xf32>
    %cst_48 = arith.constant 1.000000e+00 : f32
    %155 = vector.broadcast %cst_48 : f32 to vector<8x128xf32>
    %156 = arith.addf %155, %154 : vector<8x128xf32>
    %157 = arith.divf %155, %156 : vector<8x128xf32>
    %158 = arith.addf %147, %150 : vector<8x128xf32>
    %159 = arith.negf %158 : vector<8x128xf32>
    %160 = math.exp %159 : vector<8x128xf32>
    %cst_49 = arith.constant 1.000000e+00 : f32
    %161 = vector.broadcast %cst_49 : f32 to vector<8x128xf32>
    %162 = arith.addf %161, %160 : vector<8x128xf32>
    %163 = arith.divf %161, %162 : vector<8x128xf32>
    %164 = arith.addf %151, %14 : vector<8x128xf32>
    %165 = arith.mulf %157, %164 : vector<8x128xf32>
    %166 = arith.addf %148, %165 : vector<8x128xf32>
    %167 = math.tanh %166 : vector<8x128xf32>
    %168 = arith.subf %139, %167 : vector<8x128xf32>
    %169 = arith.mulf %163, %168 : vector<8x128xf32>
    %170 = arith.addf %167, %169 : vector<8x128xf32>
    %c5_i32 = arith.constant 5 : i32
    %171 = arith.index_cast %c5_i32 : i32 to index
    %c0_50 = arith.constant 0 : index
    %c0_51 = arith.constant 0 : index
    %172 = vector.load %arg8[%171, %c0_50, %c0_51] : memref<8x8x384xf32, #tpu.memory_space<vmem>>, vector<1x8x384xf32>
    %173 = vector.shape_cast %172 : vector<1x8x384xf32> to vector<8x384xf32>
    %174 = arith.truncf %170 : vector<8x128xf32> to vector<8x128xbf16>
    %c0_52 = arith.constant 0 : index
    %c0_53 = arith.constant 0 : index
    %175 = vector.load %arg4[%c0_52, %c0_53] : memref<128x384xbf16, #tpu.memory_space<vmem>>, vector<128x384xbf16>
    %cst_54 = arith.constant dense<0.000000e+00> : vector<8x384xf32>
    %176 = tpu.matmul %174, %175, %cst_54 {dimension_numbers = #tpu.dot_dimension_numbers<[1], [0], [0], [1], [0, 0, 1, 1], [], []>} : vector<8x128xbf16>, vector<128x384xbf16>, vector<8x384xf32> -> vector<8x384xf32>
    %177 = vector.extract_strided_slice %173 {offsets = [0, 0], sizes = [8, 128], strides = [1, 1]} : vector<8x384xf32> to vector<8x128xf32>
    %178 = vector.extract_strided_slice %173 {offsets = [0, 128], sizes = [8, 128], strides = [1, 1]} : vector<8x384xf32> to vector<8x128xf32>
    %179 = vector.extract_strided_slice %173 {offsets = [0, 256], sizes = [8, 128], strides = [1, 1]} : vector<8x384xf32> to vector<8x128xf32>
    %180 = vector.extract_strided_slice %176 {offsets = [0, 0], sizes = [8, 128], strides = [1, 1]} : vector<8x384xf32> to vector<8x128xf32>
    %181 = vector.extract_strided_slice %176 {offsets = [0, 128], sizes = [8, 128], strides = [1, 1]} : vector<8x384xf32> to vector<8x128xf32>
    %182 = vector.extract_strided_slice %176 {offsets = [0, 256], sizes = [8, 128], strides = [1, 1]} : vector<8x384xf32> to vector<8x128xf32>
    %183 = arith.addf %177, %180 : vector<8x128xf32>
    %184 = arith.negf %183 : vector<8x128xf32>
    %185 = math.exp %184 : vector<8x128xf32>
    %cst_55 = arith.constant 1.000000e+00 : f32
    %186 = vector.broadcast %cst_55 : f32 to vector<8x128xf32>
    %187 = arith.addf %186, %185 : vector<8x128xf32>
    %188 = arith.divf %186, %187 : vector<8x128xf32>
    %189 = arith.addf %178, %181 : vector<8x128xf32>
    %190 = arith.negf %189 : vector<8x128xf32>
    %191 = math.exp %190 : vector<8x128xf32>
    %cst_56 = arith.constant 1.000000e+00 : f32
    %192 = vector.broadcast %cst_56 : f32 to vector<8x128xf32>
    %193 = arith.addf %192, %191 : vector<8x128xf32>
    %194 = arith.divf %192, %193 : vector<8x128xf32>
    %195 = arith.addf %182, %14 : vector<8x128xf32>
    %196 = arith.mulf %188, %195 : vector<8x128xf32>
    %197 = arith.addf %179, %196 : vector<8x128xf32>
    %198 = math.tanh %197 : vector<8x128xf32>
    %199 = arith.subf %170, %198 : vector<8x128xf32>
    %200 = arith.mulf %194, %199 : vector<8x128xf32>
    %201 = arith.addf %198, %200 : vector<8x128xf32>
    %c6_i32 = arith.constant 6 : i32
    %202 = arith.index_cast %c6_i32 : i32 to index
    %c0_57 = arith.constant 0 : index
    %c0_58 = arith.constant 0 : index
    %203 = vector.load %arg8[%202, %c0_57, %c0_58] : memref<8x8x384xf32, #tpu.memory_space<vmem>>, vector<1x8x384xf32>
    %204 = vector.shape_cast %203 : vector<1x8x384xf32> to vector<8x384xf32>
    %205 = arith.truncf %201 : vector<8x128xf32> to vector<8x128xbf16>
    %c0_59 = arith.constant 0 : index
    %c0_60 = arith.constant 0 : index
    %206 = vector.load %arg4[%c0_59, %c0_60] : memref<128x384xbf16, #tpu.memory_space<vmem>>, vector<128x384xbf16>
    %cst_61 = arith.constant dense<0.000000e+00> : vector<8x384xf32>
    %207 = tpu.matmul %205, %206, %cst_61 {dimension_numbers = #tpu.dot_dimension_numbers<[1], [0], [0], [1], [0, 0, 1, 1], [], []>} : vector<8x128xbf16>, vector<128x384xbf16>, vector<8x384xf32> -> vector<8x384xf32>
    %208 = vector.extract_strided_slice %204 {offsets = [0, 0], sizes = [8, 128], strides = [1, 1]} : vector<8x384xf32> to vector<8x128xf32>
    %209 = vector.extract_strided_slice %204 {offsets = [0, 128], sizes = [8, 128], strides = [1, 1]} : vector<8x384xf32> to vector<8x128xf32>
    %210 = vector.extract_strided_slice %204 {offsets = [0, 256], sizes = [8, 128], strides = [1, 1]} : vector<8x384xf32> to vector<8x128xf32>
    %211 = vector.extract_strided_slice %207 {offsets = [0, 0], sizes = [8, 128], strides = [1, 1]} : vector<8x384xf32> to vector<8x128xf32>
    %212 = vector.extract_strided_slice %207 {offsets = [0, 128], sizes = [8, 128], strides = [1, 1]} : vector<8x384xf32> to vector<8x128xf32>
    %213 = vector.extract_strided_slice %207 {offsets = [0, 256], sizes = [8, 128], strides = [1, 1]} : vector<8x384xf32> to vector<8x128xf32>
    %214 = arith.addf %208, %211 : vector<8x128xf32>
    %215 = arith.negf %214 : vector<8x128xf32>
    %216 = math.exp %215 : vector<8x128xf32>
    %cst_62 = arith.constant 1.000000e+00 : f32
    %217 = vector.broadcast %cst_62 : f32 to vector<8x128xf32>
    %218 = arith.addf %217, %216 : vector<8x128xf32>
    %219 = arith.divf %217, %218 : vector<8x128xf32>
    %220 = arith.addf %209, %212 : vector<8x128xf32>
    %221 = arith.negf %220 : vector<8x128xf32>
    %222 = math.exp %221 : vector<8x128xf32>
    %cst_63 = arith.constant 1.000000e+00 : f32
    %223 = vector.broadcast %cst_63 : f32 to vector<8x128xf32>
    %224 = arith.addf %223, %222 : vector<8x128xf32>
    %225 = arith.divf %223, %224 : vector<8x128xf32>
    %226 = arith.addf %213, %14 : vector<8x128xf32>
    %227 = arith.mulf %219, %226 : vector<8x128xf32>
    %228 = arith.addf %210, %227 : vector<8x128xf32>
    %229 = math.tanh %228 : vector<8x128xf32>
    %230 = arith.subf %201, %229 : vector<8x128xf32>
    %231 = arith.mulf %225, %230 : vector<8x128xf32>
    %232 = arith.addf %229, %231 : vector<8x128xf32>
    %c7_i32 = arith.constant 7 : i32
    %233 = arith.index_cast %c7_i32 : i32 to index
    %c0_64 = arith.constant 0 : index
    %c0_65 = arith.constant 0 : index
    %234 = vector.load %arg8[%233, %c0_64, %c0_65] : memref<8x8x384xf32, #tpu.memory_space<vmem>>, vector<1x8x384xf32>
    %235 = vector.shape_cast %234 : vector<1x8x384xf32> to vector<8x384xf32>
    %236 = arith.truncf %232 : vector<8x128xf32> to vector<8x128xbf16>
    %c0_66 = arith.constant 0 : index
    %c0_67 = arith.constant 0 : index
    %237 = vector.load %arg4[%c0_66, %c0_67] : memref<128x384xbf16, #tpu.memory_space<vmem>>, vector<128x384xbf16>
    %cst_68 = arith.constant dense<0.000000e+00> : vector<8x384xf32>
    %238 = tpu.matmul %236, %237, %cst_68 {dimension_numbers = #tpu.dot_dimension_numbers<[1], [0], [0], [1], [0, 0, 1, 1], [], []>} : vector<8x128xbf16>, vector<128x384xbf16>, vector<8x384xf32> -> vector<8x384xf32>
    %239 = vector.extract_strided_slice %235 {offsets = [0, 0], sizes = [8, 128], strides = [1, 1]} : vector<8x384xf32> to vector<8x128xf32>
    %240 = vector.extract_strided_slice %235 {offsets = [0, 128], sizes = [8, 128], strides = [1, 1]} : vector<8x384xf32> to vector<8x128xf32>
    %241 = vector.extract_strided_slice %235 {offsets = [0, 256], sizes = [8, 128], strides = [1, 1]} : vector<8x384xf32> to vector<8x128xf32>
    %242 = vector.extract_strided_slice %238 {offsets = [0, 0], sizes = [8, 128], strides = [1, 1]} : vector<8x384xf32> to vector<8x128xf32>
    %243 = vector.extract_strided_slice %238 {offsets = [0, 128], sizes = [8, 128], strides = [1, 1]} : vector<8x384xf32> to vector<8x128xf32>
    %244 = vector.extract_strided_slice %238 {offsets = [0, 256], sizes = [8, 128], strides = [1, 1]} : vector<8x384xf32> to vector<8x128xf32>
    %245 = arith.addf %239, %242 : vector<8x128xf32>
    %246 = arith.negf %245 : vector<8x128xf32>
    %247 = math.exp %246 : vector<8x128xf32>
    %cst_69 = arith.constant 1.000000e+00 : f32
    %248 = vector.broadcast %cst_69 : f32 to vector<8x128xf32>
    %249 = arith.addf %248, %247 : vector<8x128xf32>
    %250 = arith.divf %248, %249 : vector<8x128xf32>
    %251 = arith.addf %240, %243 : vector<8x128xf32>
    %252 = arith.negf %251 : vector<8x128xf32>
    %253 = math.exp %252 : vector<8x128xf32>
    %cst_70 = arith.constant 1.000000e+00 : f32
    %254 = vector.broadcast %cst_70 : f32 to vector<8x128xf32>
    %255 = arith.addf %254, %253 : vector<8x128xf32>
    %256 = arith.divf %254, %255 : vector<8x128xf32>
    %257 = arith.addf %244, %14 : vector<8x128xf32>
    %258 = arith.mulf %250, %257 : vector<8x128xf32>
    %259 = arith.addf %241, %258 : vector<8x128xf32>
    %260 = math.tanh %259 : vector<8x128xf32>
    %261 = arith.subf %232, %260 : vector<8x128xf32>
    %262 = arith.mulf %256, %261 : vector<8x128xf32>
    %263 = arith.addf %260, %262 : vector<8x128xf32>
    %c8_i32 = arith.constant 8 : i32
    %c0_71 = arith.constant 0 : index
    %c0_72 = arith.constant 0 : index
    %264 = vector.load %arg7[%c0_71, %c0_72] : memref<8x128xf32, #tpu.memory_space<vmem>>, vector<8x128xf32>
    tpu.vector_store %arg7[%c0_71, %c0_72], %263 {strides = array<i32>} : memref<8x128xf32, #tpu.memory_space<vmem>>, vector<8x128xf32>,
    return
  }
  func.func @transform_0(%arg0: i32, %arg1: i32) -> (i32, i32, i32) {
    %c0_i32 = arith.constant 0 : i32
    %c0_i32_0 = arith.constant 0 : i32
    return %arg1, %arg0, %c0_i32 : i32, i32, i32
  }
  func.func @transform_1(%arg0: i32, %arg1: i32) -> (i32, i32) {
    %c0_i32 = arith.constant 0 : i32
    %c0_i32_0 = arith.constant 0 : i32
    %c0_i32_1 = arith.constant 0 : i32
    return %c0_i32, %c0_i32_0 : i32, i32
  }
  func.func @transform_2(%arg0: i32, %arg1: i32) -> (i32, i32) {
    %c0_i32 = arith.constant 0 : i32
    %c0_i32_0 = arith.constant 0 : i32
    %c0_i32_1 = arith.constant 0 : i32
    return %c0_i32, %c0_i32_0 : i32, i32
  }
  func.func @transform_3(%arg0: i32, %arg1: i32) -> (i32, i32) {
    %c0_i32 = arith.constant 0 : i32
    %c0_i32_0 = arith.constant 0 : i32
    %c0_i32_1 = arith.constant 0 : i32
    return %c0_i32, %c0_i32_0 : i32, i32
  }
  func.func @transform_4(%arg0: i32, %arg1: i32) -> (i32, i32) {
    %c0_i32 = arith.constant 0 : i32
    %c0_i32_0 = arith.constant 0 : i32
    %c0_i32_1 = arith.constant 0 : i32
    return %c0_i32, %c0_i32_0 : i32, i32
  }
  func.func @transform_5(%arg0: i32, %arg1: i32) -> (i32, i32) {
    %c0_i32 = arith.constant 0 : i32
    %c0_i32_0 = arith.constant 0 : i32
    return %arg0, %c0_i32 : i32, i32
  }
}

module attributes {stable_mosaic.version = 11 : i64} {
  func.func @_gru_fused_kernel(%arg0: i32, %arg1: i32, %arg2: memref<8x8x128xbf16, #tpu.memory_space<vmem>>, %arg3: memref<128x384xbf16, #tpu.memory_space<vmem>>, %arg4: memref<128x384xbf16, #tpu.memory_space<vmem>>, %arg5: memref<1x384xf32, #tpu.memory_space<vmem>>, %arg6: memref<1x128xf32, #tpu.memory_space<vmem>>, %arg7: memref<8x128xf32, #tpu.memory_space<vmem>>, %arg8: memref<8x8x384xf32, #tpu.memory_space<vmem>>) attributes {dimension_semantics = [#tpu.dimension_semantics<parallel>, #tpu.dimension_semantics<arbitrary>], iteration_bounds = array<i64: 1, 1>, scalar_prefetch = 0 : i64, scratch_operands = 1 : i64, tpu.core_type = #tpu.core_type<tc>, window_params = [{transform_indices = @transform_0, window_bounds = array<i64: 8, 8, 128>}, {pipeline_mode = #tpu.pipeline_mode<synchronous>, transform_indices = @transform_1, window_bounds = array<i64: 128, 384>}, {pipeline_mode = #tpu.pipeline_mode<synchronous>, transform_indices = @transform_2, window_bounds = array<i64: 128, 384>}, {pipeline_mode = #tpu.pipeline_mode<synchronous>, transform_indices = @transform_3, window_bounds = array<i64: 1, 384>}, {pipeline_mode = #tpu.pipeline_mode<synchronous>, transform_indices = @transform_4, window_bounds = array<i64: 1, 128>}, {transform_indices = @transform_5, window_bounds = array<i64: 8, 128>}]} {
    %c0_i32 = arith.constant 0 : i32
    %0 = arith.cmpi eq, %arg1, %c0_i32 : i32
    %1 = arith.extui %0 : i1 to i32
    %c0_i32_0 = arith.constant 0 : i32
    %2 = arith.cmpi ne, %1, %c0_i32_0 : i32
    scf.if %2 {
      %cst_73 = arith.constant 0.000000e+00 : f32
      %265 = vector.broadcast %cst_73 : f32 to vector<8x128xf32>
      %c0_74 = arith.constant 0 : index
      %c0_75 = arith.constant 0 : index
      %266 = vector.load %arg7[%c0_74, %c0_75] : memref<8x128xf32, #tpu.memory_space<vmem>>, vector<8x128xf32>
      tpu.vector_store %arg7[%c0_74, %c0_75], %265 {strides = array<i32>} : memref<8x128xf32, #tpu.memory_space<vmem>>, vector<8x128xf32>,
    } else {
    }
    %c0 = arith.constant 0 : index
    %c0_1 = arith.constant 0 : index
    %c0_2 = arith.constant 0 : index
    %3 = vector.load %arg2[%c0, %c0_1, %c0_2] : memref<8x8x128xbf16, #tpu.memory_space<vmem>>, vector<8x8x128xbf16>
    %4 = vector.shape_cast %3 : vector<8x8x128xbf16> to vector<64x128xbf16>
    %c0_3 = arith.constant 0 : index
    %c0_4 = arith.constant 0 : index
    %5 = vector.load %arg3[%c0_3, %c0_4] : memref<128x384xbf16, #tpu.memory_space<vmem>>, vector<128x384xbf16>
    %cst = arith.constant dense<0.000000e+00> : vector<64x384xf32>
    %6 = tpu.matmul %4, %5, %cst {dimension_numbers = #tpu.dot_dimension_numbers<[1], [0], [0], [1], [0, 0, 1, 1], [], []>} : vector<64x128xbf16>, vector<128x384xbf16>, vector<64x384xf32> -> vector<64x384xf32>
    %c0_5 = arith.constant 0 : index
    %c0_6 = arith.constant 0 : index
    %7 = vector.load %arg5[%c0_5, %c0_6] : memref<1x384xf32, #tpu.memory_space<vmem>>, vector<1x384xf32>
    %8 = vector.broadcast %7 : vector<1x384xf32> to vector<64x384xf32>
    %9 = arith.addf %6, %8 : vector<64x384xf32>
    %10 = vector.shape_cast %9 : vector<64x384xf32> to vector<8x8x384xf32>
    %c0_7 = arith.constant 0 : index
    %c0_8 = arith.constant 0 : index
    %c0_9 = arith.constant 0 : index
    %11 = vector.load %arg8[%c0_7, %c0_8, %c0_9] : memref<8x8x384xf32, #tpu.memory_space<vmem>>, vector<8x8x384xf32>
    tpu.vector_store %arg8[%c0_7, %c0_8, %c0_9], %10 {strides = array<i32>} : memref<8x8x384xf32, #tpu.memory_space<vmem>>, vector<8x8x384xf32>,
    %c0_10 = arith.constant 0 : index
    %c0_11 = arith.constant 0 : index
    %12 = vector.load %arg6[%c0_10, %c0_11] : memref<1x128xf32, #tpu.memory_space<vmem>>, vector<1x128xf32>
    %13 = vector.shape_cast %12 : vector<1x128xf32> to vector<1x128xf32>
    %14 = vector.broadcast %13 : vector<1x128xf32> to vector<8x128xf32>
    %c0_12 = arith.constant 0 : index
    %c0_13 = arith.constant 0 : index
    %15 = vector.load %arg7[%c0_12, %c0_13] : memref<8x128xf32, #tpu.memory_space<vmem>>, vector<8x128xf32>
    %c0_i32_14 = arith.constant 0 : i32
    %16 = arith.index_cast %c0_i32_14 : i32 to index
    %c0_15 = arith.constant 0 : index
    %c0_16 = arith.constant 0 : index
    %17 = vector.load %arg8[%16, %c0_15, %c0_16] : memref<8x8x384xf32, #tpu.memory_space<vmem>>, vector<1x8x384xf32>
    %18 = vector.shape_cast %17 : vector<1x8x384xf32> to vector<8x384xf32>
    %19 = arith.truncf %15 : vector<8x128xf32> to vector<8x128xbf16>
    %c0_17 = arith.constant 0 : index
    %c0_18 = arith.constant 0 : index
    %20 = vector.load %arg4[%c0_17, %c0_18] : memref<128x384xbf16, #tpu.memory_space<vmem>>, vector<128x384xbf16>
    %cst_19 = arith.constant dense<0.000000e+00> : vector<8x384xf32>
    %21 = tpu.matmul %19, %20, %cst_19 {dimension_numbers = #tpu.dot_dimension_numbers<[1], [0], [0], [1], [0, 0, 1, 1], [], []>} : vector<8x128xbf16>, vector<128x384xbf16>, vector<8x384xf32> -> vector<8x384xf32>
    %22 = vector.extract_strided_slice %18 {offsets = [0, 0], sizes = [8, 128], strides = [1, 1]} : vector<8x384xf32> to vector<8x128xf32>
    %23 = vector.extract_strided_slice %18 {offsets = [0, 128], sizes = [8, 128], strides = [1, 1]} : vector<8x384xf32> to vector<8x128xf32>
    %24 = vector.extract_strided_slice %18 {offsets = [0, 256], sizes = [8, 128], strides = [1, 1]} : vector<8x384xf32> to vector<8x128xf32>
    %25 = vector.extract_strided_slice %21 {offsets = [0, 0], sizes = [8, 128], strides = [1, 1]} : vector<8x384xf32> to vector<8x128xf32>
    %26 = vector.extract_strided_slice %21 {offsets = [0, 128], sizes = [8, 128], strides = [1, 1]} : vector<8x384xf32> to vector<8x128xf32>
    %27 = vector.extract_strided_slice %21 {offsets = [0, 256], sizes = [8, 128], strides = [1, 1]} : vector<8x384xf32> to vector<8x128xf32>
    %28 = arith.addf %22, %25 : vector<8x128xf32>
    %29 = arith.negf %28 : vector<8x128xf32>
    %30 = math.exp %29 : vector<8x128xf32>
    %cst_20 = arith.constant 1.000000e+00 : f32
    %31 = vector.broadcast %cst_20 : f32 to vector<8x128xf32>
    %32 = arith.addf %31, %30 : vector<8x128xf32>
    %33 = arith.divf %31, %32 : vector<8x128xf32>
    %34 = arith.addf %23, %26 : vector<8x128xf32>
    %35 = arith.negf %34 : vector<8x128xf32>
    %36 = math.exp %35 : vector<8x128xf32>
    %cst_21 = arith.constant 1.000000e+00 : f32
    %37 = vector.broadcast %cst_21 : f32 to vector<8x128xf32>
    %38 = arith.addf %37, %36 : vector<8x128xf32>
    %39 = arith.divf %37, %38 : vector<8x128xf32>
    %40 = arith.addf %27, %14 : vector<8x128xf32>
    %41 = arith.mulf %33, %40 : vector<8x128xf32>
    %42 = arith.addf %24, %41 : vector<8x128xf32>
    %43 = math.tanh %42 : vector<8x128xf32>
    %44 = arith.subf %15, %43 : vector<8x128xf32>
    %45 = arith.mulf %39, %44 : vector<8x128xf32>
    %46 = arith.addf %43, %45 : vector<8x128xf32>
    %c1_i32 = arith.constant 1 : i32
    %47 = arith.index_cast %c1_i32 : i32 to index
    %c0_22 = arith.constant 0 : index
    %c0_23 = arith.constant 0 : index
    %48 = vector.load %arg8[%47, %c0_22, %c0_23] : memref<8x8x384xf32, #tpu.memory_space<vmem>>, vector<1x8x384xf32>
    %49 = vector.shape_cast %48 : vector<1x8x384xf32> to vector<8x384xf32>
    %50 = arith.truncf %46 : vector<8x128xf32> to vector<8x128xbf16>
    %c0_24 = arith.constant 0 : index
    %c0_25 = arith.constant 0 : index
    %51 = vector.load %arg4[%c0_24, %c0_25] : memref<128x384xbf16, #tpu.memory_space<vmem>>, vector<128x384xbf16>
    %cst_26 = arith.constant dense<0.000000e+00> : vector<8x384xf32>
    %52 = tpu.matmul %50, %51, %cst_26 {dimension_numbers = #tpu.dot_dimension_numbers<[1], [0], [0], [1], [0, 0, 1, 1], [], []>} : vector<8x128xbf16>, vector<128x384xbf16>, vector<8x384xf32> -> vector<8x384xf32>
    %53 = vector.extract_strided_slice %49 {offsets = [0, 0], sizes = [8, 128], strides = [1, 1]} : vector<8x384xf32> to vector<8x128xf32>
    %54 = vector.extract_strided_slice %49 {offsets = [0, 128], sizes = [8, 128], strides = [1, 1]} : vector<8x384xf32> to vector<8x128xf32>
    %55 = vector.extract_strided_slice %49 {offsets = [0, 256], sizes = [8, 128], strides = [1, 1]} : vector<8x384xf32> to vector<8x128xf32>
    %56 = vector.extract_strided_slice %52 {offsets = [0, 0], sizes = [8, 128], strides = [1, 1]} : vector<8x384xf32> to vector<8x128xf32>
    %57 = vector.extract_strided_slice %52 {offsets = [0, 128], sizes = [8, 128], strides = [1, 1]} : vector<8x384xf32> to vector<8x128xf32>
    %58 = vector.extract_strided_slice %52 {offsets = [0, 256], sizes = [8, 128], strides = [1, 1]} : vector<8x384xf32> to vector<8x128xf32>
    %59 = arith.addf %53, %56 : vector<8x128xf32>
    %60 = arith.negf %59 : vector<8x128xf32>
    %61 = math.exp %60 : vector<8x128xf32>
    %cst_27 = arith.constant 1.000000e+00 : f32
    %62 = vector.broadcast %cst_27 : f32 to vector<8x128xf32>
    %63 = arith.addf %62, %61 : vector<8x128xf32>
    %64 = arith.divf %62, %63 : vector<8x128xf32>
    %65 = arith.addf %54, %57 : vector<8x128xf32>
    %66 = arith.negf %65 : vector<8x128xf32>
    %67 = math.exp %66 : vector<8x128xf32>
    %cst_28 = arith.constant 1.000000e+00 : f32
    %68 = vector.broadcast %cst_28 : f32 to vector<8x128xf32>
    %69 = arith.addf %68, %67 : vector<8x128xf32>
    %70 = arith.divf %68, %69 : vector<8x128xf32>
    %71 = arith.addf %58, %14 : vector<8x128xf32>
    %72 = arith.mulf %64, %71 : vector<8x128xf32>
    %73 = arith.addf %55, %72 : vector<8x128xf32>
    %74 = math.tanh %73 : vector<8x128xf32>
    %75 = arith.subf %46, %74 : vector<8x128xf32>
    %76 = arith.mulf %70, %75 : vector<8x128xf32>
    %77 = arith.addf %74, %76 : vector<8x128xf32>
    %c2_i32 = arith.constant 2 : i32
    %78 = arith.index_cast %c2_i32 : i32 to index
    %c0_29 = arith.constant 0 : index
    %c0_30 = arith.constant 0 : index
    %79 = vector.load %arg8[%78, %c0_29, %c0_30] : memref<8x8x384xf32, #tpu.memory_space<vmem>>, vector<1x8x384xf32>
    %80 = vector.shape_cast %79 : vector<1x8x384xf32> to vector<8x384xf32>
    %81 = arith.truncf %77 : vector<8x128xf32> to vector<8x128xbf16>
    %c0_31 = arith.constant 0 : index
    %c0_32 = arith.constant 0 : index
    %82 = vector.load %arg4[%c0_31, %c0_32] : memref<128x384xbf16, #tpu.memory_space<vmem>>, vector<128x384xbf16>
    %cst_33 = arith.constant dense<0.000000e+00> : vector<8x384xf32>
    %83 = tpu.matmul %81, %82, %cst_33 {dimension_numbers = #tpu.dot_dimension_numbers<[1], [0], [0], [1], [0, 0, 1, 1], [], []>} : vector<8x128xbf16>, vector<128x384xbf16>, vector<8x384xf32> -> vector<8x384xf32>
    %84 = vector.extract_strided_slice %80 {offsets = [0, 0], sizes = [8, 128], strides = [1, 1]} : vector<8x384xf32> to vector<8x128xf32>
    %85 = vector.extract_strided_slice %80 {offsets = [0, 128], sizes = [8, 128], strides = [1, 1]} : vector<8x384xf32> to vector<8x128xf32>
    %86 = vector.extract_strided_slice %80 {offsets = [0, 256], sizes = [8, 128], strides = [1, 1]} : vector<8x384xf32> to vector<8x128xf32>
    %87 = vector.extract_strided_slice %83 {offsets = [0, 0], sizes = [8, 128], strides = [1, 1]} : vector<8x384xf32> to vector<8x128xf32>
    %88 = vector.extract_strided_slice %83 {offsets = [0, 128], sizes = [8, 128], strides = [1, 1]} : vector<8x384xf32> to vector<8x128xf32>
    %89 = vector.extract_strided_slice %83 {offsets = [0, 256], sizes = [8, 128], strides = [1, 1]} : vector<8x384xf32> to vector<8x128xf32>
    %90 = arith.addf %84, %87 : vector<8x128xf32>
    %91 = arith.negf %90 : vector<8x128xf32>
    %92 = math.exp %91 : vector<8x128xf32>
    %cst_34 = arith.constant 1.000000e+00 : f32
    %93 = vector.broadcast %cst_34 : f32 to vector<8x128xf32>
    %94 = arith.addf %93, %92 : vector<8x128xf32>
    %95 = arith.divf %93, %94 : vector<8x128xf32>
    %96 = arith.addf %85, %88 : vector<8x128xf32>
    %97 = arith.negf %96 : vector<8x128xf32>
    %98 = math.exp %97 : vector<8x128xf32>
    %cst_35 = arith.constant 1.000000e+00 : f32
    %99 = vector.broadcast %cst_35 : f32 to vector<8x128xf32>
    %100 = arith.addf %99, %98 : vector<8x128xf32>
    %101 = arith.divf %99, %100 : vector<8x128xf32>
    %102 = arith.addf %89, %14 : vector<8x128xf32>
    %103 = arith.mulf %95, %102 : vector<8x128xf32>
    %104 = arith.addf %86, %103 : vector<8x128xf32>
    %105 = math.tanh %104 : vector<8x128xf32>
    %106 = arith.subf %77, %105 : vector<8x128xf32>
    %107 = arith.mulf %101, %106 : vector<8x128xf32>
    %108 = arith.addf %105, %107 : vector<8x128xf32>
    %c3_i32 = arith.constant 3 : i32
    %109 = arith.index_cast %c3_i32 : i32 to index
    %c0_36 = arith.constant 0 : index
    %c0_37 = arith.constant 0 : index
    %110 = vector.load %arg8[%109, %c0_36, %c0_37] : memref<8x8x384xf32, #tpu.memory_space<vmem>>, vector<1x8x384xf32>
    %111 = vector.shape_cast %110 : vector<1x8x384xf32> to vector<8x384xf32>
    %112 = arith.truncf %108 : vector<8x128xf32> to vector<8x128xbf16>
    %c0_38 = arith.constant 0 : index
    %c0_39 = arith.constant 0 : index
    %113 = vector.load %arg4[%c0_38, %c0_39] : memref<128x384xbf16, #tpu.memory_space<vmem>>, vector<128x384xbf16>
    %cst_40 = arith.constant dense<0.000000e+00> : vector<8x384xf32>
    %114 = tpu.matmul %112, %113, %cst_40 {dimension_numbers = #tpu.dot_dimension_numbers<[1], [0], [0], [1], [0, 0, 1, 1], [], []>} : vector<8x128xbf16>, vector<128x384xbf16>, vector<8x384xf32> -> vector<8x384xf32>
    %115 = vector.extract_strided_slice %111 {offsets = [0, 0], sizes = [8, 128], strides = [1, 1]} : vector<8x384xf32> to vector<8x128xf32>
    %116 = vector.extract_strided_slice %111 {offsets = [0, 128], sizes = [8, 128], strides = [1, 1]} : vector<8x384xf32> to vector<8x128xf32>
    %117 = vector.extract_strided_slice %111 {offsets = [0, 256], sizes = [8, 128], strides = [1, 1]} : vector<8x384xf32> to vector<8x128xf32>
    %118 = vector.extract_strided_slice %114 {offsets = [0, 0], sizes = [8, 128], strides = [1, 1]} : vector<8x384xf32> to vector<8x128xf32>
    %119 = vector.extract_strided_slice %114 {offsets = [0, 128], sizes = [8, 128], strides = [1, 1]} : vector<8x384xf32> to vector<8x128xf32>
    %120 = vector.extract_strided_slice %114 {offsets = [0, 256], sizes = [8, 128], strides = [1, 1]} : vector<8x384xf32> to vector<8x128xf32>
    %121 = arith.addf %115, %118 : vector<8x128xf32>
    %122 = arith.negf %121 : vector<8x128xf32>
    %123 = math.exp %122 : vector<8x128xf32>
    %cst_41 = arith.constant 1.000000e+00 : f32
    %124 = vector.broadcast %cst_41 : f32 to vector<8x128xf32>
    %125 = arith.addf %124, %123 : vector<8x128xf32>
    %126 = arith.divf %124, %125 : vector<8x128xf32>
    %127 = arith.addf %116, %119 : vector<8x128xf32>
    %128 = arith.negf %127 : vector<8x128xf32>
    %129 = math.exp %128 : vector<8x128xf32>
    %cst_42 = arith.constant 1.000000e+00 : f32
    %130 = vector.broadcast %cst_42 : f32 to vector<8x128xf32>
    %131 = arith.addf %130, %129 : vector<8x128xf32>
    %132 = arith.divf %130, %131 : vector<8x128xf32>
    %133 = arith.addf %120, %14 : vector<8x128xf32>
    %134 = arith.mulf %126, %133 : vector<8x128xf32>
    %135 = arith.addf %117, %134 : vector<8x128xf32>
    %136 = math.tanh %135 : vector<8x128xf32>
    %137 = arith.subf %108, %136 : vector<8x128xf32>
    %138 = arith.mulf %132, %137 : vector<8x128xf32>
    %139 = arith.addf %136, %138 : vector<8x128xf32>
    %c4_i32 = arith.constant 4 : i32
    %140 = arith.index_cast %c4_i32 : i32 to index
    %c0_43 = arith.constant 0 : index
    %c0_44 = arith.constant 0 : index
    %141 = vector.load %arg8[%140, %c0_43, %c0_44] : memref<8x8x384xf32, #tpu.memory_space<vmem>>, vector<1x8x384xf32>
    %142 = vector.shape_cast %141 : vector<1x8x384xf32> to vector<8x384xf32>
    %143 = arith.truncf %139 : vector<8x128xf32> to vector<8x128xbf16>
    %c0_45 = arith.constant 0 : index
    %c0_46 = arith.constant 0 : index
    %144 = vector.load %arg4[%c0_45, %c0_46] : memref<128x384xbf16, #tpu.memory_space<vmem>>, vector<128x384xbf16>
    %cst_47 = arith.constant dense<0.000000e+00> : vector<8x384xf32>
    %145 = tpu.matmul %143, %144, %cst_47 {dimension_numbers = #tpu.dot_dimension_numbers<[1], [0], [0], [1], [0, 0, 1, 1], [], []>} : vector<8x128xbf16>, vector<128x384xbf16>, vector<8x384xf32> -> vector<8x384xf32>
    %146 = vector.extract_strided_slice %142 {offsets = [0, 0], sizes = [8, 128], strides = [1, 1]} : vector<8x384xf32> to vector<8x128xf32>
    %147 = vector.extract_strided_slice %142 {offsets = [0, 128], sizes = [8, 128], strides = [1, 1]} : vector<8x384xf32> to vector<8x128xf32>
    %148 = vector.extract_strided_slice %142 {offsets = [0, 256], sizes = [8, 128], strides = [1, 1]} : vector<8x384xf32> to vector<8x128xf32>
    %149 = vector.extract_strided_slice %145 {offsets = [0, 0], sizes = [8, 128], strides = [1, 1]} : vector<8x384xf32> to vector<8x128xf32>
    %150 = vector.extract_strided_slice %145 {offsets = [0, 128], sizes = [8, 128], strides = [1, 1]} : vector<8x384xf32> to vector<8x128xf32>
    %151 = vector.extract_strided_slice %145 {offsets = [0, 256], sizes = [8, 128], strides = [1, 1]} : vector<8x384xf32> to vector<8x128xf32>
    %152 = arith.addf %146, %149 : vector<8x128xf32>
    %153 = arith.negf %152 : vector<8x128xf32>
    %154 = math.exp %153 : vector<8x128xf32>
    %cst_48 = arith.constant 1.000000e+00 : f32
    %155 = vector.broadcast %cst_48 : f32 to vector<8x128xf32>
    %156 = arith.addf %155, %154 : vector<8x128xf32>
    %157 = arith.divf %155, %156 : vector<8x128xf32>
    %158 = arith.addf %147, %150 : vector<8x128xf32>
    %159 = arith.negf %158 : vector<8x128xf32>
    %160 = math.exp %159 : vector<8x128xf32>
    %cst_49 = arith.constant 1.000000e+00 : f32
    %161 = vector.broadcast %cst_49 : f32 to vector<8x128xf32>
    %162 = arith.addf %161, %160 : vector<8x128xf32>
    %163 = arith.divf %161, %162 : vector<8x128xf32>
    %164 = arith.addf %151, %14 : vector<8x128xf32>
    %165 = arith.mulf %157, %164 : vector<8x128xf32>
    %166 = arith.addf %148, %165 : vector<8x128xf32>
    %167 = math.tanh %166 : vector<8x128xf32>
    %168 = arith.subf %139, %167 : vector<8x128xf32>
    %169 = arith.mulf %163, %168 : vector<8x128xf32>
    %170 = arith.addf %167, %169 : vector<8x128xf32>
    %c5_i32 = arith.constant 5 : i32
    %171 = arith.index_cast %c5_i32 : i32 to index
    %c0_50 = arith.constant 0 : index
    %c0_51 = arith.constant 0 : index
    %172 = vector.load %arg8[%171, %c0_50, %c0_51] : memref<8x8x384xf32, #tpu.memory_space<vmem>>, vector<1x8x384xf32>
    %173 = vector.shape_cast %172 : vector<1x8x384xf32> to vector<8x384xf32>
    %174 = arith.truncf %170 : vector<8x128xf32> to vector<8x128xbf16>
    %c0_52 = arith.constant 0 : index
    %c0_53 = arith.constant 0 : index
    %175 = vector.load %arg4[%c0_52, %c0_53] : memref<128x384xbf16, #tpu.memory_space<vmem>>, vector<128x384xbf16>
    %cst_54 = arith.constant dense<0.000000e+00> : vector<8x384xf32>
    %176 = tpu.matmul %174, %175, %cst_54 {dimension_numbers = #tpu.dot_dimension_numbers<[1], [0], [0], [1], [0, 0, 1, 1], [], []>} : vector<8x128xbf16>, vector<128x384xbf16>, vector<8x384xf32> -> vector<8x384xf32>
    %177 = vector.extract_strided_slice %173 {offsets = [0, 0], sizes = [8, 128], strides = [1, 1]} : vector<8x384xf32> to vector<8x128xf32>
    %178 = vector.extract_strided_slice %173 {offsets = [0, 128], sizes = [8, 128], strides = [1, 1]} : vector<8x384xf32> to vector<8x128xf32>
    %179 = vector.extract_strided_slice %173 {offsets = [0, 256], sizes = [8, 128], strides = [1, 1]} : vector<8x384xf32> to vector<8x128xf32>
    %180 = vector.extract_strided_slice %176 {offsets = [0, 0], sizes = [8, 128], strides = [1, 1]} : vector<8x384xf32> to vector<8x128xf32>
    %181 = vector.extract_strided_slice %176 {offsets = [0, 128], sizes = [8, 128], strides = [1, 1]} : vector<8x384xf32> to vector<8x128xf32>
    %182 = vector.extract_strided_slice %176 {offsets = [0, 256], sizes = [8, 128], strides = [1, 1]} : vector<8x384xf32> to vector<8x128xf32>
    %183 = arith.addf %177, %180 : vector<8x128xf32>
    %184 = arith.negf %183 : vector<8x128xf32>
    %185 = math.exp %184 : vector<8x128xf32>
    %cst_55 = arith.constant 1.000000e+00 : f32
    %186 = vector.broadcast %cst_55 : f32 to vector<8x128xf32>
    %187 = arith.addf %186, %185 : vector<8x128xf32>
    %188 = arith.divf %186, %187 : vector<8x128xf32>
    %189 = arith.addf %178, %181 : vector<8x128xf32>
    %190 = arith.negf %189 : vector<8x128xf32>
    %191 = math.exp %190 : vector<8x128xf32>
    %cst_56 = arith.constant 1.000000e+00 : f32
    %192 = vector.broadcast %cst_56 : f32 to vector<8x128xf32>
    %193 = arith.addf %192, %191 : vector<8x128xf32>
    %194 = arith.divf %192, %193 : vector<8x128xf32>
    %195 = arith.addf %182, %14 : vector<8x128xf32>
    %196 = arith.mulf %188, %195 : vector<8x128xf32>
    %197 = arith.addf %179, %196 : vector<8x128xf32>
    %198 = math.tanh %197 : vector<8x128xf32>
    %199 = arith.subf %170, %198 : vector<8x128xf32>
    %200 = arith.mulf %194, %199 : vector<8x128xf32>
    %201 = arith.addf %198, %200 : vector<8x128xf32>
    %c6_i32 = arith.constant 6 : i32
    %202 = arith.index_cast %c6_i32 : i32 to index
    %c0_57 = arith.constant 0 : index
    %c0_58 = arith.constant 0 : index
    %203 = vector.load %arg8[%202, %c0_57, %c0_58] : memref<8x8x384xf32, #tpu.memory_space<vmem>>, vector<1x8x384xf32>
    %204 = vector.shape_cast %203 : vector<1x8x384xf32> to vector<8x384xf32>
    %205 = arith.truncf %201 : vector<8x128xf32> to vector<8x128xbf16>
    %c0_59 = arith.constant 0 : index
    %c0_60 = arith.constant 0 : index
    %206 = vector.load %arg4[%c0_59, %c0_60] : memref<128x384xbf16, #tpu.memory_space<vmem>>, vector<128x384xbf16>
    %cst_61 = arith.constant dense<0.000000e+00> : vector<8x384xf32>
    %207 = tpu.matmul %205, %206, %cst_61 {dimension_numbers = #tpu.dot_dimension_numbers<[1], [0], [0], [1], [0, 0, 1, 1], [], []>} : vector<8x128xbf16>, vector<128x384xbf16>, vector<8x384xf32> -> vector<8x384xf32>
    %208 = vector.extract_strided_slice %204 {offsets = [0, 0], sizes = [8, 128], strides = [1, 1]} : vector<8x384xf32> to vector<8x128xf32>
    %209 = vector.extract_strided_slice %204 {offsets = [0, 128], sizes = [8, 128], strides = [1, 1]} : vector<8x384xf32> to vector<8x128xf32>
    %210 = vector.extract_strided_slice %204 {offsets = [0, 256], sizes = [8, 128], strides = [1, 1]} : vector<8x384xf32> to vector<8x128xf32>
    %211 = vector.extract_strided_slice %207 {offsets = [0, 0], sizes = [8, 128], strides = [1, 1]} : vector<8x384xf32> to vector<8x128xf32>
    %212 = vector.extract_strided_slice %207 {offsets = [0, 128], sizes = [8, 128], strides = [1, 1]} : vector<8x384xf32> to vector<8x128xf32>
    %213 = vector.extract_strided_slice %207 {offsets = [0, 256], sizes = [8, 128], strides = [1, 1]} : vector<8x384xf32> to vector<8x128xf32>
    %214 = arith.addf %208, %211 : vector<8x128xf32>
    %215 = arith.negf %214 : vector<8x128xf32>
    %216 = math.exp %215 : vector<8x128xf32>
    %cst_62 = arith.constant 1.000000e+00 : f32
    %217 = vector.broadcast %cst_62 : f32 to vector<8x128xf32>
    %218 = arith.addf %217, %216 : vector<8x128xf32>
    %219 = arith.divf %217, %218 : vector<8x128xf32>
    %220 = arith.addf %209, %212 : vector<8x128xf32>
    %221 = arith.negf %220 : vector<8x128xf32>
    %222 = math.exp %221 : vector<8x128xf32>
    %cst_63 = arith.constant 1.000000e+00 : f32
    %223 = vector.broadcast %cst_63 : f32 to vector<8x128xf32>
    %224 = arith.addf %223, %222 : vector<8x128xf32>
    %225 = arith.divf %223, %224 : vector<8x128xf32>
    %226 = arith.addf %213, %14 : vector<8x128xf32>
    %227 = arith.mulf %219, %226 : vector<8x128xf32>
    %228 = arith.addf %210, %227 : vector<8x128xf32>
    %229 = math.tanh %228 : vector<8x128xf32>
    %230 = arith.subf %201, %229 : vector<8x128xf32>
    %231 = arith.mulf %225, %230 : vector<8x128xf32>
    %232 = arith.addf %229, %231 : vector<8x128xf32>
    %c7_i32 = arith.constant 7 : i32
    %233 = arith.index_cast %c7_i32 : i32 to index
    %c0_64 = arith.constant 0 : index
    %c0_65 = arith.constant 0 : index
    %234 = vector.load %arg8[%233, %c0_64, %c0_65] : memref<8x8x384xf32, #tpu.memory_space<vmem>>, vector<1x8x384xf32>
    %235 = vector.shape_cast %234 : vector<1x8x384xf32> to vector<8x384xf32>
    %236 = arith.truncf %232 : vector<8x128xf32> to vector<8x128xbf16>
    %c0_66 = arith.constant 0 : index
    %c0_67 = arith.constant 0 : index
    %237 = vector.load %arg4[%c0_66, %c0_67] : memref<128x384xbf16, #tpu.memory_space<vmem>>, vector<128x384xbf16>
    %cst_68 = arith.constant dense<0.000000e+00> : vector<8x384xf32>
    %238 = tpu.matmul %236, %237, %cst_68 {dimension_numbers = #tpu.dot_dimension_numbers<[1], [0], [0], [1], [0, 0, 1, 1], [], []>} : vector<8x128xbf16>, vector<128x384xbf16>, vector<8x384xf32> -> vector<8x384xf32>
    %239 = vector.extract_strided_slice %235 {offsets = [0, 0], sizes = [8, 128], strides = [1, 1]} : vector<8x384xf32> to vector<8x128xf32>
    %240 = vector.extract_strided_slice %235 {offsets = [0, 128], sizes = [8, 128], strides = [1, 1]} : vector<8x384xf32> to vector<8x128xf32>
    %241 = vector.extract_strided_slice %235 {offsets = [0, 256], sizes = [8, 128], strides = [1, 1]} : vector<8x384xf32> to vector<8x128xf32>
    %242 = vector.extract_strided_slice %238 {offsets = [0, 0], sizes = [8, 128], strides = [1, 1]} : vector<8x384xf32> to vector<8x128xf32>
    %243 = vector.extract_strided_slice %238 {offsets = [0, 128], sizes = [8, 128], strides = [1, 1]} : vector<8x384xf32> to vector<8x128xf32>
    %244 = vector.extract_strided_slice %238 {offsets = [0, 256], sizes = [8, 128], strides = [1, 1]} : vector<8x384xf32> to vector<8x128xf32>
    %245 = arith.addf %239, %242 : vector<8x128xf32>
    %246 = arith.negf %245 : vector<8x128xf32>
    %247 = math.exp %246 : vector<8x128xf32>
    %cst_69 = arith.constant 1.000000e+00 : f32
    %248 = vector.broadcast %cst_69 : f32 to vector<8x128xf32>
    %249 = arith.addf %248, %247 : vector<8x128xf32>
    %250 = arith.divf %248, %249 : vector<8x128xf32>
    %251 = arith.addf %240, %243 : vector<8x128xf32>
    %252 = arith.negf %251 : vector<8x128xf32>
    %253 = math.exp %252 : vector<8x128xf32>
    %cst_70 = arith.constant 1.000000e+00 : f32
    %254 = vector.broadcast %cst_70 : f32 to vector<8x128xf32>
    %255 = arith.addf %254, %253 : vector<8x128xf32>
    %256 = arith.divf %254, %255 : vector<8x128xf32>
    %257 = arith.addf %244, %14 : vector<8x128xf32>
    %258 = arith.mulf %250, %257 : vector<8x128xf32>
    %259 = arith.addf %241, %258 : vector<8x128xf32>
    %260 = math.tanh %259 : vector<8x128xf32>
    %261 = arith.subf %232, %260 : vector<8x128xf32>
    %262 = arith.mulf %256, %261 : vector<8x128xf32>
    %263 = arith.addf %260, %262 : vector<8x128xf32>
    %c8_i32 = arith.constant 8 : i32
    %c0_71 = arith.constant 0 : index
    %c0_72 = arith.constant 0 : index
    %264 = vector.load %arg7[%c0_71, %c0_72] : memref<8x128xf32, #tpu.memory_space<vmem>>, vector<8x128xf32>
    tpu.vector_store %arg7[%c0_71, %c0_72], %263 {strides = array<i32>} : memref<8x128xf32, #tpu.memory_space<vmem>>, vector<8x128xf32>,
    return
  }
  func.func @transform_0(%arg0: i32, %arg1: i32) -> (i32, i32, i32) {
    %c0_i32 = arith.constant 0 : i32
    %c0_i32_0 = arith.constant 0 : i32
    return %arg1, %arg0, %c0_i32 : i32, i32, i32
  }
  func.func @transform_1(%arg0: i32, %arg1: i32) -> (i32, i32) {
    %c0_i32 = arith.constant 0 : i32
    %c0_i32_0 = arith.constant 0 : i32
    %c0_i32_1 = arith.constant 0 : i32
    return %c0_i32, %c0_i32_0 : i32, i32
  }
  func.func @transform_2(%arg0: i32, %arg1: i32) -> (i32, i32) {
    %c0_i32 = arith.constant 0 : i32
    %c0_i32_0 = arith.constant 0 : i32
    %c0_i32_1 = arith.constant 0 : i32
    return %c0_i32, %c0_i32_0 : i32, i32
  }
  func.func @transform_3(%arg0: i32, %arg1: i32) -> (i32, i32) {
    %c0_i32 = arith.constant 0 : i32
    %c0_i32_0 = arith.constant 0 : i32
    %c0_i32_1 = arith.constant 0 : i32
    return %c0_i32, %c0_i32_0 : i32, i32
  }
  func.func @transform_4(%arg0: i32, %arg1: i32) -> (i32, i32) {
    %c0_i32 = arith.constant 0 : i32
    %c0_i32_0 = arith.constant 0 : i32
    %c0_i32_1 = arith.constant 0 : i32
    return %c0_i32, %c0_i32_0 : i32, i32
  }
  func.func @transform_5(%arg0: i32, %arg1: i32) -> (i32, i32) {
    %c0_i32 = arith.constant 0 : i32
    %c0_i32_0 = arith.constant 0 : i32
    return %arg0, %c0_i32 : i32, i32
  }
}

</mosaic_0001>

<llo_original>
// kernel: tpu_custom_call.1
$region0: #{tpu_custom_call.1}
  #allocation0 [shape = 'u32[]', space=smem, size = 0x4, offset = 0x4, fixed_abs, tag = 'smem constant byte address 0x4 - core index']
  #allocation1 [shape = 'u32[144,128]{1,0:T(1,128)}', space=vmem, size = 0x12000, scoped, tag = 'internal scratch']
  #allocation2 [shape = 'f32[8,8,384]{2,1,0:T(8,128)}', space=vmem, size = 0x18000, scoped, tag = 'scratch operand']
  %s0 = inlined_call_operand.hbm [shape: bf16[8,8,128], index: 0, kind: input, shape index: {}]
  %s1 = inlined_call_operand.hbm [shape: bf16[128,384], index: 1, kind: input, shape index: {}]
  %s2 = inlined_call_operand.hbm [shape: bf16[128,384], index: 2, kind: input, shape index: {}]
  %s3 = inlined_call_operand.vmem [shape: f32[1,384], index: 3, kind: input, shape index: {}]
  %s4 = inlined_call_operand.vmem [shape: f32[1,128], index: 4, kind: input, shape index: {}]
  %s5 = inlined_call_operand.hbm [shape: f32[8,128], index: 5, kind: output, shape index: {}]
  %s6 = sld [smem:[#allocation0]]
  $region46: #{tpu_custom_call.1} parent=0
    _
  %s8 = ssub.s32 1, %s6
  %s9 = scalar_select 0, %s8, %s6
  $region1: #{tpu_custom_call.1} parent=0
    #allocation3 [shape = 'u8[16384]{0}', space=vmem, size = 0x4000, scoped, tag = 'input window, operand 0, single buffered']
    #allocation4 [shape = 's32[1]{0}', space=sflag, size = 0x4, scoped, tag = 'scoped memory for tpu_custom_call.1']
    #allocation5 [shape = 's32[1]{0}', space=sflag, size = 0x4, scoped, tag = 'scoped memory for tpu_custom_call.1']
    #allocation6 [shape = 'u8[98304]{0}', space=vmem, size = 0x18000, scoped, tag = 'input window, operand 1, single buffered']
    #allocation7 [shape = 's32[1]{0}', space=sflag, size = 0x4, scoped, tag = 'scoped memory for tpu_custom_call.1']
    #allocation8 [shape = 'u8[98304]{0}', space=vmem, size = 0x18000, scoped, tag = 'input window, operand 2, single buffered']
    #allocation9 [shape = 'u8[4096]{0}', space=vmem, size = 0x1000, scoped, tag = 'output window, operand 0, single buffered']
    %10 = vsyncpa [#allocation4], 0
    %11 = vsyncpa [#allocation7], 0
    %12 = vsyncpa [#allocation5], 0
    // Predicated region
    $region2: #{tpu_custom_call.1} parent=1 // pred_check
      _
    $region3: #{tpu_custom_call.1} parent=1 // pred_check_branch
      %14 = sbr.rel (0) target = $region5
    $region4: #{tpu_custom_call.1} parent=1 // pred_region
      %s16 = ssub.s32 512, 512
      %17 = vsyncadd [#allocation4], %s16
      %s18 = sshll.u32 [#allocation3], 4
      %s19 = int_to_ptr.vmem [resolvable:$true] %s18
      %24 = dma.hbm_to_vmem [thread:$0]  %s0, 512, %s19, [#allocation4], 64, 64, 4
    $region5: #{tpu_custom_call.1} parent=1 // pred_fallthru
      _
    // Predicated region
    $region6: #{tpu_custom_call.1} parent=1 // pred_check
      _
    $region7: #{tpu_custom_call.1} parent=1 // pred_check_branch
      %26 = sbr.rel (0) target = $region9
    $region8: #{tpu_custom_call.1} parent=1 // pred_region
      %s28 = ssub.s32 3072, 3072
      %29 = vsyncadd [#allocation7], %s28
      %s30 = sshll.u32 [#allocation6], 4
      %s31 = int_to_ptr.vmem [resolvable:$true] %s30
      %36 = dma.hbm_to_vmem [thread:$0]  %s1, 3072, %s31, [#allocation7], 192, 192, 12
    $region9: #{tpu_custom_call.1} parent=1 // pred_fallthru
      _
    // Predicated region
    $region10: #{tpu_custom_call.1} parent=1 // pred_check
      _
    $region11: #{tpu_custom_call.1} parent=1 // pred_check_branch
      %38 = sbr.rel (0) target = $region13
    $region12: #{tpu_custom_call.1} parent=1 // pred_region
      %s40 = ssub.s32 3072, 3072
      %41 = vsyncadd [#allocation7], %s40
      %s42 = sshll.u32 [#allocation8], 4
      %s43 = int_to_ptr.vmem [resolvable:$true] %s42
      %48 = dma.hbm_to_vmem [thread:$0]  %s2, 3072, %s43, [#allocation7], 192, 192, 12
    $region13: #{tpu_custom_call.1} parent=1 // pred_fallthru
      _
    // Predicated region
    $region14: #{tpu_custom_call.1} parent=1 // pred_check
      _
    $region15: #{tpu_custom_call.1} parent=1 // pred_check_branch
      %50 = sbr.rel (0) target = $region17
    $region16: #{tpu_custom_call.1} parent=1 // pred_region
      _
    $region17: #{tpu_custom_call.1} parent=1 // pred_fallthru
      _
    // Predicated region
    $region18: #{tpu_custom_call.1} parent=1 // pred_check
      _
    $region19: #{tpu_custom_call.1} parent=1 // pred_check_branch
      %52 = sbr.rel (0) target = $region21
    $region20: #{tpu_custom_call.1} parent=1 // pred_region
      _
    $region21: #{tpu_custom_call.1} parent=1 // pred_fallthru
      _
    // Predicated region
    $region22: #{tpu_custom_call.1} parent=1 // pred_check
      _
    $region23: #{tpu_custom_call.1} parent=1 // pred_check_branch
      %54 = sbr.rel (0) target = $region25
    $region24: #{tpu_custom_call.1} parent=1 // pred_region
      %55 = dma.done [#allocation4], 512
    $region25: #{tpu_custom_call.1} parent=1 // pred_fallthru
      _
    // Predicated region
    $region26: #{tpu_custom_call.1} parent=1 // pred_check
      _
    $region27: #{tpu_custom_call.1} parent=1 // pred_check_branch
      %57 = sbr.rel (0) target = $region29
    $region28: #{tpu_custom_call.1} parent=1 // pred_region
      %58 = dma.done [#allocation7], 3072
    $region29: #{tpu_custom_call.1} parent=1 // pred_fallthru
      _
    // Predicated region
    $region30: #{tpu_custom_call.1} parent=1 // pred_check
      _
    $region31: #{tpu_custom_call.1} parent=1 // pred_check_branch
      %60 = sbr.rel (0) target = $region33
    $region32: #{tpu_custom_call.1} parent=1 // pred_region
      %61 = dma.done [#allocation7], 3072
    $region33: #{tpu_custom_call.1} parent=1 // pred_fallthru
      _
    %p63 = scmp.eq.s32.totalorder 0, 0
    // Predicated region
    $region34: #{tpu_custom_call.1} parent=1 // pred_check
      %p64 = pneg %p63
    $region35: #{tpu_custom_call.1} parent=1 // pred_check_branch
      %66 = sbr.rel (%p64) target = $region37
    $region36: #{tpu_custom_call.1} parent=1 // pred_region
      %67 = vst [vmem:[#allocation9] sm:$0xff] 0.0
    $region37: #{tpu_custom_call.1} parent=1 // pred_fallthru
      _
    %v68 = vld [vmem:[#allocation3] sm:$0xf]
    %v69 = vld [vmem:[#allocation3 + $0x4] sm:$0xf]
    %v70 = vld [vmem:[#allocation3 + $0x8] sm:$0xf]
    %v71 = vld [vmem:[#allocation3 + $0xc] sm:$0xf]
    %v72 = vld [vmem:[#allocation3 + $0x10] sm:$0xf]
    %v73 = vld [vmem:[#allocation3 + $0x14] sm:$0xf]
    %v74 = vld [vmem:[#allocation3 + $0x18] sm:$0xf]
    %v75 = vld [vmem:[#allocation3 + $0x1c] sm:$0xf]
    %v76 = vld [vmem:[#allocation6] sm:$0xff]
    %v77 = vld [vmem:[#allocation6 + $0x8] sm:$0xf]
    %v78 = vld [vmem:[#allocation6 + $0xc] sm:$0xff]
    %v79 = vld [vmem:[#allocation6 + $0x14] sm:$0xf]
    %v80 = vld [vmem:[#allocation6 + $0x18] sm:$0xff]
    %v81 = vld [vmem:[#allocation6 + $0x20] sm:$0xf]
    %v82 = vld [vmem:[#allocation6 + $0x24] sm:$0xff]
    %v83 = vld [vmem:[#allocation6 + $0x2c] sm:$0xf]
    %v84 = vld [vmem:[#allocation6 + $0x30] sm:$0xff]
    %v85 = vld [vmem:[#allocation6 + $0x38] sm:$0xf]
    %v86 = vld [vmem:[#allocation6 + $0x3c] sm:$0xff]
    %v87 = vld [vmem:[#allocation6 + $0x44] sm:$0xf]
    %v88 = vld [vmem:[#allocation6 + $0x48] sm:$0xff]
    %v89 = vld [vmem:[#allocation6 + $0x50] sm:$0xf]
    %v90 = vld [vmem:[#allocation6 + $0x54] sm:$0xff]
    %v91 = vld [vmem:[#allocation6 + $0x5c] sm:$0xf]
    %v92 = vld [vmem:[#allocation6 + $0x60] sm:$0xff]
    %v93 = vld [vmem:[#allocation6 + $0x68] sm:$0xf]
    %v94 = vld [vmem:[#allocation6 + $0x6c] sm:$0xff]
    %v95 = vld [vmem:[#allocation6 + $0x74] sm:$0xf]
    %v96 = vld [vmem:[#allocation6 + $0x78] sm:$0xff]
    %v97 = vld [vmem:[#allocation6 + $0x80] sm:$0xf]
    %v98 = vld [vmem:[#allocation6 + $0x84] sm:$0xff]
    %v99 = vld [vmem:[#allocation6 + $0x8c] sm:$0xf]
    %v100 = vld [vmem:[#allocation6 + $0x90] sm:$0xff]
    %v101 = vld [vmem:[#allocation6 + $0x98] sm:$0xf]
    %v102 = vld [vmem:[#allocation6 + $0x9c] sm:$0xff]
    %v103 = vld [vmem:[#allocation6 + $0xa4] sm:$0xf]
    %v104 = vld [vmem:[#allocation6 + $0xa8] sm:$0xff]
    %v105 = vld [vmem:[#allocation6 + $0xb0] sm:$0xf]
    %v106 = vld [vmem:[#allocation6 + $0xb4] sm:$0xff]
    %v107 = vld [vmem:[#allocation6 + $0xbc] sm:$0xf]
    %v108 = vld [vmem:[%s3] sm:$0x7]
    %v110 = vlaneseq
    %v111 = vshrl.u32 %v110, 7
    %v112 = vsub.s32 0, %v111
    %v113 = vrot.slane %v108, %v112
    %v114 = vlaneseq
    %v115 = vshrl.u32 %v114, 7
    %v116 = vsub.s32 1, %v115
    %v117 = vrot.slane %v108, %v116
    %v118 = vlaneseq
    %v119 = vshrl.u32 %v118, 7
    %v120 = vsub.s32 2, %v119
    %v121 = vrot.slane %v108, %v120
    %v133 = vunpack.c.l.b16 %v68
    %v134 = vunpack.c.l.b16 %v69
    %v135 = vunpack.c.l.b16 %v70
    %v136 = vunpack.c.l.b16 %v71
    %v137 = vunpack.c.l.b16 %v72
    %v138 = vunpack.c.l.b16 %v73
    %v139 = vunpack.c.l.b16 %v74
    %v140 = vunpack.c.l.b16 %v75
    %v141 = vpack.c.b16 %v134, %v133
    %v142 = vpack.c.b16 %v136, %v135
    %v143 = vpack.c.b16 %v138, %v137
    %v144 = vpack.c.b16 %v140, %v139
    %v181 = vunpack.c.l.b16 %v76
    %v182 = vunpack.c.h.b16 %v76
    %v183 = vunpack.c.l.b16 %v77
    %v184 = vunpack.c.l.b16 %v78
    %v185 = vunpack.c.h.b16 %v78
    %v186 = vunpack.c.l.b16 %v79
    %v187 = vunpack.c.l.b16 %v80
    %v188 = vunpack.c.h.b16 %v80
    %v189 = vunpack.c.l.b16 %v81
    %v190 = vunpack.c.l.b16 %v82
    %v191 = vunpack.c.h.b16 %v82
    %v192 = vunpack.c.l.b16 %v83
    %v193 = vunpack.c.l.b16 %v84
    %v194 = vunpack.c.h.b16 %v84
    %v195 = vunpack.c.l.b16 %v85
    %v196 = vunpack.c.l.b16 %v86
    %v197 = vunpack.c.h.b16 %v86
    %v198 = vunpack.c.l.b16 %v87
    %v199 = vunpack.c.l.b16 %v88
    %v200 = vunpack.c.h.b16 %v88
    %v201 = vunpack.c.l.b16 %v89
    %v202 = vunpack.c.l.b16 %v90
    %v203 = vunpack.c.h.b16 %v90
    %v204 = vunpack.c.l.b16 %v91
    %v205 = vunpack.c.l.b16 %v92
    %v206 = vunpack.c.h.b16 %v92
    %v207 = vunpack.c.l.b16 %v93
    %v208 = vunpack.c.l.b16 %v94
    %v209 = vunpack.c.h.b16 %v94
    %v210 = vunpack.c.l.b16 %v95
    %v211 = vunpack.c.l.b16 %v96
    %v212 = vunpack.c.h.b16 %v96
    %v213 = vunpack.c.l.b16 %v97
    %v214 = vunpack.c.l.b16 %v98
    %v215 = vunpack.c.h.b16 %v98
    %v216 = vunpack.c.l.b16 %v99
    %v217 = vunpack.c.l.b16 %v100
    %v218 = vunpack.c.h.b16 %v100
    %v219 = vunpack.c.l.b16 %v101
    %v220 = vunpack.c.l.b16 %v102
    %v221 = vunpack.c.h.b16 %v102
    %v222 = vunpack.c.l.b16 %v103
    %v223 = vunpack.c.l.b16 %v104
    %v224 = vunpack.c.h.b16 %v104
    %v225 = vunpack.c.l.b16 %v105
    %v226 = vunpack.c.l.b16 %v106
    %v227 = vunpack.c.h.b16 %v106
    %v228 = vunpack.c.l.b16 %v107
    %v229 = vpack.c.b16 %v184, %v181
    %v230 = vpack.c.b16 %v185, %v182
    %v231 = vpack.c.b16 %v186, %v183
    %v232 = vpack.c.b16 %v190, %v187
    %v233 = vpack.c.b16 %v191, %v188
    %v234 = vpack.c.b16 %v192, %v189
    %v235 = vpack.c.b16 %v196, %v193
    %v236 = vpack.c.b16 %v197, %v194
    %v237 = vpack.c.b16 %v198, %v195
    %v238 = vpack.c.b16 %v202, %v199
    %v239 = vpack.c.b16 %v203, %v200
    %v240 = vpack.c.b16 %v204, %v201
    %v241 = vpack.c.b16 %v208, %v205
    %v242 = vpack.c.b16 %v209, %v206
    %v243 = vpack.c.b16 %v210, %v207
    %v244 = vpack.c.b16 %v214, %v211
    %v245 = vpack.c.b16 %v215, %v212
    %v246 = vpack.c.b16 %v216, %v213
    %v247 = vpack.c.b16 %v220, %v217
    %v248 = vpack.c.b16 %v221, %v218
    %v249 = vpack.c.b16 %v222, %v219
    %v250 = vpack.c.b16 %v226, %v223
    %v251 = vpack.c.b16 %v227, %v224
    %v252 = vpack.c.b16 %v228, %v225
    %277 = vmatprep.subr.bf16.mxu0 %v251
    %278 = vmatpush1.bf16.msra.mxu0 %v250
    %279 = vmatprep.subr.bf16.mxu0 %v248
    %280 = vmatpush1.bf16.msra.mxu0 %v247
    %281 = vmatprep.subr.bf16.mxu0 %v245
    %282 = vmatpush1.bf16.msra.mxu0 %v244
    %283 = vmatprep.subr.bf16.mxu0 %v242
    %284 = vmatpush1.bf16.msra.mxu0 %v241
    %285 = vmatprep.subr.bf16.mxu0 %v239
    %286 = vmatpush1.bf16.msra.mxu0 %v238
    %287 = vmatprep.subr.bf16.mxu0 %v236
    %288 = vmatpush1.bf16.msra.mxu0 %v235
    %289 = vmatprep.subr.bf16.mxu0 %v233
    %290 = vmatpush1.bf16.msra.mxu0 %v232
    %291 = vmatprep.subr.bf16.mxu0 %v230
    %292 = vmatpush1.bf16.msra.mxu0 %v229
    %293 = vmatprep.subr.bf16.mxu0 0
    %294 = vmatpush2.bf16.msra.mxu0 0
    %295 = vmatprep.subr.bf16.mxu0 0
    %296 = vmatpush2.bf16.msra.mxu0 0
    %297 = vmatprep.subr.bf16.mxu0 0
    %298 = vmatpush2.bf16.msra.mxu0 0
    %299 = vmatprep.subr.bf16.mxu0 0
    %300 = vmatpush2.bf16.msra.mxu0 0
    %301 = vmatprep.subr.bf16.mxu0 0
    %302 = vmatpush2.bf16.msra.mxu0 0
    %303 = vmatprep.subr.bf16.mxu0 0
    %304 = vmatpush2.bf16.msra.mxu0 0
    %305 = vmatprep.subr.bf16.mxu0 0
    %306 = vmatpush2.bf16.msra.mxu0 0
    %307 = vmatprep.subr.bf16.mxu0 0
    %308 = vmatpush2.bf16.msra.mxu0 0
    %309 = vmatprep.mubr.bf16.mxu0 0
    %310 = vmatmul.mubr.bf16.gmra.mxu0 %v141
    %v311 = vpop.f32.mrf.mxu0
    %v312 = vadd.f32 %v113, %v311
    %v313 = vpop.f32.mrf.mxu0
    %v314 = vadd.f32 %v117, %v313
    %v315 = vpop.f32.mrf.mxu0
    %v316 = vadd.f32 %v113, %v315
    %v317 = vpop.f32.mrf.mxu0
    %v318 = vadd.f32 %v117, %v317
    %319 = vmatprep.mubr.bf16.mxu0 0
    %320 = vmatmul.mubr.bf16.gmra.mxu0 %v142
    %v321 = vpop.f32.mrf.mxu0
    %v322 = vadd.f32 %v113, %v321
    %v323 = vpop.f32.mrf.mxu0
    %v324 = vadd.f32 %v117, %v323
    %v325 = vpop.f32.mrf.mxu0
    %v326 = vadd.f32 %v113, %v325
    %v327 = vpop.f32.mrf.mxu0
    %v328 = vadd.f32 %v117, %v327
    %329 = vmatprep.mubr.bf16.mxu0 0
    %330 = vmatmul.mubr.bf16.gmra.mxu0 %v143
    %v331 = vpop.f32.mrf.mxu0
    %v332 = vadd.f32 %v113, %v331
    %v333 = vpop.f32.mrf.mxu0
    %v334 = vadd.f32 %v117, %v333
    %v335 = vpop.f32.mrf.mxu0
    %v336 = vadd.f32 %v113, %v335
    %v337 = vpop.f32.mrf.mxu0
    %v338 = vadd.f32 %v117, %v337
    %339 = vmatprep.mubr.bf16.mxu0 0
    %340 = vmatmul.mubr.bf16.gmra.mxu0 %v144
    %v341 = vpop.f32.mrf.mxu0
    %v342 = vadd.f32 %v113, %v341
    %v343 = vpop.f32.mrf.mxu0
    %v344 = vadd.f32 %v117, %v343
    %v345 = vpop.f32.mrf.mxu0
    %v346 = vadd.f32 %v113, %v345
    %v347 = vpop.f32.mrf.mxu0
    %v348 = vadd.f32 %v117, %v347
    %349 = vdwg.mxu0
    %350 = vmatprep.subr.bf16.mxu0 0
    %351 = vmatpush1.bf16.msra.mxu0 %v252
    %352 = vmatprep.subr.bf16.mxu0 0
    %353 = vmatpush1.bf16.msra.mxu0 %v249
    %354 = vmatprep.subr.bf16.mxu0 0
    %355 = vmatpush1.bf16.msra.mxu0 %v246
    %356 = vmatprep.subr.bf16.mxu0 0
    %357 = vmatpush1.bf16.msra.mxu0 %v243
    %358 = vmatprep.subr.bf16.mxu0 0
    %359 = vmatpush1.bf16.msra.mxu0 %v240
    %360 = vmatprep.subr.bf16.mxu0 0
    %361 = vmatpush1.bf16.msra.mxu0 %v237
    %362 = vmatprep.subr.bf16.mxu0 0
    %363 = vmatpush1.bf16.msra.mxu0 %v234
    %364 = vmatprep.subr.bf16.mxu0 0
    %365 = vmatpush1.bf16.msra.mxu0 %v231
    %366 = vmatprep.subr.bf16.mxu0 0
    %367 = vmatpush2.bf16.msra.mxu0 0
    %368 = vmatprep.subr.bf16.mxu0 0
    %369 = vmatpush2.bf16.msra.mxu0 0
    %370 = vmatprep.subr.bf16.mxu0 0
    %371 = vmatpush2.bf16.msra.mxu0 0
    %372 = vmatprep.subr.bf16.mxu0 0
    %373 = vmatpush2.bf16.msra.mxu0 0
    %374 = vmatprep.subr.bf16.mxu0 0
    %375 = vmatpush2.bf16.msra.mxu0 0
    %376 = vmatprep.subr.bf16.mxu0 0
    %377 = vmatpush2.bf16.msra.mxu0 0
    %378 = vmatprep.subr.bf16.mxu0 0
    %379 = vmatpush2.bf16.msra.mxu0 0
    %380 = vmatprep.subr.bf16.mxu0 0
    %381 = vmatpush2.bf16.msra.mxu0 0
    %382 = vmatprep.mubr.bf16.mxu0 0
    %383 = vmatmul.mubr.bf16.gmra.mxu0 %v141
    %v384 = vpop.f32.mrf.mxu0
    %v385 = vadd.f32 %v121, %v384
    %v386 = vpop.f32.mrf.mxu0
    %v387 = vpop.f32.mrf.mxu0
    %v388 = vadd.f32 %v121, %v387
    %v389 = vpop.f32.mrf.mxu0
    %390 = vmatprep.mubr.bf16.mxu0 0
    %391 = vmatmul.mubr.bf16.gmra.mxu0 %v142
    %v392 = vpop.f32.mrf.mxu0
    %v393 = vadd.f32 %v121, %v392
    %v394 = vpop.f32.mrf.mxu0
    %v395 = vpop.f32.mrf.mxu0
    %v396 = vadd.f32 %v121, %v395
    %v397 = vpop.f32.mrf.mxu0
    %398 = vmatprep.mubr.bf16.mxu0 0
    %399 = vmatmul.mubr.bf16.gmra.mxu0 %v143
    %v400 = vpop.f32.mrf.mxu0
    %v401 = vadd.f32 %v121, %v400
    %v402 = vpop.f32.mrf.mxu0
    %v403 = vpop.f32.mrf.mxu0
    %v404 = vadd.f32 %v121, %v403
    %v405 = vpop.f32.mrf.mxu0
    %406 = vmatprep.mubr.bf16.mxu0 0
    %407 = vmatmul.mubr.bf16.gmra.mxu0 %v144
    %v408 = vpop.f32.mrf.mxu0
    %v409 = vadd.f32 %v121, %v408
    %v410 = vpop.f32.mrf.mxu0
    %v411 = vpop.f32.mrf.mxu0
    %v412 = vadd.f32 %v121, %v411
    %v413 = vpop.f32.mrf.mxu0
    %414 = vdwg.mxu0
    %415 = vst [vmem:[#allocation2] sm:$0xff] %v312
    %416 = vst [vmem:[#allocation2 + $0x8] sm:$0xff] %v314
    %417 = vst [vmem:[#allocation2 + $0x10] sm:$0xff] %v385
    %418 = vst [vmem:[#allocation2 + $0x18] sm:$0xff] %v316
    %419 = vst [vmem:[#allocation2 + $0x20] sm:$0xff] %v318
    %420 = vst [vmem:[#allocation2 + $0x28] sm:$0xff] %v388
    %421 = vst [vmem:[#allocation2 + $0x30] sm:$0xff] %v322
    %422 = vst [vmem:[#allocation2 + $0x38] sm:$0xff] %v324
    %423 = vst [vmem:[#allocation2 + $0x40] sm:$0xff] %v393
    %424 = vst [vmem:[#allocation2 + $0x48] sm:$0xff] %v326
    %425 = vst [vmem:[#allocation2 + $0x50] sm:$0xff] %v328
    %426 = vst [vmem:[#allocation2 + $0x58] sm:$0xff] %v396
    %427 = vst [vmem:[#allocation2 + $0x60] sm:$0xff] %v332
    %428 = vst [vmem:[#allocation2 + $0x68] sm:$0xff] %v334
    %429 = vst [vmem:[#allocation2 + $0x70] sm:$0xff] %v401
    %430 = vst [vmem:[#allocation2 + $0x78] sm:$0xff] %v336
    %431 = vst [vmem:[#allocation2 + $0x80] sm:$0xff] %v338
    %432 = vst [vmem:[#allocation2 + $0x88] sm:$0xff] %v404
    %433 = vst [vmem:[#allocation2 + $0x90] sm:$0xff] %v342
    %434 = vst [vmem:[#allocation2 + $0x98] sm:$0xff] %v344
    %435 = vst [vmem:[#allocation2 + $0xa0] sm:$0xff] %v409
    %436 = vst [vmem:[#allocation2 + $0xa8] sm:$0xff] %v346
    %437 = vst [vmem:[#allocation2 + $0xb0] sm:$0xff] %v348
    %438 = vst [vmem:[#allocation2 + $0xb8] sm:$0xff] %v412
    %v439 = vld [vmem:[%s4] sm:$0x1]
    %v441 = vlaneseq
    %v442 = vshrl.u32 %v441, 7
    %v443 = vsub.s32 0, %v442
    %v444 = vrot.slane %v439, %v443
    %v446 = vld [vmem:[#allocation9] sm:$0xff]
    %v447 = vld [vmem:[#allocation2] sm:$0xff]
    %v448 = vld [vmem:[#allocation2 + $0x8] sm:$0xff]
    %v449 = vld [vmem:[#allocation2 + $0x10] sm:$0xff]
    %v450 = vpack.c.bf16 %v446, %v446
    %v451 = vld [vmem:[#allocation8] sm:$0xff]
    %v452 = vld [vmem:[#allocation8 + $0x8] sm:$0xf]
    %v453 = vld [vmem:[#allocation8 + $0xc] sm:$0xff]
    %v454 = vld [vmem:[#allocation8 + $0x14] sm:$0xf]
    %v455 = vld [vmem:[#allocation8 + $0x18] sm:$0xff]
    %v456 = vld [vmem:[#allocation8 + $0x20] sm:$0xf]
    %v457 = vld [vmem:[#allocation8 + $0x24] sm:$0xff]
    %v458 = vld [vmem:[#allocation8 + $0x2c] sm:$0xf]
    %v459 = vld [vmem:[#allocation8 + $0x30] sm:$0xff]
    %v460 = vld [vmem:[#allocation8 + $0x38] sm:$0xf]
    %v461 = vld [vmem:[#allocation8 + $0x3c] sm:$0xff]
    %v462 = vld [vmem:[#allocation8 + $0x44] sm:$0xf]
    %v463 = vld [vmem:[#allocation8 + $0x48] sm:$0xff]
    %v464 = vld [vmem:[#allocation8 + $0x50] sm:$0xf]
    %v465 = vld [vmem:[#allocation8 + $0x54] sm:$0xff]
    %v466 = vld [vmem:[#allocation8 + $0x5c] sm:$0xf]
    %v467 = vld [vmem:[#allocation8 + $0x60] sm:$0xff]
    %v468 = vld [vmem:[#allocation8 + $0x68] sm:$0xf]
    %v469 = vld [vmem:[#allocation8 + $0x6c] sm:$0xff]
    %v470 = vld [vmem:[#allocation8 + $0x74] sm:$0xf]
    %v471 = vld [vmem:[#allocation8 + $0x78] sm:$0xff]
    %v472 = vld [vmem:[#allocation8 + $0x80] sm:$0xf]
    %v473 = vld [vmem:[#allocation8 + $0x84] sm:$0xff]
    %v474 = vld [vmem:[#allocation8 + $0x8c] sm:$0xf]
    %v475 = vld [vmem:[#allocation8 + $0x90] sm:$0xff]
    %v476 = vld [vmem:[#allocation8 + $0x98] sm:$0xf]
    %v477 = vld [vmem:[#allocation8 + $0x9c] sm:$0xff]
    %v478 = vld [vmem:[#allocation8 + $0xa4] sm:$0xf]
    %v479 = vld [vmem:[#allocation8 + $0xa8] sm:$0xff]
    %v480 = vld [vmem:[#allocation8 + $0xb0] sm:$0xf]
    %v481 = vld [vmem:[#allocation8 + $0xb4] sm:$0xff]
    %v482 = vld [vmem:[#allocation8 + $0xbc] sm:$0xf]
    %v515 = vunpack.c.l.b16 %v451
    %v516 = vunpack.c.h.b16 %v451
    %v517 = vunpack.c.l.b16 %v452
    %v518 = vunpack.c.l.b16 %v453
    %v519 = vunpack.c.h.b16 %v453
    %v520 = vunpack.c.l.b16 %v454
    %v521 = vunpack.c.l.b16 %v455
    %v522 = vunpack.c.h.b16 %v455
    %v523 = vunpack.c.l.b16 %v456
    %v524 = vunpack.c.l.b16 %v457
    %v525 = vunpack.c.h.b16 %v457
    %v526 = vunpack.c.l.b16 %v458
    %v527 = vunpack.c.l.b16 %v459
    %v528 = vunpack.c.h.b16 %v459
    %v529 = vunpack.c.l.b16 %v460
    %v530 = vunpack.c.l.b16 %v461
    %v531 = vunpack.c.h.b16 %v461
    %v532 = vunpack.c.l.b16 %v462
    %v533 = vunpack.c.l.b16 %v463
    %v534 = vunpack.c.h.b16 %v463
    %v535 = vunpack.c.l.b16 %v464
    %v536 = vunpack.c.l.b16 %v465
    %v537 = vunpack.c.h.b16 %v465
    %v538 = vunpack.c.l.b16 %v466
    %v539 = vunpack.c.l.b16 %v467
    %v540 = vunpack.c.h.b16 %v467
    %v541 = vunpack.c.l.b16 %v468
    %v542 = vunpack.c.l.b16 %v469
    %v543 = vunpack.c.h.b16 %v469
    %v544 = vunpack.c.l.b16 %v470
    %v545 = vunpack.c.l.b16 %v471
    %v546 = vunpack.c.h.b16 %v471
    %v547 = vunpack.c.l.b16 %v472
    %v548 = vunpack.c.l.b16 %v473
    %v549 = vunpack.c.h.b16 %v473
    %v550 = vunpack.c.l.b16 %v474
    %v551 = vunpack.c.l.b16 %v475
    %v552 = vunpack.c.h.b16 %v475
    %v553 = vunpack.c.l.b16 %v476
    %v554 = vunpack.c.l.b16 %v477
    %v555 = vunpack.c.h.b16 %v477
    %v556 = vunpack.c.l.b16 %v478
    %v557 = vunpack.c.l.b16 %v479
    %v558 = vunpack.c.h.b16 %v479
    %v559 = vunpack.c.l.b16 %v480
    %v560 = vunpack.c.l.b16 %v481
    %v561 = vunpack.c.h.b16 %v481
    %v562 = vunpack.c.l.b16 %v482
    %v563 = vpack.c.b16 %v518, %v515
    %v564 = vpack.c.b16 %v519, %v516
    %v565 = vpack.c.b16 %v520, %v517
    %v566 = vpack.c.b16 %v524, %v521
    %v567 = vpack.c.b16 %v525, %v522
    %v568 = vpack.c.b16 %v526, %v523
    %v569 = vpack.c.b16 %v530, %v527
    %v570 = vpack.c.b16 %v531, %v528
    %v571 = vpack.c.b16 %v532, %v529
    %v572 = vpack.c.b16 %v536, %v533
    %v573 = vpack.c.b16 %v537, %v534
    %v574 = vpack.c.b16 %v538, %v535
    %v575 = vpack.c.b16 %v542, %v539
    %v576 = vpack.c.b16 %v543, %v540
    %v577 = vpack.c.b16 %v544, %v541
    %v578 = vpack.c.b16 %v548, %v545
    %v579 = vpack.c.b16 %v549, %v546
    %v580 = vpack.c.b16 %v550, %v547
    %v581 = vpack.c.b16 %v554, %v551
    %v582 = vpack.c.b16 %v555, %v552
    %v583 = vpack.c.b16 %v556, %v553
    %v584 = vpack.c.b16 %v560, %v557
    %v585 = vpack.c.b16 %v561, %v558
    %v586 = vpack.c.b16 %v562, %v559
    %611 = vmatprep.subr.bf16.mxu0 %v585
    %612 = vmatpush1.bf16.msra.mxu0 %v584
    %613 = vmatprep.subr.bf16.mxu0 %v582
    %614 = vmatpush1.bf16.msra.mxu0 %v581
    %615 = vmatprep.subr.bf16.mxu0 %v579
    %616 = vmatpush1.bf16.msra.mxu0 %v578
    %617 = vmatprep.subr.bf16.mxu0 %v576
    %618 = vmatpush1.bf16.msra.mxu0 %v575
    %619 = vmatprep.subr.bf16.mxu0 %v573
    %620 = vmatpush1.bf16.msra.mxu0 %v572
    %621 = vmatprep.subr.bf16.mxu0 %v570
    %622 = vmatpush1.bf16.msra.mxu0 %v569
    %623 = vmatprep.subr.bf16.mxu0 %v567
    %624 = vmatpush1.bf16.msra.mxu0 %v566
    %625 = vmatprep.subr.bf16.mxu0 %v564
    %626 = vmatpush1.bf16.msra.mxu0 %v563
    %627 = vmatprep.subr.bf16.mxu0 0
    %628 = vmatpush2.bf16.msra.mxu0 0
    %629 = vmatprep.subr.bf16.mxu0 0
    %630 = vmatpush2.bf16.msra.mxu0 0
    %631 = vmatprep.subr.bf16.mxu0 0
    %632 = vmatpush2.bf16.msra.mxu0 0
    %633 = vmatprep.subr.bf16.mxu0 0
    %634 = vmatpush2.bf16.msra.mxu0 0
    %635 = vmatprep.subr.bf16.mxu0 0
    %636 = vmatpush2.bf16.msra.mxu0 0
    %637 = vmatprep.subr.bf16.mxu0 0
    %638 = vmatpush2.bf16.msra.mxu0 0
    %639 = vmatprep.subr.bf16.mxu0 0
    %640 = vmatpush2.bf16.msra.mxu0 0
    %641 = vmatprep.subr.bf16.mxu0 0
    %642 = vmatpush2.bf16.msra.mxu0 0
    %643 = vmatprep.mubr.bf16.mxu0 0
    %644 = vmatmul.mubr.bf16.gmra.mxu0 %v450
    %v645 = vpop.f32.mrf.mxu0
    %v646 = vadd.f32 0.0, %v645
    %v647 = vpop.f32.mrf.mxu0
    %v648 = vadd.f32 0.0, %v647
    %v649 = vpop.f32.mrf.mxu0
    %v650 = vpop.f32.mrf.mxu0
    %651 = vdwg.mxu0
    %652 = vmatprep.subr.bf16.mxu0 0
    %653 = vmatpush1.bf16.msra.mxu0 %v586
    %654 = vmatprep.subr.bf16.mxu0 0
    %655 = vmatpush1.bf16.msra.mxu0 %v583
    %656 = vmatprep.subr.bf16.mxu0 0
    %657 = vmatpush1.bf16.msra.mxu0 %v580
    %658 = vmatprep.subr.bf16.mxu0 0
    %659 = vmatpush1.bf16.msra.mxu0 %v577
    %660 = vmatprep.subr.bf16.mxu0 0
    %661 = vmatpush1.bf16.msra.mxu0 %v574
    %662 = vmatprep.subr.bf16.mxu0 0
    %663 = vmatpush1.bf16.msra.mxu0 %v571
    %664 = vmatprep.subr.bf16.mxu0 0
    %665 = vmatpush1.bf16.msra.mxu0 %v568
    %666 = vmatprep.subr.bf16.mxu0 0
    %667 = vmatpush1.bf16.msra.mxu0 %v565
    %668 = vmatprep.subr.bf16.mxu0 0
    %669 = vmatpush2.bf16.msra.mxu0 0
    %670 = vmatprep.subr.bf16.mxu0 0
    %671 = vmatpush2.bf16.msra.mxu0 0
    %672 = vmatprep.subr.bf16.mxu0 0
    %673 = vmatpush2.bf16.msra.mxu0 0
    %674 = vmatprep.subr.bf16.mxu0 0
    %675 = vmatpush2.bf16.msra.mxu0 0
    %676 = vmatprep.subr.bf16.mxu0 0
    %677 = vmatpush2.bf16.msra.mxu0 0
    %678 = vmatprep.subr.bf16.mxu0 0
    %679 = vmatpush2.bf16.msra.mxu0 0
    %680 = vmatprep.subr.bf16.mxu0 0
    %681 = vmatpush2.bf16.msra.mxu0 0
    %682 = vmatprep.subr.bf16.mxu0 0
    %683 = vmatpush2.bf16.msra.mxu0 0
    %684 = vmatprep.mubr.bf16.mxu0 0
    %685 = vmatmul.mubr.bf16.gmra.mxu0 %v450
    %v686 = vpop.f32.mrf.mxu0
    %v687 = vadd.f32 0.0, %v686
    %v688 = vpop.f32.mrf.mxu0
    %v689 = vpop.f32.mrf.mxu0
    %v690 = vpop.f32.mrf.mxu0
    %691 = vdwg.mxu0
    %v692 = vadd.f32 %v447, %v646
    %v693 = vxor.u32 %v692, 2147483648
    %v694 = vmul.f32 %v693, 1.442695
    %v695 = vpow.pop %v694
    %v696 = vadd.f32 %v695, 1.0
    %v697 = vrcp.pop %v696
    %v698 = vmul.f32 1.0, %v697
    %v699 = vadd.f32 %v448, %v648
    %v700 = vxor.u32 %v699, 2147483648
    %v701 = vmul.f32 %v700, 1.442695
    %v702 = vpow.pop %v701
    %v703 = vadd.f32 %v702, 1.0
    %v704 = vrcp.pop %v703
    %v705 = vmul.f32 1.0, %v704
    %v706 = vadd.f32 %v687, %v444
    %v707 = vmul.f32 %v698, %v706
    %v708 = vadd.f32 %v449, %v707
    %v709 = vtanh.pop %v708
    %v710 = vsub.f32 %v446, %v709
    %v711 = vmul.f32 %v705, %v710
    %v712 = vadd.f32 %v709, %v711
    %s713 = scalar_lea.vmem [#allocation2], 24
    %v714 = vld [vmem:[%s713] sm:$0xff]
    %v715 = vld [vmem:[%s713 + $0x8] sm:$0xff]
    %v716 = vld [vmem:[%s713 + $0x10] sm:$0xff]
    %v717 = vpack.c.bf16 %v712, %v712
    %718 = vmatprep.subr.bf16.mxu0 %v585
    %719 = vmatpush1.bf16.msra.mxu0 %v584
    %720 = vmatprep.subr.bf16.mxu0 %v582
    %721 = vmatpush1.bf16.msra.mxu0 %v581
    %722 = vmatprep.subr.bf16.mxu0 %v579
    %723 = vmatpush1.bf16.msra.mxu0 %v578
    %724 = vmatprep.subr.bf16.mxu0 %v576
    %725 = vmatpush1.bf16.msra.mxu0 %v575
    %726 = vmatprep.subr.bf16.mxu0 %v573
    %727 = vmatpush1.bf16.msra.mxu0 %v572
    %728 = vmatprep.subr.bf16.mxu0 %v570
    %729 = vmatpush1.bf16.msra.mxu0 %v569
    %730 = vmatprep.subr.bf16.mxu0 %v567
    %731 = vmatpush1.bf16.msra.mxu0 %v566
    %732 = vmatprep.subr.bf16.mxu0 %v564
    %733 = vmatpush1.bf16.msra.mxu0 %v563
    %734 = vmatprep.subr.bf16.mxu0 0
    %735 = vmatpush2.bf16.msra.mxu0 0
    %736 = vmatprep.subr.bf16.mxu0 0
    %737 = vmatpush2.bf16.msra.mxu0 0
    %738 = vmatprep.subr.bf16.mxu0 0
    %739 = vmatpush2.bf16.msra.mxu0 0
    %740 = vmatprep.subr.bf16.mxu0 0
    %741 = vmatpush2.bf16.msra.mxu0 0
    %742 = vmatprep.subr.bf16.mxu0 0
    %743 = vmatpush2.bf16.msra.mxu0 0
    %744 = vmatprep.subr.bf16.mxu0 0
    %745 = vmatpush2.bf16.msra.mxu0 0
    %746 = vmatprep.subr.bf16.mxu0 0
    %747 = vmatpush2.bf16.msra.mxu0 0
    %748 = vmatprep.subr.bf16.mxu0 0
    %749 = vmatpush2.bf16.msra.mxu0 0
    %750 = vmatprep.mubr.bf16.mxu0 0
    %751 = vmatmul.mubr.bf16.gmra.mxu0 %v717
    %v752 = vpop.f32.mrf.mxu0
    %v753 = vadd.f32 0.0, %v752
    %v754 = vpop.f32.mrf.mxu0
    %v755 = vadd.f32 0.0, %v754
    %v756 = vpop.f32.mrf.mxu0
    %v757 = vpop.f32.mrf.mxu0
    %758 = vdwg.mxu0
    %759 = vmatprep.subr.bf16.mxu0 0
    %760 = vmatpush1.bf16.msra.mxu0 %v586
    %761 = vmatprep.subr.bf16.mxu0 0
    %762 = vmatpush1.bf16.msra.mxu0 %v583
    %763 = vmatprep.subr.bf16.mxu0 0
    %764 = vmatpush1.bf16.msra.mxu0 %v580
    %765 = vmatprep.subr.bf16.mxu0 0
    %766 = vmatpush1.bf16.msra.mxu0 %v577
    %767 = vmatprep.subr.bf16.mxu0 0
    %768 = vmatpush1.bf16.msra.mxu0 %v574
    %769 = vmatprep.subr.bf16.mxu0 0
    %770 = vmatpush1.bf16.msra.mxu0 %v571
    %771 = vmatprep.subr.bf16.mxu0 0
    %772 = vmatpush1.bf16.msra.mxu0 %v568
    %773 = vmatprep.subr.bf16.mxu0 0
    %774 = vmatpush1.bf16.msra.mxu0 %v565
    %775 = vmatprep.subr.bf16.mxu0 0
    %776 = vmatpush2.bf16.msra.mxu0 0
    %777 = vmatprep.subr.bf16.mxu0 0
    %778 = vmatpush2.bf16.msra.mxu0 0
    %779 = vmatprep.subr.bf16.mxu0 0
    %780 = vmatpush2.bf16.msra.mxu0 0
    %781 = vmatprep.subr.bf16.mxu0 0
    %782 = vmatpush2.bf16.msra.mxu0 0
    %783 = vmatprep.subr.bf16.mxu0 0
    %784 = vmatpush2.bf16.msra.mxu0 0
    %785 = vmatprep.subr.bf16.mxu0 0
    %786 = vmatpush2.bf16.msra.mxu0 0
    %787 = vmatprep.subr.bf16.mxu0 0
    %788 = vmatpush2.bf16.msra.mxu0 0
    %789 = vmatprep.subr.bf16.mxu0 0
    %790 = vmatpush2.bf16.msra.mxu0 0
    %791 = vmatprep.mubr.bf16.mxu0 0
    %792 = vmatmul.mubr.bf16.gmra.mxu0 %v717
    %v793 = vpop.f32.mrf.mxu0
    %v794 = vadd.f32 0.0, %v793
    %v795 = vpop.f32.mrf.mxu0
    %v796 = vpop.f32.mrf.mxu0
    %v797 = vpop.f32.mrf.mxu0
    %798 = vdwg.mxu0
    %v799 = vadd.f32 %v714, %v753
    %v800 = vxor.u32 %v799, 2147483648
    %v801 = vmul.f32 %v800, 1.442695
    %v802 = vpow.pop %v801
    %v803 = vadd.f32 %v802, 1.0
    %v804 = vrcp.pop %v803
    %v805 = vmul.f32 1.0, %v804
    %v806 = vadd.f32 %v715, %v755
    %v807 = vxor.u32 %v806, 2147483648
    %v808 = vmul.f32 %v807, 1.442695
    %v809 = vpow.pop %v808
    %v810 = vadd.f32 %v809, 1.0
    %v811 = vrcp.pop %v810
    %v812 = vmul.f32 1.0, %v811
    %v813 = vadd.f32 %v794, %v444
    %v814 = vmul.f32 %v805, %v813
    %v815 = vadd.f32 %v716, %v814
    %v816 = vtanh.pop %v815
    %v817 = vsub.f32 %v712, %v816
    %v818 = vmul.f32 %v812, %v817
    %v819 = vadd.f32 %v816, %v818
    %s820 = scalar_lea.vmem [#allocation2], 48
    %v821 = vld [vmem:[%s820] sm:$0xff]
    %v822 = vld [vmem:[%s820 + $0x8] sm:$0xff]
    %v823 = vld [vmem:[%s820 + $0x10] sm:$0xff]
    %v824 = vpack.c.bf16 %v819, %v819
    %825 = vmatprep.subr.bf16.mxu0 %v585
    %826 = vmatpush1.bf16.msra.mxu0 %v584
    %827 = vmatprep.subr.bf16.mxu0 %v582
    %828 = vmatpush1.bf16.msra.mxu0 %v581
    %829 = vmatprep.subr.bf16.mxu0 %v579
    %830 = vmatpush1.bf16.msra.mxu0 %v578
    %831 = vmatprep.subr.bf16.mxu0 %v576
    %832 = vmatpush1.bf16.msra.mxu0 %v575
    %833 = vmatprep.subr.bf16.mxu0 %v573
    %834 = vmatpush1.bf16.msra.mxu0 %v572
    %835 = vmatprep.subr.bf16.mxu0 %v570
    %836 = vmatpush1.bf16.msra.mxu0 %v569
    %837 = vmatprep.subr.bf16.mxu0 %v567
    %838 = vmatpush1.bf16.msra.mxu0 %v566
    %839 = vmatprep.subr.bf16.mxu0 %v564
    %840 = vmatpush1.bf16.msra.mxu0 %v563
    %841 = vmatprep.subr.bf16.mxu0 0
    %842 = vmatpush2.bf16.msra.mxu0 0
    %843 = vmatprep.subr.bf16.mxu0 0
    %844 = vmatpush2.bf16.msra.mxu0 0
    %845 = vmatprep.subr.bf16.mxu0 0
    %846 = vmatpush2.bf16.msra.mxu0 0
    %847 = vmatprep.subr.bf16.mxu0 0
    %848 = vmatpush2.bf16.msra.mxu0 0
    %849 = vmatprep.subr.bf16.mxu0 0
    %850 = vmatpush2.bf16.msra.mxu0 0
    %851 = vmatprep.subr.bf16.mxu0 0
    %852 = vmatpush2.bf16.msra.mxu0 0
    %853 = vmatprep.subr.bf16.mxu0 0
    %854 = vmatpush2.bf16.msra.mxu0 0
    %855 = vmatprep.subr.bf16.mxu0 0
    %856 = vmatpush2.bf16.msra.mxu0 0
    %857 = vmatprep.mubr.bf16.mxu0 0
    %858 = vmatmul.mubr.bf16.gmra.mxu0 %v824
    %v859 = vpop.f32.mrf.mxu0
    %v860 = vadd.f32 0.0, %v859
    %v861 = vpop.f32.mrf.mxu0
    %v862 = vadd.f32 0.0, %v861
    %v863 = vpop.f32.mrf.mxu0
    %v864 = vpop.f32.mrf.mxu0
    %865 = vdwg.mxu0
    %866 = vmatprep.subr.bf16.mxu0 0
    %867 = vmatpush1.bf16.msra.mxu0 %v586
    %868 = vmatprep.subr.bf16.mxu0 0
    %869 = vmatpush1.bf16.msra.mxu0 %v583
    %870 = vmatprep.subr.bf16.mxu0 0
    %871 = vmatpush1.bf16.msra.mxu0 %v580
    %872 = vmatprep.subr.bf16.mxu0 0
    %873 = vmatpush1.bf16.msra.mxu0 %v577
    %874 = vmatprep.subr.bf16.mxu0 0
    %875 = vmatpush1.bf16.msra.mxu0 %v574
    %876 = vmatprep.subr.bf16.mxu0 0
    %877 = vmatpush1.bf16.msra.mxu0 %v571
    %878 = vmatprep.subr.bf16.mxu0 0
    %879 = vmatpush1.bf16.msra.mxu0 %v568
    %880 = vmatprep.subr.bf16.mxu0 0
    %881 = vmatpush1.bf16.msra.mxu0 %v565
    %882 = vmatprep.subr.bf16.mxu0 0
    %883 = vmatpush2.bf16.msra.mxu0 0
    %884 = vmatprep.subr.bf16.mxu0 0
    %885 = vmatpush2.bf16.msra.mxu0 0
    %886 = vmatprep.subr.bf16.mxu0 0
    %887 = vmatpush2.bf16.msra.mxu0 0
    %888 = vmatprep.subr.bf16.mxu0 0
    %889 = vmatpush2.bf16.msra.mxu0 0
    %890 = vmatprep.subr.bf16.mxu0 0
    %891 = vmatpush2.bf16.msra.mxu0 0
    %892 = vmatprep.subr.bf16.mxu0 0
    %893 = vmatpush2.bf16.msra.mxu0 0
    %894 = vmatprep.subr.bf16.mxu0 0
    %895 = vmatpush2.bf16.msra.mxu0 0
    %896 = vmatprep.subr.bf16.mxu0 0
    %897 = vmatpush2.bf16.msra.mxu0 0
    %898 = vmatprep.mubr.bf16.mxu0 0
    %899 = vmatmul.mubr.bf16.gmra.mxu0 %v824
    %v900 = vpop.f32.mrf.mxu0
    %v901 = vadd.f32 0.0, %v900
    %v902 = vpop.f32.mrf.mxu0
    %v903 = vpop.f32.mrf.mxu0
    %v904 = vpop.f32.mrf.mxu0
    %905 = vdwg.mxu0
    %v906 = vadd.f32 %v821, %v860
    %v907 = vxor.u32 %v906, 2147483648
    %v908 = vmul.f32 %v907, 1.442695
    %v909 = vpow.pop %v908
    %v910 = vadd.f32 %v909, 1.0
    %v911 = vrcp.pop %v910
    %v912 = vmul.f32 1.0, %v911
    %v913 = vadd.f32 %v822, %v862
    %v914 = vxor.u32 %v913, 2147483648
    %v915 = vmul.f32 %v914, 1.442695
    %v916 = vpow.pop %v915
    %v917 = vadd.f32 %v916, 1.0
    %v918 = vrcp.pop %v917
    %v919 = vmul.f32 1.0, %v918
    %v920 = vadd.f32 %v901, %v444
    %v921 = vmul.f32 %v912, %v920
    %v922 = vadd.f32 %v823, %v921
    %v923 = vtanh.pop %v922
    %v924 = vsub.f32 %v819, %v923
    %v925 = vmul.f32 %v919, %v924
    %v926 = vadd.f32 %v923, %v925
    %s927 = scalar_lea.vmem [#allocation2], 72
    %v928 = vld [vmem:[%s927] sm:$0xff]
    %v929 = vld [vmem:[%s927 + $0x8] sm:$0xff]
    %v930 = vld [vmem:[%s927 + $0x10] sm:$0xff]
    %v931 = vpack.c.bf16 %v926, %v926
    %932 = vmatprep.subr.bf16.mxu0 %v585
    %933 = vmatpush1.bf16.msra.mxu0 %v584
    %934 = vmatprep.subr.bf16.mxu0 %v582
    %935 = vmatpush1.bf16.msra.mxu0 %v581
    %936 = vmatprep.subr.bf16.mxu0 %v579
    %937 = vmatpush1.bf16.msra.mxu0 %v578
    %938 = vmatprep.subr.bf16.mxu0 %v576
    %939 = vmatpush1.bf16.msra.mxu0 %v575
    %940 = vmatprep.subr.bf16.mxu0 %v573
    %941 = vmatpush1.bf16.msra.mxu0 %v572
    %942 = vmatprep.subr.bf16.mxu0 %v570
    %943 = vmatpush1.bf16.msra.mxu0 %v569
    %944 = vmatprep.subr.bf16.mxu0 %v567
    %945 = vmatpush1.bf16.msra.mxu0 %v566
    %946 = vmatprep.subr.bf16.mxu0 %v564
    %947 = vmatpush1.bf16.msra.mxu0 %v563
    %948 = vmatprep.subr.bf16.mxu0 0
    %949 = vmatpush2.bf16.msra.mxu0 0
    %950 = vmatprep.subr.bf16.mxu0 0
    %951 = vmatpush2.bf16.msra.mxu0 0
    %952 = vmatprep.subr.bf16.mxu0 0
    %953 = vmatpush2.bf16.msra.mxu0 0
    %954 = vmatprep.subr.bf16.mxu0 0
    %955 = vmatpush2.bf16.msra.mxu0 0
    %956 = vmatprep.subr.bf16.mxu0 0
    %957 = vmatpush2.bf16.msra.mxu0 0
    %958 = vmatprep.subr.bf16.mxu0 0
    %959 = vmatpush2.bf16.msra.mxu0 0
    %960 = vmatprep.subr.bf16.mxu0 0
    %961 = vmatpush2.bf16.msra.mxu0 0
    %962 = vmatprep.subr.bf16.mxu0 0
    %963 = vmatpush2.bf16.msra.mxu0 0
    %964 = vmatprep.mubr.bf16.mxu0 0
    %965 = vmatmul.mubr.bf16.gmra.mxu0 %v931
    %v966 = vpop.f32.mrf.mxu0
    %v967 = vadd.f32 0.0, %v966
    %v968 = vpop.f32.mrf.mxu0
    %v969 = vadd.f32 0.0, %v968
    %v970 = vpop.f32.mrf.mxu0
    %v971 = vpop.f32.mrf.mxu0
    %972 = vdwg.mxu0
    %973 = vmatprep.subr.bf16.mxu0 0
    %974 = vmatpush1.bf16.msra.mxu0 %v586
    %975 = vmatprep.subr.bf16.mxu0 0
    %976 = vmatpush1.bf16.msra.mxu0 %v583
    %977 = vmatprep.subr.bf16.mxu0 0
    %978 = vmatpush1.bf16.msra.mxu0 %v580
    %979 = vmatprep.subr.bf16.mxu0 0
    %980 = vmatpush1.bf16.msra.mxu0 %v577
    %981 = vmatprep.subr.bf16.mxu0 0
    %982 = vmatpush1.bf16.msra.mxu0 %v574
    %983 = vmatprep.subr.bf16.mxu0 0
    %984 = vmatpush1.bf16.msra.mxu0 %v571
    %985 = vmatprep.subr.bf16.mxu0 0
    %986 = vmatpush1.bf16.msra.mxu0 %v568
    %987 = vmatprep.subr.bf16.mxu0 0
    %988 = vmatpush1.bf16.msra.mxu0 %v565
    %989 = vmatprep.subr.bf16.mxu0 0
    %990 = vmatpush2.bf16.msra.mxu0 0
    %991 = vmatprep.subr.bf16.mxu0 0
    %992 = vmatpush2.bf16.msra.mxu0 0
    %993 = vmatprep.subr.bf16.mxu0 0
    %994 = vmatpush2.bf16.msra.mxu0 0
    %995 = vmatprep.subr.bf16.mxu0 0
    %996 = vmatpush2.bf16.msra.mxu0 0
    %997 = vmatprep.subr.bf16.mxu0 0
    %998 = vmatpush2.bf16.msra.mxu0 0
    %999 = vmatprep.subr.bf16.mxu0 0
    %1000 = vmatpush2.bf16.msra.mxu0 0
    %1001 = vmatprep.subr.bf16.mxu0 0
    %1002 = vmatpush2.bf16.msra.mxu0 0
    %1003 = vmatprep.subr.bf16.mxu0 0
    %1004 = vmatpush2.bf16.msra.mxu0 0
    %1005 = vmatprep.mubr.bf16.mxu0 0
    %1006 = vmatmul.mubr.bf16.gmra.mxu0 %v931
    %v1007 = vpop.f32.mrf.mxu0
    %v1008 = vadd.f32 0.0, %v1007
    %v1009 = vpop.f32.mrf.mxu0
    %v1010 = vpop.f32.mrf.mxu0
    %v1011 = vpop.f32.mrf.mxu0
    %1012 = vdwg.mxu0
    %v1013 = vadd.f32 %v928, %v967
    %v1014 = vxor.u32 %v1013, 2147483648
    %v1015 = vmul.f32 %v1014, 1.442695
    %v1016 = vpow.pop %v1015
    %v1017 = vadd.f32 %v1016, 1.0
    %v1018 = vrcp.pop %v1017
    %v1019 = vmul.f32 1.0, %v1018
    %v1020 = vadd.f32 %v929, %v969
    %v1021 = vxor.u32 %v1020, 2147483648
    %v1022 = vmul.f32 %v1021, 1.442695
    %v1023 = vpow.pop %v1022
    %v1024 = vadd.f32 %v1023, 1.0
    %v1025 = vrcp.pop %v1024
    %v1026 = vmul.f32 1.0, %v1025
    %v1027 = vadd.f32 %v1008, %v444
    %v1028 = vmul.f32 %v1019, %v1027
    %v1029 = vadd.f32 %v930, %v1028
    %v1030 = vtanh.pop %v1029
    %v1031 = vsub.f32 %v926, %v1030
    %v1032 = vmul.f32 %v1026, %v1031
    %v1033 = vadd.f32 %v1030, %v1032
    %s1034 = scalar_lea.vmem [#allocation2], 96
    %v1035 = vld [vmem:[%s1034] sm:$0xff]
    %v1036 = vld [vmem:[%s1034 + $0x8] sm:$0xff]
    %v1037 = vld [vmem:[%s1034 + $0x10] sm:$0xff]
    %v1038 = vpack.c.bf16 %v1033, %v1033
    %1039 = vmatprep.subr.bf16.mxu0 %v585
    %1040 = vmatpush1.bf16.msra.mxu0 %v584
    %1041 = vmatprep.subr.bf16.mxu0 %v582
    %1042 = vmatpush1.bf16.msra.mxu0 %v581
    %1043 = vmatprep.subr.bf16.mxu0 %v579
    %1044 = vmatpush1.bf16.msra.mxu0 %v578
    %1045 = vmatprep.subr.bf16.mxu0 %v576
    %1046 = vmatpush1.bf16.msra.mxu0 %v575
    %1047 = vmatprep.subr.bf16.mxu0 %v573
    %1048 = vmatpush1.bf16.msra.mxu0 %v572
    %1049 = vmatprep.subr.bf16.mxu0 %v570
    %1050 = vmatpush1.bf16.msra.mxu0 %v569
    %1051 = vmatprep.subr.bf16.mxu0 %v567
    %1052 = vmatpush1.bf16.msra.mxu0 %v566
    %1053 = vmatprep.subr.bf16.mxu0 %v564
    %1054 = vmatpush1.bf16.msra.mxu0 %v563
    %1055 = vmatprep.subr.bf16.mxu0 0
    %1056 = vmatpush2.bf16.msra.mxu0 0
    %1057 = vmatprep.subr.bf16.mxu0 0
    %1058 = vmatpush2.bf16.msra.mxu0 0
    %1059 = vmatprep.subr.bf16.mxu0 0
    %1060 = vmatpush2.bf16.msra.mxu0 0
    %1061 = vmatprep.subr.bf16.mxu0 0
    %1062 = vmatpush2.bf16.msra.mxu0 0
    %1063 = vmatprep.subr.bf16.mxu0 0
    %1064 = vmatpush2.bf16.msra.mxu0 0
    %1065 = vmatprep.subr.bf16.mxu0 0
    %1066 = vmatpush2.bf16.msra.mxu0 0
    %1067 = vmatprep.subr.bf16.mxu0 0
    %1068 = vmatpush2.bf16.msra.mxu0 0
    %1069 = vmatprep.subr.bf16.mxu0 0
    %1070 = vmatpush2.bf16.msra.mxu0 0
    %1071 = vmatprep.mubr.bf16.mxu0 0
    %1072 = vmatmul.mubr.bf16.gmra.mxu0 %v1038
    %v1073 = vpop.f32.mrf.mxu0
    %v1074 = vadd.f32 0.0, %v1073
    %v1075 = vpop.f32.mrf.mxu0
    %v1076 = vadd.f32 0.0, %v1075
    %v1077 = vpop.f32.mrf.mxu0
    %v1078 = vpop.f32.mrf.mxu0
    %1079 = vdwg.mxu0
    %1080 = vmatprep.subr.bf16.mxu0 0
    %1081 = vmatpush1.bf16.msra.mxu0 %v586
    %1082 = vmatprep.subr.bf16.mxu0 0
    %1083 = vmatpush1.bf16.msra.mxu0 %v583
    %1084 = vmatprep.subr.bf16.mxu0 0
    %1085 = vmatpush1.bf16.msra.mxu0 %v580
    %1086 = vmatprep.subr.bf16.mxu0 0
    %1087 = vmatpush1.bf16.msra.mxu0 %v577
    %1088 = vmatprep.subr.bf16.mxu0 0
    %1089 = vmatpush1.bf16.msra.mxu0 %v574
    %1090 = vmatprep.subr.bf16.mxu0 0
    %1091 = vmatpush1.bf16.msra.mxu0 %v571
    %1092 = vmatprep.subr.bf16.mxu0 0
    %1093 = vmatpush1.bf16.msra.mxu0 %v568
    %1094 = vmatprep.subr.bf16.mxu0 0
    %1095 = vmatpush1.bf16.msra.mxu0 %v565
    %1096 = vmatprep.subr.bf16.mxu0 0
    %1097 = vmatpush2.bf16.msra.mxu0 0
    %1098 = vmatprep.subr.bf16.mxu0 0
    %1099 = vmatpush2.bf16.msra.mxu0 0
    %1100 = vmatprep.subr.bf16.mxu0 0
    %1101 = vmatpush2.bf16.msra.mxu0 0
    %1102 = vmatprep.subr.bf16.mxu0 0
    %1103 = vmatpush2.bf16.msra.mxu0 0
    %1104 = vmatprep.subr.bf16.mxu0 0
    %1105 = vmatpush2.bf16.msra.mxu0 0
    %1106 = vmatprep.subr.bf16.mxu0 0
    %1107 = vmatpush2.bf16.msra.mxu0 0
    %1108 = vmatprep.subr.bf16.mxu0 0
    %1109 = vmatpush2.bf16.msra.mxu0 0
    %1110 = vmatprep.subr.bf16.mxu0 0
    %1111 = vmatpush2.bf16.msra.mxu0 0
    %1112 = vmatprep.mubr.bf16.mxu0 0
    %1113 = vmatmul.mubr.bf16.gmra.mxu0 %v1038
    %v1114 = vpop.f32.mrf.mxu0
    %v1115 = vadd.f32 0.0, %v1114
    %v1116 = vpop.f32.mrf.mxu0
    %v1117 = vpop.f32.mrf.mxu0
    %v1118 = vpop.f32.mrf.mxu0
    %1119 = vdwg.mxu0
    %v1120 = vadd.f32 %v1035, %v1074
    %v1121 = vxor.u32 %v1120, 2147483648
    %v1122 = vmul.f32 %v1121, 1.442695
    %v1123 = vpow.pop %v1122
    %v1124 = vadd.f32 %v1123, 1.0
    %v1125 = vrcp.pop %v1124
    %v1126 = vmul.f32 1.0, %v1125
    %v1127 = vadd.f32 %v1036, %v1076
    %v1128 = vxor.u32 %v1127, 2147483648
    %v1129 = vmul.f32 %v1128, 1.442695
    %v1130 = vpow.pop %v1129
    %v1131 = vadd.f32 %v1130, 1.0
    %v1132 = vrcp.pop %v1131
    %v1133 = vmul.f32 1.0, %v1132
    %v1134 = vadd.f32 %v1115, %v444
    %v1135 = vmul.f32 %v1126, %v1134
    %v1136 = vadd.f32 %v1037, %v1135
    %v1137 = vtanh.pop %v1136
    %v1138 = vsub.f32 %v1033, %v1137
    %v1139 = vmul.f32 %v1133, %v1138
    %v1140 = vadd.f32 %v1137, %v1139
    %s1141 = scalar_lea.vmem [#allocation2], 120
    %v1142 = vld [vmem:[%s1141] sm:$0xff]
    %v1143 = vld [vmem:[%s1141 + $0x8] sm:$0xff]
    %v1144 = vld [vmem:[%s1141 + $0x10] sm:$0xff]
    %v1145 = vpack.c.bf16 %v1140, %v1140
    %1146 = vmatprep.subr.bf16.mxu0 %v585
    %1147 = vmatpush1.bf16.msra.mxu0 %v584
    %1148 = vmatprep.subr.bf16.mxu0 %v582
    %1149 = vmatpush1.bf16.msra.mxu0 %v581
    %1150 = vmatprep.subr.bf16.mxu0 %v579
    %1151 = vmatpush1.bf16.msra.mxu0 %v578
    %1152 = vmatprep.subr.bf16.mxu0 %v576
    %1153 = vmatpush1.bf16.msra.mxu0 %v575
    %1154 = vmatprep.subr.bf16.mxu0 %v573
    %1155 = vmatpush1.bf16.msra.mxu0 %v572
    %1156 = vmatprep.subr.bf16.mxu0 %v570
    %1157 = vmatpush1.bf16.msra.mxu0 %v569
    %1158 = vmatprep.subr.bf16.mxu0 %v567
    %1159 = vmatpush1.bf16.msra.mxu0 %v566
    %1160 = vmatprep.subr.bf16.mxu0 %v564
    %1161 = vmatpush1.bf16.msra.mxu0 %v563
    %1162 = vmatprep.subr.bf16.mxu0 0
    %1163 = vmatpush2.bf16.msra.mxu0 0
    %1164 = vmatprep.subr.bf16.mxu0 0
    %1165 = vmatpush2.bf16.msra.mxu0 0
    %1166 = vmatprep.subr.bf16.mxu0 0
    %1167 = vmatpush2.bf16.msra.mxu0 0
    %1168 = vmatprep.subr.bf16.mxu0 0
    %1169 = vmatpush2.bf16.msra.mxu0 0
    %1170 = vmatprep.subr.bf16.mxu0 0
    %1171 = vmatpush2.bf16.msra.mxu0 0
    %1172 = vmatprep.subr.bf16.mxu0 0
    %1173 = vmatpush2.bf16.msra.mxu0 0
    %1174 = vmatprep.subr.bf16.mxu0 0
    %1175 = vmatpush2.bf16.msra.mxu0 0
    %1176 = vmatprep.subr.bf16.mxu0 0
    %1177 = vmatpush2.bf16.msra.mxu0 0
    %1178 = vmatprep.mubr.bf16.mxu0 0
    %1179 = vmatmul.mubr.bf16.gmra.mxu0 %v1145
    %v1180 = vpop.f32.mrf.mxu0
    %v1181 = vadd.f32 0.0, %v1180
    %v1182 = vpop.f32.mrf.mxu0
    %v1183 = vadd.f32 0.0, %v1182
    %v1184 = vpop.f32.mrf.mxu0
    %v1185 = vpop.f32.mrf.mxu0
    %1186 = vdwg.mxu0
    %1187 = vmatprep.subr.bf16.mxu0 0
    %1188 = vmatpush1.bf16.msra.mxu0 %v586
    %1189 = vmatprep.subr.bf16.mxu0 0
    %1190 = vmatpush1.bf16.msra.mxu0 %v583
    %1191 = vmatprep.subr.bf16.mxu0 0
    %1192 = vmatpush1.bf16.msra.mxu0 %v580
    %1193 = vmatprep.subr.bf16.mxu0 0
    %1194 = vmatpush1.bf16.msra.mxu0 %v577
    %1195 = vmatprep.subr.bf16.mxu0 0
    %1196 = vmatpush1.bf16.msra.mxu0 %v574
    %1197 = vmatprep.subr.bf16.mxu0 0
    %1198 = vmatpush1.bf16.msra.mxu0 %v571
    %1199 = vmatprep.subr.bf16.mxu0 0
    %1200 = vmatpush1.bf16.msra.mxu0 %v568
    %1201 = vmatprep.subr.bf16.mxu0 0
    %1202 = vmatpush1.bf16.msra.mxu0 %v565
    %1203 = vmatprep.subr.bf16.mxu0 0
    %1204 = vmatpush2.bf16.msra.mxu0 0
    %1205 = vmatprep.subr.bf16.mxu0 0
    %1206 = vmatpush2.bf16.msra.mxu0 0
    %1207 = vmatprep.subr.bf16.mxu0 0
    %1208 = vmatpush2.bf16.msra.mxu0 0
    %1209 = vmatprep.subr.bf16.mxu0 0
    %1210 = vmatpush2.bf16.msra.mxu0 0
    %1211 = vmatprep.subr.bf16.mxu0 0
    %1212 = vmatpush2.bf16.msra.mxu0 0
    %1213 = vmatprep.subr.bf16.mxu0 0
    %1214 = vmatpush2.bf16.msra.mxu0 0
    %1215 = vmatprep.subr.bf16.mxu0 0
    %1216 = vmatpush2.bf16.msra.mxu0 0
    %1217 = vmatprep.subr.bf16.mxu0 0
    %1218 = vmatpush2.bf16.msra.mxu0 0
    %1219 = vmatprep.mubr.bf16.mxu0 0
    %1220 = vmatmul.mubr.bf16.gmra.mxu0 %v1145
    %v1221 = vpop.f32.mrf.mxu0
    %v1222 = vadd.f32 0.0, %v1221
    %v1223 = vpop.f32.mrf.mxu0
    %v1224 = vpop.f32.mrf.mxu0
    %v1225 = vpop.f32.mrf.mxu0
    %1226 = vdwg.mxu0
    %v1227 = vadd.f32 %v1142, %v1181
    %v1228 = vxor.u32 %v1227, 2147483648
    %v1229 = vmul.f32 %v1228, 1.442695
    %v1230 = vpow.pop %v1229
    %v1231 = vadd.f32 %v1230, 1.0
    %v1232 = vrcp.pop %v1231
    %v1233 = vmul.f32 1.0, %v1232
    %v1234 = vadd.f32 %v1143, %v1183
    %v1235 = vxor.u32 %v1234, 2147483648
    %v1236 = vmul.f32 %v1235, 1.442695
    %v1237 = vpow.pop %v1236
    %v1238 = vadd.f32 %v1237, 1.0
    %v1239 = vrcp.pop %v1238
    %v1240 = vmul.f32 1.0, %v1239
    %v1241 = vadd.f32 %v1222, %v444
    %v1242 = vmul.f32 %v1233, %v1241
    %v1243 = vadd.f32 %v1144, %v1242
    %v1244 = vtanh.pop %v1243
    %v1245 = vsub.f32 %v1140, %v1244
    %v1246 = vmul.f32 %v1240, %v1245
    %v1247 = vadd.f32 %v1244, %v1246
    %s1248 = scalar_lea.vmem [#allocation2], 144
    %v1249 = vld [vmem:[%s1248] sm:$0xff]
    %v1250 = vld [vmem:[%s1248 + $0x8] sm:$0xff]
    %v1251 = vld [vmem:[%s1248 + $0x10] sm:$0xff]
    %v1252 = vpack.c.bf16 %v1247, %v1247
    %1253 = vmatprep.subr.bf16.mxu0 %v585
    %1254 = vmatpush1.bf16.msra.mxu0 %v584
    %1255 = vmatprep.subr.bf16.mxu0 %v582
    %1256 = vmatpush1.bf16.msra.mxu0 %v581
    %1257 = vmatprep.subr.bf16.mxu0 %v579
    %1258 = vmatpush1.bf16.msra.mxu0 %v578
    %1259 = vmatprep.subr.bf16.mxu0 %v576
    %1260 = vmatpush1.bf16.msra.mxu0 %v575
    %1261 = vmatprep.subr.bf16.mxu0 %v573
    %1262 = vmatpush1.bf16.msra.mxu0 %v572
    %1263 = vmatprep.subr.bf16.mxu0 %v570
    %1264 = vmatpush1.bf16.msra.mxu0 %v569
    %1265 = vmatprep.subr.bf16.mxu0 %v567
    %1266 = vmatpush1.bf16.msra.mxu0 %v566
    %1267 = vmatprep.subr.bf16.mxu0 %v564
    %1268 = vmatpush1.bf16.msra.mxu0 %v563
    %1269 = vmatprep.subr.bf16.mxu0 0
    %1270 = vmatpush2.bf16.msra.mxu0 0
    %1271 = vmatprep.subr.bf16.mxu0 0
    %1272 = vmatpush2.bf16.msra.mxu0 0
    %1273 = vmatprep.subr.bf16.mxu0 0
    %1274 = vmatpush2.bf16.msra.mxu0 0
    %1275 = vmatprep.subr.bf16.mxu0 0
    %1276 = vmatpush2.bf16.msra.mxu0 0
    %1277 = vmatprep.subr.bf16.mxu0 0
    %1278 = vmatpush2.bf16.msra.mxu0 0
    %1279 = vmatprep.subr.bf16.mxu0 0
    %1280 = vmatpush2.bf16.msra.mxu0 0
    %1281 = vmatprep.subr.bf16.mxu0 0
    %1282 = vmatpush2.bf16.msra.mxu0 0
    %1283 = vmatprep.subr.bf16.mxu0 0
    %1284 = vmatpush2.bf16.msra.mxu0 0
    %1285 = vmatprep.mubr.bf16.mxu0 0
    %1286 = vmatmul.mubr.bf16.gmra.mxu0 %v1252
    %v1287 = vpop.f32.mrf.mxu0
    %v1288 = vadd.f32 0.0, %v1287
    %v1289 = vpop.f32.mrf.mxu0
    %v1290 = vadd.f32 0.0, %v1289
    %v1291 = vpop.f32.mrf.mxu0
    %v1292 = vpop.f32.mrf.mxu0
    %1293 = vdwg.mxu0
    %1294 = vmatprep.subr.bf16.mxu0 0
    %1295 = vmatpush1.bf16.msra.mxu0 %v586
    %1296 = vmatprep.subr.bf16.mxu0 0
    %1297 = vmatpush1.bf16.msra.mxu0 %v583
    %1298 = vmatprep.subr.bf16.mxu0 0
    %1299 = vmatpush1.bf16.msra.mxu0 %v580
    %1300 = vmatprep.subr.bf16.mxu0 0
    %1301 = vmatpush1.bf16.msra.mxu0 %v577
    %1302 = vmatprep.subr.bf16.mxu0 0
    %1303 = vmatpush1.bf16.msra.mxu0 %v574
    %1304 = vmatprep.subr.bf16.mxu0 0
    %1305 = vmatpush1.bf16.msra.mxu0 %v571
    %1306 = vmatprep.subr.bf16.mxu0 0
    %1307 = vmatpush1.bf16.msra.mxu0 %v568
    %1308 = vmatprep.subr.bf16.mxu0 0
    %1309 = vmatpush1.bf16.msra.mxu0 %v565
    %1310 = vmatprep.subr.bf16.mxu0 0
    %1311 = vmatpush2.bf16.msra.mxu0 0
    %1312 = vmatprep.subr.bf16.mxu0 0
    %1313 = vmatpush2.bf16.msra.mxu0 0
    %1314 = vmatprep.subr.bf16.mxu0 0
    %1315 = vmatpush2.bf16.msra.mxu0 0
    %1316 = vmatprep.subr.bf16.mxu0 0
    %1317 = vmatpush2.bf16.msra.mxu0 0
    %1318 = vmatprep.subr.bf16.mxu0 0
    %1319 = vmatpush2.bf16.msra.mxu0 0
    %1320 = vmatprep.subr.bf16.mxu0 0
    %1321 = vmatpush2.bf16.msra.mxu0 0
    %1322 = vmatprep.subr.bf16.mxu0 0
    %1323 = vmatpush2.bf16.msra.mxu0 0
    %1324 = vmatprep.subr.bf16.mxu0 0
    %1325 = vmatpush2.bf16.msra.mxu0 0
    %1326 = vmatprep.mubr.bf16.mxu0 0
    %1327 = vmatmul.mubr.bf16.gmra.mxu0 %v1252
    %v1328 = vpop.f32.mrf.mxu0
    %v1329 = vadd.f32 0.0, %v1328
    %v1330 = vpop.f32.mrf.mxu0
    %v1331 = vpop.f32.mrf.mxu0
    %v1332 = vpop.f32.mrf.mxu0
    %1333 = vdwg.mxu0
    %v1334 = vadd.f32 %v1249, %v1288
    %v1335 = vxor.u32 %v1334, 2147483648
    %v1336 = vmul.f32 %v1335, 1.442695
    %v1337 = vpow.pop %v1336
    %v1338 = vadd.f32 %v1337, 1.0
    %v1339 = vrcp.pop %v1338
    %v1340 = vmul.f32 1.0, %v1339
    %v1341 = vadd.f32 %v1250, %v1290
    %v1342 = vxor.u32 %v1341, 2147483648
    %v1343 = vmul.f32 %v1342, 1.442695
    %v1344 = vpow.pop %v1343
    %v1345 = vadd.f32 %v1344, 1.0
    %v1346 = vrcp.pop %v1345
    %v1347 = vmul.f32 1.0, %v1346
    %v1348 = vadd.f32 %v1329, %v444
    %v1349 = vmul.f32 %v1340, %v1348
    %v1350 = vadd.f32 %v1251, %v1349
    %v1351 = vtanh.pop %v1350
    %v1352 = vsub.f32 %v1247, %v1351
    %v1353 = vmul.f32 %v1347, %v1352
    %v1354 = vadd.f32 %v1351, %v1353
    %s1355 = scalar_lea.vmem [#allocation2], 168
    %v1356 = vld [vmem:[%s1355] sm:$0xff]
    %v1357 = vld [vmem:[%s1355 + $0x8] sm:$0xff]
    %v1358 = vld [vmem:[%s1355 + $0x10] sm:$0xff]
    %v1359 = vpack.c.bf16 %v1354, %v1354
    %1360 = vmatprep.subr.bf16.mxu0 %v585
    %1361 = vmatpush1.bf16.msra.mxu0 %v584
    %1362 = vmatprep.subr.bf16.mxu0 %v582
    %1363 = vmatpush1.bf16.msra.mxu0 %v581
    %1364 = vmatprep.subr.bf16.mxu0 %v579
    %1365 = vmatpush1.bf16.msra.mxu0 %v578
    %1366 = vmatprep.subr.bf16.mxu0 %v576
    %1367 = vmatpush1.bf16.msra.mxu0 %v575
    %1368 = vmatprep.subr.bf16.mxu0 %v573
    %1369 = vmatpush1.bf16.msra.mxu0 %v572
    %1370 = vmatprep.subr.bf16.mxu0 %v570
    %1371 = vmatpush1.bf16.msra.mxu0 %v569
    %1372 = vmatprep.subr.bf16.mxu0 %v567
    %1373 = vmatpush1.bf16.msra.mxu0 %v566
    %1374 = vmatprep.subr.bf16.mxu0 %v564
    %1375 = vmatpush1.bf16.msra.mxu0 %v563
    %1376 = vmatprep.subr.bf16.mxu0 0
    %1377 = vmatpush2.bf16.msra.mxu0 0
    %1378 = vmatprep.subr.bf16.mxu0 0
    %1379 = vmatpush2.bf16.msra.mxu0 0
    %1380 = vmatprep.subr.bf16.mxu0 0
    %1381 = vmatpush2.bf16.msra.mxu0 0
    %1382 = vmatprep.subr.bf16.mxu0 0
    %1383 = vmatpush2.bf16.msra.mxu0 0
    %1384 = vmatprep.subr.bf16.mxu0 0
    %1385 = vmatpush2.bf16.msra.mxu0 0
    %1386 = vmatprep.subr.bf16.mxu0 0
    %1387 = vmatpush2.bf16.msra.mxu0 0
    %1388 = vmatprep.subr.bf16.mxu0 0
    %1389 = vmatpush2.bf16.msra.mxu0 0
    %1390 = vmatprep.subr.bf16.mxu0 0
    %1391 = vmatpush2.bf16.msra.mxu0 0
    %1392 = vmatprep.mubr.bf16.mxu0 0
    %1393 = vmatmul.mubr.bf16.gmra.mxu0 %v1359
    %v1394 = vpop.f32.mrf.mxu0
    %v1395 = vadd.f32 0.0, %v1394
    %v1396 = vpop.f32.mrf.mxu0
    %v1397 = vadd.f32 0.0, %v1396
    %v1398 = vpop.f32.mrf.mxu0
    %v1399 = vpop.f32.mrf.mxu0
    %1400 = vdwg.mxu0
    %1401 = vmatprep.subr.bf16.mxu0 0
    %1402 = vmatpush1.bf16.msra.mxu0 %v586
    %1403 = vmatprep.subr.bf16.mxu0 0
    %1404 = vmatpush1.bf16.msra.mxu0 %v583
    %1405 = vmatprep.subr.bf16.mxu0 0
    %1406 = vmatpush1.bf16.msra.mxu0 %v580
    %1407 = vmatprep.subr.bf16.mxu0 0
    %1408 = vmatpush1.bf16.msra.mxu0 %v577
    %1409 = vmatprep.subr.bf16.mxu0 0
    %1410 = vmatpush1.bf16.msra.mxu0 %v574
    %1411 = vmatprep.subr.bf16.mxu0 0
    %1412 = vmatpush1.bf16.msra.mxu0 %v571
    %1413 = vmatprep.subr.bf16.mxu0 0
    %1414 = vmatpush1.bf16.msra.mxu0 %v568
    %1415 = vmatprep.subr.bf16.mxu0 0
    %1416 = vmatpush1.bf16.msra.mxu0 %v565
    %1417 = vmatprep.subr.bf16.mxu0 0
    %1418 = vmatpush2.bf16.msra.mxu0 0
    %1419 = vmatprep.subr.bf16.mxu0 0
    %1420 = vmatpush2.bf16.msra.mxu0 0
    %1421 = vmatprep.subr.bf16.mxu0 0
    %1422 = vmatpush2.bf16.msra.mxu0 0
    %1423 = vmatprep.subr.bf16.mxu0 0
    %1424 = vmatpush2.bf16.msra.mxu0 0
    %1425 = vmatprep.subr.bf16.mxu0 0
    %1426 = vmatpush2.bf16.msra.mxu0 0
    %1427 = vmatprep.subr.bf16.mxu0 0
    %1428 = vmatpush2.bf16.msra.mxu0 0
    %1429 = vmatprep.subr.bf16.mxu0 0
    %1430 = vmatpush2.bf16.msra.mxu0 0
    %1431 = vmatprep.subr.bf16.mxu0 0
    %1432 = vmatpush2.bf16.msra.mxu0 0
    %1433 = vmatprep.mubr.bf16.mxu0 0
    %1434 = vmatmul.mubr.bf16.gmra.mxu0 %v1359
    %v1435 = vpop.f32.mrf.mxu0
    %v1436 = vadd.f32 0.0, %v1435
    %v1437 = vpop.f32.mrf.mxu0
    %v1438 = vpop.f32.mrf.mxu0
    %v1439 = vpop.f32.mrf.mxu0
    %1440 = vdwg.mxu0
    %v1441 = vadd.f32 %v1356, %v1395
    %v1442 = vxor.u32 %v1441, 2147483648
    %v1443 = vmul.f32 %v1442, 1.442695
    %v1444 = vpow.pop %v1443
    %v1445 = vadd.f32 %v1444, 1.0
    %v1446 = vrcp.pop %v1445
    %v1447 = vmul.f32 1.0, %v1446
    %v1448 = vadd.f32 %v1357, %v1397
    %v1449 = vxor.u32 %v1448, 2147483648
    %v1450 = vmul.f32 %v1449, 1.442695
    %v1451 = vpow.pop %v1450
    %v1452 = vadd.f32 %v1451, 1.0
    %v1453 = vrcp.pop %v1452
    %v1454 = vmul.f32 1.0, %v1453
    %v1455 = vadd.f32 %v1436, %v444
    %v1456 = vmul.f32 %v1447, %v1455
    %v1457 = vadd.f32 %v1358, %v1456
    %v1458 = vtanh.pop %v1457
    %v1459 = vsub.f32 %v1354, %v1458
    %v1460 = vmul.f32 %v1454, %v1459
    %v1461 = vadd.f32 %v1458, %v1460
    %1462 = vst [vmem:[#allocation9] sm:$0xff] %v1461
    // Predicated region
    $region38: #{tpu_custom_call.1} parent=1 // pred_check
      _
    $region39: #{tpu_custom_call.1} parent=1 // pred_check_branch
      %1464 = sbr.rel (0) target = $region41
    $region40: #{tpu_custom_call.1} parent=1 // pred_region
      %s1466 = ssub.s32 128, 128
      %1467 = vsyncadd [#allocation5], %s1466
      %s1469 = sshll.u32 [#allocation9], 4
      %s1470 = int_to_ptr.vmem [resolvable:$true] %s1469
      %1472 = dma.vmem_to_hbm [thread:$0]  %s1470, 128, %s5, [#allocation5]
    $region41: #{tpu_custom_call.1} parent=1 // pred_fallthru
      _
    // Predicated region
    $region42: #{tpu_custom_call.1} parent=1 // pred_check
      _
    $region43: #{tpu_custom_call.1} parent=1 // pred_check_branch
      %1474 = sbr.rel (0) target = $region45
    $region44: #{tpu_custom_call.1} parent=1 // pred_region
      %1475 = dma.done [#allocation5], 128
    $region45: #{tpu_custom_call.1} parent=1 // pred_fallthru
      _
    %1476 = vsyncpa [#allocation4], 1
    %1477 = vsyncpa [#allocation7], 1
    %1478 = vsyncpa [#allocation5], 1

// kernel: tpu_custom_call.1
$region0: #{tpu_custom_call.1}
  #allocation0 [shape = 'u32[]', space=smem, size = 0x4, offset = 0x4, fixed_abs, tag = 'smem constant byte address 0x4 - core index']
  #allocation1 [shape = 'u32[144,128]{1,0:T(1,128)}', space=vmem, size = 0x12000, scoped, tag = 'internal scratch']
  #allocation2 [shape = 'f32[8,8,384]{2,1,0:T(8,128)}', space=vmem, size = 0x18000, scoped, tag = 'scratch operand']
  %s0 = inlined_call_operand.hbm [shape: bf16[8,8,128], index: 0, kind: input, shape index: {}]
  %s1 = inlined_call_operand.hbm [shape: bf16[128,384], index: 1, kind: input, shape index: {}]
  %s2 = inlined_call_operand.hbm [shape: bf16[128,384], index: 2, kind: input, shape index: {}]
  %s3 = inlined_call_operand.vmem [shape: f32[1,384], index: 3, kind: input, shape index: {}]
  %s4 = inlined_call_operand.vmem [shape: f32[1,128], index: 4, kind: input, shape index: {}]
  %s5 = inlined_call_operand.hbm [shape: f32[8,128], index: 5, kind: output, shape index: {}]
  %s6 = sld [smem:[#allocation0]]
  $region46: #{tpu_custom_call.1} parent=0
    _
  %s8 = ssub.s32 1, %s6
  %s9 = scalar_select 0, %s8, %s6
  $region1: #{tpu_custom_call.1} parent=0
    #allocation3 [shape = 'u8[16384]{0}', space=vmem, size = 0x4000, scoped, tag = 'input window, operand 0, single buffered']
    #allocation4 [shape = 's32[1]{0}', space=sflag, size = 0x4, scoped, tag = 'scoped memory for tpu_custom_call.1']
    #allocation5 [shape = 's32[1]{0}', space=sflag, size = 0x4, scoped, tag = 'scoped memory for tpu_custom_call.1']
    #allocation6 [shape = 'u8[98304]{0}', space=vmem, size = 0x18000, scoped, tag = 'input window, operand 1, single buffered']
    #allocation7 [shape = 's32[1]{0}', space=sflag, size = 0x4, scoped, tag = 'scoped memory for tpu_custom_call.1']
    #allocation8 [shape = 'u8[98304]{0}', space=vmem, size = 0x18000, scoped, tag = 'input window, operand 2, single buffered']
    #allocation9 [shape = 'u8[4096]{0}', space=vmem, size = 0x1000, scoped, tag = 'output window, operand 0, single buffered']
    %10 = vsyncpa [#allocation4], 0
    %11 = vsyncpa [#allocation7], 0
    %12 = vsyncpa [#allocation5], 0
    // Predicated region
    $region2: #{tpu_custom_call.1} parent=1 // pred_check
      _
    $region3: #{tpu_custom_call.1} parent=1 // pred_check_branch
      %14 = sbr.rel (0) target = $region5
    $region4: #{tpu_custom_call.1} parent=1 // pred_region
      %s16 = ssub.s32 512, 512
      %17 = vsyncadd [#allocation4], %s16
      %s18 = sshll.u32 [#allocation3], 4
      %s19 = int_to_ptr.vmem [resolvable:$true] %s18
      %24 = dma.hbm_to_vmem [thread:$0]  %s0, 512, %s19, [#allocation4], 64, 64, 4
    $region5: #{tpu_custom_call.1} parent=1 // pred_fallthru
      _
    // Predicated region
    $region6: #{tpu_custom_call.1} parent=1 // pred_check
      _
    $region7: #{tpu_custom_call.1} parent=1 // pred_check_branch
      %26 = sbr.rel (0) target = $region9
    $region8: #{tpu_custom_call.1} parent=1 // pred_region
      %s28 = ssub.s32 3072, 3072
      %29 = vsyncadd [#allocation7], %s28
      %s30 = sshll.u32 [#allocation6], 4
      %s31 = int_to_ptr.vmem [resolvable:$true] %s30
      %36 = dma.hbm_to_vmem [thread:$0]  %s1, 3072, %s31, [#allocation7], 192, 192, 12
    $region9: #{tpu_custom_call.1} parent=1 // pred_fallthru
      _
    // Predicated region
    $region10: #{tpu_custom_call.1} parent=1 // pred_check
      _
    $region11: #{tpu_custom_call.1} parent=1 // pred_check_branch
      %38 = sbr.rel (0) target = $region13
    $region12: #{tpu_custom_call.1} parent=1 // pred_region
      %s40 = ssub.s32 3072, 3072
      %41 = vsyncadd [#allocation7], %s40
      %s42 = sshll.u32 [#allocation8], 4
      %s43 = int_to_ptr.vmem [resolvable:$true] %s42
      %48 = dma.hbm_to_vmem [thread:$0]  %s2, 3072, %s43, [#allocation7], 192, 192, 12
    $region13: #{tpu_custom_call.1} parent=1 // pred_fallthru
      _
    // Predicated region
    $region14: #{tpu_custom_call.1} parent=1 // pred_check
      _
    $region15: #{tpu_custom_call.1} parent=1 // pred_check_branch
      %50 = sbr.rel (0) target = $region17
    $region16: #{tpu_custom_call.1} parent=1 // pred_region
      _
    $region17: #{tpu_custom_call.1} parent=1 // pred_fallthru
      _
    // Predicated region
    $region18: #{tpu_custom_call.1} parent=1 // pred_check
      _
    $region19: #{tpu_custom_call.1} parent=1 // pred_check_branch
      %52 = sbr.rel (0) target = $region21
    $region20: #{tpu_custom_call.1} parent=1 // pred_region
      _
    $region21: #{tpu_custom_call.1} parent=1 // pred_fallthru
      _
    // Predicated region
    $region22: #{tpu_custom_call.1} parent=1 // pred_check
      _
    $region23: #{tpu_custom_call.1} parent=1 // pred_check_branch
      %54 = sbr.rel (0) target = $region25
    $region24: #{tpu_custom_call.1} parent=1 // pred_region
      %55 = dma.done [#allocation4], 512
    $region25: #{tpu_custom_call.1} parent=1 // pred_fallthru
      _
    // Predicated region
    $region26: #{tpu_custom_call.1} parent=1 // pred_check
      _
    $region27: #{tpu_custom_call.1} parent=1 // pred_check_branch
      %57 = sbr.rel (0) target = $region29
    $region28: #{tpu_custom_call.1} parent=1 // pred_region
      %58 = dma.done [#allocation7], 3072
    $region29: #{tpu_custom_call.1} parent=1 // pred_fallthru
      _
    // Predicated region
    $region30: #{tpu_custom_call.1} parent=1 // pred_check
      _
    $region31: #{tpu_custom_call.1} parent=1 // pred_check_branch
      %60 = sbr.rel (0) target = $region33
    $region32: #{tpu_custom_call.1} parent=1 // pred_region
      %61 = dma.done [#allocation7], 3072
    $region33: #{tpu_custom_call.1} parent=1 // pred_fallthru
      _
    %p63 = scmp.eq.s32.totalorder 0, 0
    // Predicated region
    $region34: #{tpu_custom_call.1} parent=1 // pred_check
      %p64 = pneg %p63
    $region35: #{tpu_custom_call.1} parent=1 // pred_check_branch
      %66 = sbr.rel (%p64) target = $region37
    $region36: #{tpu_custom_call.1} parent=1 // pred_region
      %67 = vst [vmem:[#allocation9] sm:$0xff] 0.0
    $region37: #{tpu_custom_call.1} parent=1 // pred_fallthru
      _
    %v68 = vld [vmem:[#allocation3] sm:$0xf]
    %v69 = vld [vmem:[#allocation3 + $0x4] sm:$0xf]
    %v70 = vld [vmem:[#allocation3 + $0x8] sm:$0xf]
    %v71 = vld [vmem:[#allocation3 + $0xc] sm:$0xf]
    %v72 = vld [vmem:[#allocation3 + $0x10] sm:$0xf]
    %v73 = vld [vmem:[#allocation3 + $0x14] sm:$0xf]
    %v74 = vld [vmem:[#allocation3 + $0x18] sm:$0xf]
    %v75 = vld [vmem:[#allocation3 + $0x1c] sm:$0xf]
    %v76 = vld [vmem:[#allocation6] sm:$0xff]
    %v77 = vld [vmem:[#allocation6 + $0x8] sm:$0xf]
    %v78 = vld [vmem:[#allocation6 + $0xc] sm:$0xff]
    %v79 = vld [vmem:[#allocation6 + $0x14] sm:$0xf]
    %v80 = vld [vmem:[#allocation6 + $0x18] sm:$0xff]
    %v81 = vld [vmem:[#allocation6 + $0x20] sm:$0xf]
    %v82 = vld [vmem:[#allocation6 + $0x24] sm:$0xff]
    %v83 = vld [vmem:[#allocation6 + $0x2c] sm:$0xf]
    %v84 = vld [vmem:[#allocation6 + $0x30] sm:$0xff]
    %v85 = vld [vmem:[#allocation6 + $0x38] sm:$0xf]
    %v86 = vld [vmem:[#allocation6 + $0x3c] sm:$0xff]
    %v87 = vld [vmem:[#allocation6 + $0x44] sm:$0xf]
    %v88 = vld [vmem:[#allocation6 + $0x48] sm:$0xff]
    %v89 = vld [vmem:[#allocation6 + $0x50] sm:$0xf]
    %v90 = vld [vmem:[#allocation6 + $0x54] sm:$0xff]
    %v91 = vld [vmem:[#allocation6 + $0x5c] sm:$0xf]
    %v92 = vld [vmem:[#allocation6 + $0x60] sm:$0xff]
    %v93 = vld [vmem:[#allocation6 + $0x68] sm:$0xf]
    %v94 = vld [vmem:[#allocation6 + $0x6c] sm:$0xff]
    %v95 = vld [vmem:[#allocation6 + $0x74] sm:$0xf]
    %v96 = vld [vmem:[#allocation6 + $0x78] sm:$0xff]
    %v97 = vld [vmem:[#allocation6 + $0x80] sm:$0xf]
    %v98 = vld [vmem:[#allocation6 + $0x84] sm:$0xff]
    %v99 = vld [vmem:[#allocation6 + $0x8c] sm:$0xf]
    %v100 = vld [vmem:[#allocation6 + $0x90] sm:$0xff]
    %v101 = vld [vmem:[#allocation6 + $0x98] sm:$0xf]
    %v102 = vld [vmem:[#allocation6 + $0x9c] sm:$0xff]
    %v103 = vld [vmem:[#allocation6 + $0xa4] sm:$0xf]
    %v104 = vld [vmem:[#allocation6 + $0xa8] sm:$0xff]
    %v105 = vld [vmem:[#allocation6 + $0xb0] sm:$0xf]
    %v106 = vld [vmem:[#allocation6 + $0xb4] sm:$0xff]
    %v107 = vld [vmem:[#allocation6 + $0xbc] sm:$0xf]
    %v108 = vld [vmem:[%s3] sm:$0x7]
    %v110 = vlaneseq
    %v111 = vshrl.u32 %v110, 7
    %v112 = vsub.s32 0, %v111
    %v113 = vrot.slane %v108, %v112
    %v114 = vlaneseq
    %v115 = vshrl.u32 %v114, 7
    %v116 = vsub.s32 1, %v115
    %v117 = vrot.slane %v108, %v116
    %v118 = vlaneseq
    %v119 = vshrl.u32 %v118, 7
    %v120 = vsub.s32 2, %v119
    %v121 = vrot.slane %v108, %v120
    %v133 = vunpack.c.l.b16 %v68
    %v134 = vunpack.c.l.b16 %v69
    %v135 = vunpack.c.l.b16 %v70
    %v136 = vunpack.c.l.b16 %v71
    %v137 = vunpack.c.l.b16 %v72
    %v138 = vunpack.c.l.b16 %v73
    %v139 = vunpack.c.l.b16 %v74
    %v140 = vunpack.c.l.b16 %v75
    %v141 = vpack.c.b16 %v134, %v133
    %v142 = vpack.c.b16 %v136, %v135
    %v143 = vpack.c.b16 %v138, %v137
    %v144 = vpack.c.b16 %v140, %v139
    %v181 = vunpack.c.l.b16 %v76
    %v182 = vunpack.c.h.b16 %v76
    %v183 = vunpack.c.l.b16 %v77
    %v184 = vunpack.c.l.b16 %v78
    %v185 = vunpack.c.h.b16 %v78
    %v186 = vunpack.c.l.b16 %v79
    %v187 = vunpack.c.l.b16 %v80
    %v188 = vunpack.c.h.b16 %v80
    %v189 = vunpack.c.l.b16 %v81
    %v190 = vunpack.c.l.b16 %v82
    %v191 = vunpack.c.h.b16 %v82
    %v192 = vunpack.c.l.b16 %v83
    %v193 = vunpack.c.l.b16 %v84
    %v194 = vunpack.c.h.b16 %v84
    %v195 = vunpack.c.l.b16 %v85
    %v196 = vunpack.c.l.b16 %v86
    %v197 = vunpack.c.h.b16 %v86
    %v198 = vunpack.c.l.b16 %v87
    %v199 = vunpack.c.l.b16 %v88
    %v200 = vunpack.c.h.b16 %v88
    %v201 = vunpack.c.l.b16 %v89
    %v202 = vunpack.c.l.b16 %v90
    %v203 = vunpack.c.h.b16 %v90
    %v204 = vunpack.c.l.b16 %v91
    %v205 = vunpack.c.l.b16 %v92
    %v206 = vunpack.c.h.b16 %v92
    %v207 = vunpack.c.l.b16 %v93
    %v208 = vunpack.c.l.b16 %v94
    %v209 = vunpack.c.h.b16 %v94
    %v210 = vunpack.c.l.b16 %v95
    %v211 = vunpack.c.l.b16 %v96
    %v212 = vunpack.c.h.b16 %v96
    %v213 = vunpack.c.l.b16 %v97
    %v214 = vunpack.c.l.b16 %v98
    %v215 = vunpack.c.h.b16 %v98
    %v216 = vunpack.c.l.b16 %v99
    %v217 = vunpack.c.l.b16 %v100
    %v218 = vunpack.c.h.b16 %v100
    %v219 = vunpack.c.l.b16 %v101
    %v220 = vunpack.c.l.b16 %v102
    %v221 = vunpack.c.h.b16 %v102
    %v222 = vunpack.c.l.b16 %v103
    %v223 = vunpack.c.l.b16 %v104
    %v224 = vunpack.c.h.b16 %v104
    %v225 = vunpack.c.l.b16 %v105
    %v226 = vunpack.c.l.b16 %v106
    %v227 = vunpack.c.h.b16 %v106
    %v228 = vunpack.c.l.b16 %v107
    %v229 = vpack.c.b16 %v184, %v181
    %v230 = vpack.c.b16 %v185, %v182
    %v231 = vpack.c.b16 %v186, %v183
    %v232 = vpack.c.b16 %v190, %v187
    %v233 = vpack.c.b16 %v191, %v188
    %v234 = vpack.c.b16 %v192, %v189
    %v235 = vpack.c.b16 %v196, %v193
    %v236 = vpack.c.b16 %v197, %v194
    %v237 = vpack.c.b16 %v198, %v195
    %v238 = vpack.c.b16 %v202, %v199
    %v239 = vpack.c.b16 %v203, %v200
    %v240 = vpack.c.b16 %v204, %v201
    %v241 = vpack.c.b16 %v208, %v205
    %v242 = vpack.c.b16 %v209, %v206
    %v243 = vpack.c.b16 %v210, %v207
    %v244 = vpack.c.b16 %v214, %v211
    %v245 = vpack.c.b16 %v215, %v212
    %v246 = vpack.c.b16 %v216, %v213
    %v247 = vpack.c.b16 %v220, %v217
    %v248 = vpack.c.b16 %v221, %v218
    %v249 = vpack.c.b16 %v222, %v219
    %v250 = vpack.c.b16 %v226, %v223
    %v251 = vpack.c.b16 %v227, %v224
    %v252 = vpack.c.b16 %v228, %v225
    %277 = vmatprep.subr.bf16.mxu0 %v251
    %278 = vmatpush1.bf16.msra.mxu0 %v250
    %279 = vmatprep.subr.bf16.mxu0 %v248
    %280 = vmatpush1.bf16.msra.mxu0 %v247
    %281 = vmatprep.subr.bf16.mxu0 %v245
    %282 = vmatpush1.bf16.msra.mxu0 %v244
    %283 = vmatprep.subr.bf16.mxu0 %v242
    %284 = vmatpush1.bf16.msra.mxu0 %v241
    %285 = vmatprep.subr.bf16.mxu0 %v239
    %286 = vmatpush1.bf16.msra.mxu0 %v238
    %287 = vmatprep.subr.bf16.mxu0 %v236
    %288 = vmatpush1.bf16.msra.mxu0 %v235
    %289 = vmatprep.subr.bf16.mxu0 %v233
    %290 = vmatpush1.bf16.msra.mxu0 %v232
    %291 = vmatprep.subr.bf16.mxu0 %v230
    %292 = vmatpush1.bf16.msra.mxu0 %v229
    %293 = vmatprep.subr.bf16.mxu0 0
    %294 = vmatpush2.bf16.msra.mxu0 0
    %295 = vmatprep.subr.bf16.mxu0 0
    %296 = vmatpush2.bf16.msra.mxu0 0
    %297 = vmatprep.subr.bf16.mxu0 0
    %298 = vmatpush2.bf16.msra.mxu0 0
    %299 = vmatprep.subr.bf16.mxu0 0
    %300 = vmatpush2.bf16.msra.mxu0 0
    %301 = vmatprep.subr.bf16.mxu0 0
    %302 = vmatpush2.bf16.msra.mxu0 0
    %303 = vmatprep.subr.bf16.mxu0 0
    %304 = vmatpush2.bf16.msra.mxu0 0
    %305 = vmatprep.subr.bf16.mxu0 0
    %306 = vmatpush2.bf16.msra.mxu0 0
    %307 = vmatprep.subr.bf16.mxu0 0
    %308 = vmatpush2.bf16.msra.mxu0 0
    %309 = vmatprep.mubr.bf16.mxu0 0
    %310 = vmatmul.mubr.bf16.gmra.mxu0 %v141
    %v311 = vpop.f32.mrf.mxu0
    %v312 = vadd.f32 %v113, %v311
    %v313 = vpop.f32.mrf.mxu0
    %v314 = vadd.f32 %v117, %v313
    %v315 = vpop.f32.mrf.mxu0
    %v316 = vadd.f32 %v113, %v315
    %v317 = vpop.f32.mrf.mxu0
    %v318 = vadd.f32 %v117, %v317
    %319 = vmatprep.mubr.bf16.mxu0 0
    %320 = vmatmul.mubr.bf16.gmra.mxu0 %v142
    %v321 = vpop.f32.mrf.mxu0
    %v322 = vadd.f32 %v113, %v321
    %v323 = vpop.f32.mrf.mxu0
    %v324 = vadd.f32 %v117, %v323
    %v325 = vpop.f32.mrf.mxu0
    %v326 = vadd.f32 %v113, %v325
    %v327 = vpop.f32.mrf.mxu0
    %v328 = vadd.f32 %v117, %v327
    %329 = vmatprep.mubr.bf16.mxu0 0
    %330 = vmatmul.mubr.bf16.gmra.mxu0 %v143
    %v331 = vpop.f32.mrf.mxu0
    %v332 = vadd.f32 %v113, %v331
    %v333 = vpop.f32.mrf.mxu0
    %v334 = vadd.f32 %v117, %v333
    %v335 = vpop.f32.mrf.mxu0
    %v336 = vadd.f32 %v113, %v335
    %v337 = vpop.f32.mrf.mxu0
    %v338 = vadd.f32 %v117, %v337
    %339 = vmatprep.mubr.bf16.mxu0 0
    %340 = vmatmul.mubr.bf16.gmra.mxu0 %v144
    %v341 = vpop.f32.mrf.mxu0
    %v342 = vadd.f32 %v113, %v341
    %v343 = vpop.f32.mrf.mxu0
    %v344 = vadd.f32 %v117, %v343
    %v345 = vpop.f32.mrf.mxu0
    %v346 = vadd.f32 %v113, %v345
    %v347 = vpop.f32.mrf.mxu0
    %v348 = vadd.f32 %v117, %v347
    %349 = vdwg.mxu0
    %350 = vmatprep.subr.bf16.mxu0 0
    %351 = vmatpush1.bf16.msra.mxu0 %v252
    %352 = vmatprep.subr.bf16.mxu0 0
    %353 = vmatpush1.bf16.msra.mxu0 %v249
    %354 = vmatprep.subr.bf16.mxu0 0
    %355 = vmatpush1.bf16.msra.mxu0 %v246
    %356 = vmatprep.subr.bf16.mxu0 0
    %357 = vmatpush1.bf16.msra.mxu0 %v243
    %358 = vmatprep.subr.bf16.mxu0 0
    %359 = vmatpush1.bf16.msra.mxu0 %v240
    %360 = vmatprep.subr.bf16.mxu0 0
    %361 = vmatpush1.bf16.msra.mxu0 %v237
    %362 = vmatprep.subr.bf16.mxu0 0
    %363 = vmatpush1.bf16.msra.mxu0 %v234
    %364 = vmatprep.subr.bf16.mxu0 0
    %365 = vmatpush1.bf16.msra.mxu0 %v231
    %366 = vmatprep.subr.bf16.mxu0 0
    %367 = vmatpush2.bf16.msra.mxu0 0
    %368 = vmatprep.subr.bf16.mxu0 0
    %369 = vmatpush2.bf16.msra.mxu0 0
    %370 = vmatprep.subr.bf16.mxu0 0
    %371 = vmatpush2.bf16.msra.mxu0 0
    %372 = vmatprep.subr.bf16.mxu0 0
    %373 = vmatpush2.bf16.msra.mxu0 0
    %374 = vmatprep.subr.bf16.mxu0 0
    %375 = vmatpush2.bf16.msra.mxu0 0
    %376 = vmatprep.subr.bf16.mxu0 0
    %377 = vmatpush2.bf16.msra.mxu0 0
    %378 = vmatprep.subr.bf16.mxu0 0
    %379 = vmatpush2.bf16.msra.mxu0 0
    %380 = vmatprep.subr.bf16.mxu0 0
    %381 = vmatpush2.bf16.msra.mxu0 0
    %382 = vmatprep.mubr.bf16.mxu0 0
    %383 = vmatmul.mubr.bf16.gmra.mxu0 %v141
    %v384 = vpop.f32.mrf.mxu0
    %v385 = vadd.f32 %v121, %v384
    %v386 = vpop.f32.mrf.mxu0
    %v387 = vpop.f32.mrf.mxu0
    %v388 = vadd.f32 %v121, %v387
    %v389 = vpop.f32.mrf.mxu0
    %390 = vmatprep.mubr.bf16.mxu0 0
    %391 = vmatmul.mubr.bf16.gmra.mxu0 %v142
    %v392 = vpop.f32.mrf.mxu0
    %v393 = vadd.f32 %v121, %v392
    %v394 = vpop.f32.mrf.mxu0
    %v395 = vpop.f32.mrf.mxu0
    %v396 = vadd.f32 %v121, %v395
    %v397 = vpop.f32.mrf.mxu0
    %398 = vmatprep.mubr.bf16.mxu0 0
    %399 = vmatmul.mubr.bf16.gmra.mxu0 %v143
    %v400 = vpop.f32.mrf.mxu0
    %v401 = vadd.f32 %v121, %v400
    %v402 = vpop.f32.mrf.mxu0
    %v403 = vpop.f32.mrf.mxu0
    %v404 = vadd.f32 %v121, %v403
    %v405 = vpop.f32.mrf.mxu0
    %406 = vmatprep.mubr.bf16.mxu0 0
    %407 = vmatmul.mubr.bf16.gmra.mxu0 %v144
    %v408 = vpop.f32.mrf.mxu0
    %v409 = vadd.f32 %v121, %v408
    %v410 = vpop.f32.mrf.mxu0
    %v411 = vpop.f32.mrf.mxu0
    %v412 = vadd.f32 %v121, %v411
    %v413 = vpop.f32.mrf.mxu0
    %414 = vdwg.mxu0
    %415 = vst [vmem:[#allocation2] sm:$0xff] %v312
    %416 = vst [vmem:[#allocation2 + $0x8] sm:$0xff] %v314
    %417 = vst [vmem:[#allocation2 + $0x10] sm:$0xff] %v385
    %418 = vst [vmem:[#allocation2 + $0x18] sm:$0xff] %v316
    %419 = vst [vmem:[#allocation2 + $0x20] sm:$0xff] %v318
    %420 = vst [vmem:[#allocation2 + $0x28] sm:$0xff] %v388
    %421 = vst [vmem:[#allocation2 + $0x30] sm:$0xff] %v322
    %422 = vst [vmem:[#allocation2 + $0x38] sm:$0xff] %v324
    %423 = vst [vmem:[#allocation2 + $0x40] sm:$0xff] %v393
    %424 = vst [vmem:[#allocation2 + $0x48] sm:$0xff] %v326
    %425 = vst [vmem:[#allocation2 + $0x50] sm:$0xff] %v328
    %426 = vst [vmem:[#allocation2 + $0x58] sm:$0xff] %v396
    %427 = vst [vmem:[#allocation2 + $0x60] sm:$0xff] %v332
    %428 = vst [vmem:[#allocation2 + $0x68] sm:$0xff] %v334
    %429 = vst [vmem:[#allocation2 + $0x70] sm:$0xff] %v401
    %430 = vst [vmem:[#allocation2 + $0x78] sm:$0xff] %v336
    %431 = vst [vmem:[#allocation2 + $0x80] sm:$0xff] %v338
    %432 = vst [vmem:[#allocation2 + $0x88] sm:$0xff] %v404
    %433 = vst [vmem:[#allocation2 + $0x90] sm:$0xff] %v342
    %434 = vst [vmem:[#allocation2 + $0x98] sm:$0xff] %v344
    %435 = vst [vmem:[#allocation2 + $0xa0] sm:$0xff] %v409
    %436 = vst [vmem:[#allocation2 + $0xa8] sm:$0xff] %v346
    %437 = vst [vmem:[#allocation2 + $0xb0] sm:$0xff] %v348
    %438 = vst [vmem:[#allocation2 + $0xb8] sm:$0xff] %v412
    %v439 = vld [vmem:[%s4] sm:$0x1]
    %v441 = vlaneseq
    %v442 = vshrl.u32 %v441, 7
    %v443 = vsub.s32 0, %v442
    %v444 = vrot.slane %v439, %v443
    %v446 = vld [vmem:[#allocation9] sm:$0xff]
    %v447 = vld [vmem:[#allocation2] sm:$0xff]
    %v448 = vld [vmem:[#allocation2 + $0x8] sm:$0xff]
    %v449 = vld [vmem:[#allocation2 + $0x10] sm:$0xff]
    %v450 = vpack.c.bf16 %v446, %v446
    %v451 = vld [vmem:[#allocation8] sm:$0xff]
    %v452 = vld [vmem:[#allocation8 + $0x8] sm:$0xf]
    %v453 = vld [vmem:[#allocation8 + $0xc] sm:$0xff]
    %v454 = vld [vmem:[#allocation8 + $0x14] sm:$0xf]
    %v455 = vld [vmem:[#allocation8 + $0x18] sm:$0xff]
    %v456 = vld [vmem:[#allocation8 + $0x20] sm:$0xf]
    %v457 = vld [vmem:[#allocation8 + $0x24] sm:$0xff]
    %v458 = vld [vmem:[#allocation8 + $0x2c] sm:$0xf]
    %v459 = vld [vmem:[#allocation8 + $0x30] sm:$0xff]
    %v460 = vld [vmem:[#allocation8 + $0x38] sm:$0xf]
    %v461 = vld [vmem:[#allocation8 + $0x3c] sm:$0xff]
    %v462 = vld [vmem:[#allocation8 + $0x44] sm:$0xf]
    %v463 = vld [vmem:[#allocation8 + $0x48] sm:$0xff]
    %v464 = vld [vmem:[#allocation8 + $0x50] sm:$0xf]
    %v465 = vld [vmem:[#allocation8 + $0x54] sm:$0xff]
    %v466 = vld [vmem:[#allocation8 + $0x5c] sm:$0xf]
    %v467 = vld [vmem:[#allocation8 + $0x60] sm:$0xff]
    %v468 = vld [vmem:[#allocation8 + $0x68] sm:$0xf]
    %v469 = vld [vmem:[#allocation8 + $0x6c] sm:$0xff]
    %v470 = vld [vmem:[#allocation8 + $0x74] sm:$0xf]
    %v471 = vld [vmem:[#allocation8 + $0x78] sm:$0xff]
    %v472 = vld [vmem:[#allocation8 + $0x80] sm:$0xf]
    %v473 = vld [vmem:[#allocation8 + $0x84] sm:$0xff]
    %v474 = vld [vmem:[#allocation8 + $0x8c] sm:$0xf]
    %v475 = vld [vmem:[#allocation8 + $0x90] sm:$0xff]
    %v476 = vld [vmem:[#allocation8 + $0x98] sm:$0xf]
    %v477 = vld [vmem:[#allocation8 + $0x9c] sm:$0xff]
    %v478 = vld [vmem:[#allocation8 + $0xa4] sm:$0xf]
    %v479 = vld [vmem:[#allocation8 + $0xa8] sm:$0xff]
    %v480 = vld [vmem:[#allocation8 + $0xb0] sm:$0xf]
    %v481 = vld [vmem:[#allocation8 + $0xb4] sm:$0xff]
    %v482 = vld [vmem:[#allocation8 + $0xbc] sm:$0xf]
    %v515 = vunpack.c.l.b16 %v451
    %v516 = vunpack.c.h.b16 %v451
    %v517 = vunpack.c.l.b16 %v452
    %v518 = vunpack.c.l.b16 %v453
    %v519 = vunpack.c.h.b16 %v453
    %v520 = vunpack.c.l.b16 %v454
    %v521 = vunpack.c.l.b16 %v455
    %v522 = vunpack.c.h.b16 %v455
    %v523 = vunpack.c.l.b16 %v456
    %v524 = vunpack.c.l.b16 %v457
    %v525 = vunpack.c.h.b16 %v457
    %v526 = vunpack.c.l.b16 %v458
    %v527 = vunpack.c.l.b16 %v459
    %v528 = vunpack.c.h.b16 %v459
    %v529 = vunpack.c.l.b16 %v460
    %v530 = vunpack.c.l.b16 %v461
    %v531 = vunpack.c.h.b16 %v461
    %v532 = vunpack.c.l.b16 %v462
    %v533 = vunpack.c.l.b16 %v463
    %v534 = vunpack.c.h.b16 %v463
    %v535 = vunpack.c.l.b16 %v464
    %v536 = vunpack.c.l.b16 %v465
    %v537 = vunpack.c.h.b16 %v465
    %v538 = vunpack.c.l.b16 %v466
    %v539 = vunpack.c.l.b16 %v467
    %v540 = vunpack.c.h.b16 %v467
    %v541 = vunpack.c.l.b16 %v468
    %v542 = vunpack.c.l.b16 %v469
    %v543 = vunpack.c.h.b16 %v469
    %v544 = vunpack.c.l.b16 %v470
    %v545 = vunpack.c.l.b16 %v471
    %v546 = vunpack.c.h.b16 %v471
    %v547 = vunpack.c.l.b16 %v472
    %v548 = vunpack.c.l.b16 %v473
    %v549 = vunpack.c.h.b16 %v473
    %v550 = vunpack.c.l.b16 %v474
    %v551 = vunpack.c.l.b16 %v475
    %v552 = vunpack.c.h.b16 %v475
    %v553 = vunpack.c.l.b16 %v476
    %v554 = vunpack.c.l.b16 %v477
    %v555 = vunpack.c.h.b16 %v477
    %v556 = vunpack.c.l.b16 %v478
    %v557 = vunpack.c.l.b16 %v479
    %v558 = vunpack.c.h.b16 %v479
    %v559 = vunpack.c.l.b16 %v480
    %v560 = vunpack.c.l.b16 %v481
    %v561 = vunpack.c.h.b16 %v481
    %v562 = vunpack.c.l.b16 %v482
    %v563 = vpack.c.b16 %v518, %v515
    %v564 = vpack.c.b16 %v519, %v516
    %v565 = vpack.c.b16 %v520, %v517
    %v566 = vpack.c.b16 %v524, %v521
    %v567 = vpack.c.b16 %v525, %v522
    %v568 = vpack.c.b16 %v526, %v523
    %v569 = vpack.c.b16 %v530, %v527
    %v570 = vpack.c.b16 %v531, %v528
    %v571 = vpack.c.b16 %v532, %v529
    %v572 = vpack.c.b16 %v536, %v533
    %v573 = vpack.c.b16 %v537, %v534
    %v574 = vpack.c.b16 %v538, %v535
    %v575 = vpack.c.b16 %v542, %v539
    %v576 = vpack.c.b16 %v543, %v540
    %v577 = vpack.c.b16 %v544, %v541
    %v578 = vpack.c.b16 %v548, %v545
    %v579 = vpack.c.b16 %v549, %v546
    %v580 = vpack.c.b16 %v550, %v547
    %v581 = vpack.c.b16 %v554, %v551
    %v582 = vpack.c.b16 %v555, %v552
    %v583 = vpack.c.b16 %v556, %v553
    %v584 = vpack.c.b16 %v560, %v557
    %v585 = vpack.c.b16 %v561, %v558
    %v586 = vpack.c.b16 %v562, %v559
    %611 = vmatprep.subr.bf16.mxu0 %v585
    %612 = vmatpush1.bf16.msra.mxu0 %v584
    %613 = vmatprep.subr.bf16.mxu0 %v582
    %614 = vmatpush1.bf16.msra.mxu0 %v581
    %615 = vmatprep.subr.bf16.mxu0 %v579
    %616 = vmatpush1.bf16.msra.mxu0 %v578
    %617 = vmatprep.subr.bf16.mxu0 %v576
    %618 = vmatpush1.bf16.msra.mxu0 %v575
    %619 = vmatprep.subr.bf16.mxu0 %v573
    %620 = vmatpush1.bf16.msra.mxu0 %v572
    %621 = vmatprep.subr.bf16.mxu0 %v570
    %622 = vmatpush1.bf16.msra.mxu0 %v569
    %623 = vmatprep.subr.bf16.mxu0 %v567
    %624 = vmatpush1.bf16.msra.mxu0 %v566
    %625 = vmatprep.subr.bf16.mxu0 %v564
    %626 = vmatpush1.bf16.msra.mxu0 %v563
    %627 = vmatprep.subr.bf16.mxu0 0
    %628 = vmatpush2.bf16.msra.mxu0 0
    %629 = vmatprep.subr.bf16.mxu0 0
    %630 = vmatpush2.bf16.msra.mxu0 0
    %631 = vmatprep.subr.bf16.mxu0 0
    %632 = vmatpush2.bf16.msra.mxu0 0
    %633 = vmatprep.subr.bf16.mxu0 0
    %634 = vmatpush2.bf16.msra.mxu0 0
    %635 = vmatprep.subr.bf16.mxu0 0
    %636 = vmatpush2.bf16.msra.mxu0 0
    %637 = vmatprep.subr.bf16.mxu0 0
    %638 = vmatpush2.bf16.msra.mxu0 0
    %639 = vmatprep.subr.bf16.mxu0 0
    %640 = vmatpush2.bf16.msra.mxu0 0
    %641 = vmatprep.subr.bf16.mxu0 0
    %642 = vmatpush2.bf16.msra.mxu0 0
    %643 = vmatprep.mubr.bf16.mxu0 0
    %644 = vmatmul.mubr.bf16.gmra.mxu0 %v450
    %v645 = vpop.f32.mrf.mxu0
    %v646 = vadd.f32 0.0, %v645
    %v647 = vpop.f32.mrf.mxu0
    %v648 = vadd.f32 0.0, %v647
    %v649 = vpop.f32.mrf.mxu0
    %v650 = vpop.f32.mrf.mxu0
    %651 = vdwg.mxu0
    %652 = vmatprep.subr.bf16.mxu0 0
    %653 = vmatpush1.bf16.msra.mxu0 %v586
    %654 = vmatprep.subr.bf16.mxu0 0
    %655 = vmatpush1.bf16.msra.mxu0 %v583
    %656 = vmatprep.subr.bf16.mxu0 0
    %657 = vmatpush1.bf16.msra.mxu0 %v580
    %658 = vmatprep.subr.bf16.mxu0 0
    %659 = vmatpush1.bf16.msra.mxu0 %v577
    %660 = vmatprep.subr.bf16.mxu0 0
    %661 = vmatpush1.bf16.msra.mxu0 %v574
    %662 = vmatprep.subr.bf16.mxu0 0
    %663 = vmatpush1.bf16.msra.mxu0 %v571
    %664 = vmatprep.subr.bf16.mxu0 0
    %665 = vmatpush1.bf16.msra.mxu0 %v568
    %666 = vmatprep.subr.bf16.mxu0 0
    %667 = vmatpush1.bf16.msra.mxu0 %v565
    %668 = vmatprep.subr.bf16.mxu0 0
    %669 = vmatpush2.bf16.msra.mxu0 0
    %670 = vmatprep.subr.bf16.mxu0 0
    %671 = vmatpush2.bf16.msra.mxu0 0
    %672 = vmatprep.subr.bf16.mxu0 0
    %673 = vmatpush2.bf16.msra.mxu0 0
    %674 = vmatprep.subr.bf16.mxu0 0
    %675 = vmatpush2.bf16.msra.mxu0 0
    %676 = vmatprep.subr.bf16.mxu0 0
    %677 = vmatpush2.bf16.msra.mxu0 0
    %678 = vmatprep.subr.bf16.mxu0 0
    %679 = vmatpush2.bf16.msra.mxu0 0
    %680 = vmatprep.subr.bf16.mxu0 0
    %681 = vmatpush2.bf16.msra.mxu0 0
    %682 = vmatprep.subr.bf16.mxu0 0
    %683 = vmatpush2.bf16.msra.mxu0 0
    %684 = vmatprep.mubr.bf16.mxu0 0
    %685 = vmatmul.mubr.bf16.gmra.mxu0 %v450
    %v686 = vpop.f32.mrf.mxu0
    %v687 = vadd.f32 0.0, %v686
    %v688 = vpop.f32.mrf.mxu0
    %v689 = vpop.f32.mrf.mxu0
    %v690 = vpop.f32.mrf.mxu0
    %691 = vdwg.mxu0
    %v692 = vadd.f32 %v447, %v646
    %v693 = vxor.u32 %v692, 2147483648
    %v694 = vmul.f32 %v693, 1.442695
    %v695 = vpow.pop %v694
    %v696 = vadd.f32 %v695, 1.0
    %v697 = vrcp.pop %v696
    %v698 = vmul.f32 1.0, %v697
    %v699 = vadd.f32 %v448, %v648
    %v700 = vxor.u32 %v699, 2147483648
    %v701 = vmul.f32 %v700, 1.442695
    %v702 = vpow.pop %v701
    %v703 = vadd.f32 %v702, 1.0
    %v704 = vrcp.pop %v703
    %v705 = vmul.f32 1.0, %v704
    %v706 = vadd.f32 %v687, %v444
    %v707 = vmul.f32 %v698, %v706
    %v708 = vadd.f32 %v449, %v707
    %v709 = vtanh.pop %v708
    %v710 = vsub.f32 %v446, %v709
    %v711 = vmul.f32 %v705, %v710
    %v712 = vadd.f32 %v709, %v711
    %s713 = scalar_lea.vmem [#allocation2], 24
    %v714 = vld [vmem:[%s713] sm:$0xff]
    %v715 = vld [vmem:[%s713 + $0x8] sm:$0xff]
    %v716 = vld [vmem:[%s713 + $0x10] sm:$0xff]
    %v717 = vpack.c.bf16 %v712, %v712
    %718 = vmatprep.subr.bf16.mxu0 %v585
    %719 = vmatpush1.bf16.msra.mxu0 %v584
    %720 = vmatprep.subr.bf16.mxu0 %v582
    %721 = vmatpush1.bf16.msra.mxu0 %v581
    %722 = vmatprep.subr.bf16.mxu0 %v579
    %723 = vmatpush1.bf16.msra.mxu0 %v578
    %724 = vmatprep.subr.bf16.mxu0 %v576
    %725 = vmatpush1.bf16.msra.mxu0 %v575
    %726 = vmatprep.subr.bf16.mxu0 %v573
    %727 = vmatpush1.bf16.msra.mxu0 %v572
    %728 = vmatprep.subr.bf16.mxu0 %v570
    %729 = vmatpush1.bf16.msra.mxu0 %v569
    %730 = vmatprep.subr.bf16.mxu0 %v567
    %731 = vmatpush1.bf16.msra.mxu0 %v566
    %732 = vmatprep.subr.bf16.mxu0 %v564
    %733 = vmatpush1.bf16.msra.mxu0 %v563
    %734 = vmatprep.subr.bf16.mxu0 0
    %735 = vmatpush2.bf16.msra.mxu0 0
    %736 = vmatprep.subr.bf16.mxu0 0
    %737 = vmatpush2.bf16.msra.mxu0 0
    %738 = vmatprep.subr.bf16.mxu0 0
    %739 = vmatpush2.bf16.msra.mxu0 0
    %740 = vmatprep.subr.bf16.mxu0 0
    %741 = vmatpush2.bf16.msra.mxu0 0
    %742 = vmatprep.subr.bf16.mxu0 0
    %743 = vmatpush2.bf16.msra.mxu0 0
    %744 = vmatprep.subr.bf16.mxu0 0
    %745 = vmatpush2.bf16.msra.mxu0 0
    %746 = vmatprep.subr.bf16.mxu0 0
    %747 = vmatpush2.bf16.msra.mxu0 0
    %748 = vmatprep.subr.bf16.mxu0 0
    %749 = vmatpush2.bf16.msra.mxu0 0
    %750 = vmatprep.mubr.bf16.mxu0 0
    %751 = vmatmul.mubr.bf16.gmra.mxu0 %v717
    %v752 = vpop.f32.mrf.mxu0
    %v753 = vadd.f32 0.0, %v752
    %v754 = vpop.f32.mrf.mxu0
    %v755 = vadd.f32 0.0, %v754
    %v756 = vpop.f32.mrf.mxu0
    %v757 = vpop.f32.mrf.mxu0
    %758 = vdwg.mxu0
    %759 = vmatprep.subr.bf16.mxu0 0
    %760 = vmatpush1.bf16.msra.mxu0 %v586
    %761 = vmatprep.subr.bf16.mxu0 0
    %762 = vmatpush1.bf16.msra.mxu0 %v583
    %763 = vmatprep.subr.bf16.mxu0 0
    %764 = vmatpush1.bf16.msra.mxu0 %v580
    %765 = vmatprep.subr.bf16.mxu0 0
    %766 = vmatpush1.bf16.msra.mxu0 %v577
    %767 = vmatprep.subr.bf16.mxu0 0
    %768 = vmatpush1.bf16.msra.mxu0 %v574
    %769 = vmatprep.subr.bf16.mxu0 0
    %770 = vmatpush1.bf16.msra.mxu0 %v571
    %771 = vmatprep.subr.bf16.mxu0 0
    %772 = vmatpush1.bf16.msra.mxu0 %v568
    %773 = vmatprep.subr.bf16.mxu0 0
    %774 = vmatpush1.bf16.msra.mxu0 %v565
    %775 = vmatprep.subr.bf16.mxu0 0
    %776 = vmatpush2.bf16.msra.mxu0 0
    %777 = vmatprep.subr.bf16.mxu0 0
    %778 = vmatpush2.bf16.msra.mxu0 0
    %779 = vmatprep.subr.bf16.mxu0 0
    %780 = vmatpush2.bf16.msra.mxu0 0
    %781 = vmatprep.subr.bf16.mxu0 0
    %782 = vmatpush2.bf16.msra.mxu0 0
    %783 = vmatprep.subr.bf16.mxu0 0
    %784 = vmatpush2.bf16.msra.mxu0 0
    %785 = vmatprep.subr.bf16.mxu0 0
    %786 = vmatpush2.bf16.msra.mxu0 0
    %787 = vmatprep.subr.bf16.mxu0 0
    %788 = vmatpush2.bf16.msra.mxu0 0
    %789 = vmatprep.subr.bf16.mxu0 0
    %790 = vmatpush2.bf16.msra.mxu0 0
    %791 = vmatprep.mubr.bf16.mxu0 0
    %792 = vmatmul.mubr.bf16.gmra.mxu0 %v717
    %v793 = vpop.f32.mrf.mxu0
    %v794 = vadd.f32 0.0, %v793
    %v795 = vpop.f32.mrf.mxu0
    %v796 = vpop.f32.mrf.mxu0
    %v797 = vpop.f32.mrf.mxu0
    %798 = vdwg.mxu0
    %v799 = vadd.f32 %v714, %v753
    %v800 = vxor.u32 %v799, 2147483648
    %v801 = vmul.f32 %v800, 1.442695
    %v802 = vpow.pop %v801
    %v803 = vadd.f32 %v802, 1.0
    %v804 = vrcp.pop %v803
    %v805 = vmul.f32 1.0, %v804
    %v806 = vadd.f32 %v715, %v755
    %v807 = vxor.u32 %v806, 2147483648
    %v808 = vmul.f32 %v807, 1.442695
    %v809 = vpow.pop %v808
    %v810 = vadd.f32 %v809, 1.0
    %v811 = vrcp.pop %v810
    %v812 = vmul.f32 1.0, %v811
    %v813 = vadd.f32 %v794, %v444
    %v814 = vmul.f32 %v805, %v813
    %v815 = vadd.f32 %v716, %v814
    %v816 = vtanh.pop %v815
    %v817 = vsub.f32 %v712, %v816
    %v818 = vmul.f32 %v812, %v817
    %v819 = vadd.f32 %v816, %v818
    %s820 = scalar_lea.vmem [#allocation2], 48
    %v821 = vld [vmem:[%s820] sm:$0xff]
    %v822 = vld [vmem:[%s820 + $0x8] sm:$0xff]
    %v823 = vld [vmem:[%s820 + $0x10] sm:$0xff]
    %v824 = vpack.c.bf16 %v819, %v819
    %825 = vmatprep.subr.bf16.mxu0 %v585
    %826 = vmatpush1.bf16.msra.mxu0 %v584
    %827 = vmatprep.subr.bf16.mxu0 %v582
    %828 = vmatpush1.bf16.msra.mxu0 %v581
    %829 = vmatprep.subr.bf16.mxu0 %v579
    %830 = vmatpush1.bf16.msra.mxu0 %v578
    %831 = vmatprep.subr.bf16.mxu0 %v576
    %832 = vmatpush1.bf16.msra.mxu0 %v575
    %833 = vmatprep.subr.bf16.mxu0 %v573
    %834 = vmatpush1.bf16.msra.mxu0 %v572
    %835 = vmatprep.subr.bf16.mxu0 %v570
    %836 = vmatpush1.bf16.msra.mxu0 %v569
    %837 = vmatprep.subr.bf16.mxu0 %v567
    %838 = vmatpush1.bf16.msra.mxu0 %v566
    %839 = vmatprep.subr.bf16.mxu0 %v564
    %840 = vmatpush1.bf16.msra.mxu0 %v563
    %841 = vmatprep.subr.bf16.mxu0 0
    %842 = vmatpush2.bf16.msra.mxu0 0
    %843 = vmatprep.subr.bf16.mxu0 0
    %844 = vmatpush2.bf16.msra.mxu0 0
    %845 = vmatprep.subr.bf16.mxu0 0
    %846 = vmatpush2.bf16.msra.mxu0 0
    %847 = vmatprep.subr.bf16.mxu0 0
    %848 = vmatpush2.bf16.msra.mxu0 0
    %849 = vmatprep.subr.bf16.mxu0 0
    %850 = vmatpush2.bf16.msra.mxu0 0
    %851 = vmatprep.subr.bf16.mxu0 0
    %852 = vmatpush2.bf16.msra.mxu0 0
    %853 = vmatprep.subr.bf16.mxu0 0
    %854 = vmatpush2.bf16.msra.mxu0 0
    %855 = vmatprep.subr.bf16.mxu0 0
    %856 = vmatpush2.bf16.msra.mxu0 0
    %857 = vmatprep.mubr.bf16.mxu0 0
    %858 = vmatmul.mubr.bf16.gmra.mxu0 %v824
    %v859 = vpop.f32.mrf.mxu0
    %v860 = vadd.f32 0.0, %v859
    %v861 = vpop.f32.mrf.mxu0
    %v862 = vadd.f32 0.0, %v861
    %v863 = vpop.f32.mrf.mxu0
    %v864 = vpop.f32.mrf.mxu0
    %865 = vdwg.mxu0
    %866 = vmatprep.subr.bf16.mxu0 0
    %867 = vmatpush1.bf16.msra.mxu0 %v586
    %868 = vmatprep.subr.bf16.mxu0 0
    %869 = vmatpush1.bf16.msra.mxu0 %v583
    %870 = vmatprep.subr.bf16.mxu0 0
    %871 = vmatpush1.bf16.msra.mxu0 %v580
    %872 = vmatprep.subr.bf16.mxu0 0
    %873 = vmatpush1.bf16.msra.mxu0 %v577
    %874 = vmatprep.subr.bf16.mxu0 0
    %875 = vmatpush1.bf16.msra.mxu0 %v574
    %876 = vmatprep.subr.bf16.mxu0 0
    %877 = vmatpush1.bf16.msra.mxu0 %v571
    %878 = vmatprep.subr.bf16.mxu0 0
    %879 = vmatpush1.bf16.msra.mxu0 %v568
    %880 = vmatprep.subr.bf16.mxu0 0
    %881 = vmatpush1.bf16.msra.mxu0 %v565
    %882 = vmatprep.subr.bf16.mxu0 0
    %883 = vmatpush2.bf16.msra.mxu0 0
    %884 = vmatprep.subr.bf16.mxu0 0
    %885 = vmatpush2.bf16.msra.mxu0 0
    %886 = vmatprep.subr.bf16.mxu0 0
    %887 = vmatpush2.bf16.msra.mxu0 0
    %888 = vmatprep.subr.bf16.mxu0 0
    %889 = vmatpush2.bf16.msra.mxu0 0
    %890 = vmatprep.subr.bf16.mxu0 0
    %891 = vmatpush2.bf16.msra.mxu0 0
    %892 = vmatprep.subr.bf16.mxu0 0
    %893 = vmatpush2.bf16.msra.mxu0 0
    %894 = vmatprep.subr.bf16.mxu0 0
    %895 = vmatpush2.bf16.msra.mxu0 0
    %896 = vmatprep.subr.bf16.mxu0 0
    %897 = vmatpush2.bf16.msra.mxu0 0
    %898 = vmatprep.mubr.bf16.mxu0 0
    %899 = vmatmul.mubr.bf16.gmra.mxu0 %v824
    %v900 = vpop.f32.mrf.mxu0
    %v901 = vadd.f32 0.0, %v900
    %v902 = vpop.f32.mrf.mxu0
    %v903 = vpop.f32.mrf.mxu0
    %v904 = vpop.f32.mrf.mxu0
    %905 = vdwg.mxu0
    %v906 = vadd.f32 %v821, %v860
    %v907 = vxor.u32 %v906, 2147483648
    %v908 = vmul.f32 %v907, 1.442695
    %v909 = vpow.pop %v908
    %v910 = vadd.f32 %v909, 1.0
    %v911 = vrcp.pop %v910
    %v912 = vmul.f32 1.0, %v911
    %v913 = vadd.f32 %v822, %v862
    %v914 = vxor.u32 %v913, 2147483648
    %v915 = vmul.f32 %v914, 1.442695
    %v916 = vpow.pop %v915
    %v917 = vadd.f32 %v916, 1.0
    %v918 = vrcp.pop %v917
    %v919 = vmul.f32 1.0, %v918
    %v920 = vadd.f32 %v901, %v444
    %v921 = vmul.f32 %v912, %v920
    %v922 = vadd.f32 %v823, %v921
    %v923 = vtanh.pop %v922
    %v924 = vsub.f32 %v819, %v923
    %v925 = vmul.f32 %v919, %v924
    %v926 = vadd.f32 %v923, %v925
    %s927 = scalar_lea.vmem [#allocation2], 72
    %v928 = vld [vmem:[%s927] sm:$0xff]
    %v929 = vld [vmem:[%s927 + $0x8] sm:$0xff]
    %v930 = vld [vmem:[%s927 + $0x10] sm:$0xff]
    %v931 = vpack.c.bf16 %v926, %v926
    %932 = vmatprep.subr.bf16.mxu0 %v585
    %933 = vmatpush1.bf16.msra.mxu0 %v584
    %934 = vmatprep.subr.bf16.mxu0 %v582
    %935 = vmatpush1.bf16.msra.mxu0 %v581
    %936 = vmatprep.subr.bf16.mxu0 %v579
    %937 = vmatpush1.bf16.msra.mxu0 %v578
    %938 = vmatprep.subr.bf16.mxu0 %v576
    %939 = vmatpush1.bf16.msra.mxu0 %v575
    %940 = vmatprep.subr.bf16.mxu0 %v573
    %941 = vmatpush1.bf16.msra.mxu0 %v572
    %942 = vmatprep.subr.bf16.mxu0 %v570
    %943 = vmatpush1.bf16.msra.mxu0 %v569
    %944 = vmatprep.subr.bf16.mxu0 %v567
    %945 = vmatpush1.bf16.msra.mxu0 %v566
    %946 = vmatprep.subr.bf16.mxu0 %v564
    %947 = vmatpush1.bf16.msra.mxu0 %v563
    %948 = vmatprep.subr.bf16.mxu0 0
    %949 = vmatpush2.bf16.msra.mxu0 0
    %950 = vmatprep.subr.bf16.mxu0 0
    %951 = vmatpush2.bf16.msra.mxu0 0
    %952 = vmatprep.subr.bf16.mxu0 0
    %953 = vmatpush2.bf16.msra.mxu0 0
    %954 = vmatprep.subr.bf16.mxu0 0
    %955 = vmatpush2.bf16.msra.mxu0 0
    %956 = vmatprep.subr.bf16.mxu0 0
    %957 = vmatpush2.bf16.msra.mxu0 0
    %958 = vmatprep.subr.bf16.mxu0 0
    %959 = vmatpush2.bf16.msra.mxu0 0
    %960 = vmatprep.subr.bf16.mxu0 0
    %961 = vmatpush2.bf16.msra.mxu0 0
    %962 = vmatprep.subr.bf16.mxu0 0
    %963 = vmatpush2.bf16.msra.mxu0 0
    %964 = vmatprep.mubr.bf16.mxu0 0
    %965 = vmatmul.mubr.bf16.gmra.mxu0 %v931
    %v966 = vpop.f32.mrf.mxu0
    %v967 = vadd.f32 0.0, %v966
    %v968 = vpop.f32.mrf.mxu0
    %v969 = vadd.f32 0.0, %v968
    %v970 = vpop.f32.mrf.mxu0
    %v971 = vpop.f32.mrf.mxu0
    %972 = vdwg.mxu0
    %973 = vmatprep.subr.bf16.mxu0 0
    %974 = vmatpush1.bf16.msra.mxu0 %v586
    %975 = vmatprep.subr.bf16.mxu0 0
    %976 = vmatpush1.bf16.msra.mxu0 %v583
    %977 = vmatprep.subr.bf16.mxu0 0
    %978 = vmatpush1.bf16.msra.mxu0 %v580
    %979 = vmatprep.subr.bf16.mxu0 0
    %980 = vmatpush1.bf16.msra.mxu0 %v577
    %981 = vmatprep.subr.bf16.mxu0 0
    %982 = vmatpush1.bf16.msra.mxu0 %v574
    %983 = vmatprep.subr.bf16.mxu0 0
    %984 = vmatpush1.bf16.msra.mxu0 %v571
    %985 = vmatprep.subr.bf16.mxu0 0
    %986 = vmatpush1.bf16.msra.mxu0 %v568
    %987 = vmatprep.subr.bf16.mxu0 0
    %988 = vmatpush1.bf16.msra.mxu0 %v565
    %989 = vmatprep.subr.bf16.mxu0 0
    %990 = vmatpush2.bf16.msra.mxu0 0
    %991 = vmatprep.subr.bf16.mxu0 0
    %992 = vmatpush2.bf16.msra.mxu0 0
    %993 = vmatprep.subr.bf16.mxu0 0
    %994 = vmatpush2.bf16.msra.mxu0 0
    %995 = vmatprep.subr.bf16.mxu0 0
    %996 = vmatpush2.bf16.msra.mxu0 0
    %997 = vmatprep.subr.bf16.mxu0 0
    %998 = vmatpush2.bf16.msra.mxu0 0
    %999 = vmatprep.subr.bf16.mxu0 0
    %1000 = vmatpush2.bf16.msra.mxu0 0
    %1001 = vmatprep.subr.bf16.mxu0 0
    %1002 = vmatpush2.bf16.msra.mxu0 0
    %1003 = vmatprep.subr.bf16.mxu0 0
    %1004 = vmatpush2.bf16.msra.mxu0 0
    %1005 = vmatprep.mubr.bf16.mxu0 0
    %1006 = vmatmul.mubr.bf16.gmra.mxu0 %v931
    %v1007 = vpop.f32.mrf.mxu0
    %v1008 = vadd.f32 0.0, %v1007
    %v1009 = vpop.f32.mrf.mxu0
    %v1010 = vpop.f32.mrf.mxu0
    %v1011 = vpop.f32.mrf.mxu0
    %1012 = vdwg.mxu0
    %v1013 = vadd.f32 %v928, %v967
    %v1014 = vxor.u32 %v1013, 2147483648
    %v1015 = vmul.f32 %v1014, 1.442695
    %v1016 = vpow.pop %v1015
    %v1017 = vadd.f32 %v1016, 1.0
    %v1018 = vrcp.pop %v1017
    %v1019 = vmul.f32 1.0, %v1018
    %v1020 = vadd.f32 %v929, %v969
    %v1021 = vxor.u32 %v1020, 2147483648
    %v1022 = vmul.f32 %v1021, 1.442695
    %v1023 = vpow.pop %v1022
    %v1024 = vadd.f32 %v1023, 1.0
    %v1025 = vrcp.pop %v1024
    %v1026 = vmul.f32 1.0, %v1025
    %v1027 = vadd.f32 %v1008, %v444
    %v1028 = vmul.f32 %v1019, %v1027
    %v1029 = vadd.f32 %v930, %v1028
    %v1030 = vtanh.pop %v1029
    %v1031 = vsub.f32 %v926, %v1030
    %v1032 = vmul.f32 %v1026, %v1031
    %v1033 = vadd.f32 %v1030, %v1032
    %s1034 = scalar_lea.vmem [#allocation2], 96
    %v1035 = vld [vmem:[%s1034] sm:$0xff]
    %v1036 = vld [vmem:[%s1034 + $0x8] sm:$0xff]
    %v1037 = vld [vmem:[%s1034 + $0x10] sm:$0xff]
    %v1038 = vpack.c.bf16 %v1033, %v1033
    %1039 = vmatprep.subr.bf16.mxu0 %v585
    %1040 = vmatpush1.bf16.msra.mxu0 %v584
    %1041 = vmatprep.subr.bf16.mxu0 %v582
    %1042 = vmatpush1.bf16.msra.mxu0 %v581
    %1043 = vmatprep.subr.bf16.mxu0 %v579
    %1044 = vmatpush1.bf16.msra.mxu0 %v578
    %1045 = vmatprep.subr.bf16.mxu0 %v576
    %1046 = vmatpush1.bf16.msra.mxu0 %v575
    %1047 = vmatprep.subr.bf16.mxu0 %v573
    %1048 = vmatpush1.bf16.msra.mxu0 %v572
    %1049 = vmatprep.subr.bf16.mxu0 %v570
    %1050 = vmatpush1.bf16.msra.mxu0 %v569
    %1051 = vmatprep.subr.bf16.mxu0 %v567
    %1052 = vmatpush1.bf16.msra.mxu0 %v566
    %1053 = vmatprep.subr.bf16.mxu0 %v564
    %1054 = vmatpush1.bf16.msra.mxu0 %v563
    %1055 = vmatprep.subr.bf16.mxu0 0
    %1056 = vmatpush2.bf16.msra.mxu0 0
    %1057 = vmatprep.subr.bf16.mxu0 0
    %1058 = vmatpush2.bf16.msra.mxu0 0
    %1059 = vmatprep.subr.bf16.mxu0 0
    %1060 = vmatpush2.bf16.msra.mxu0 0
    %1061 = vmatprep.subr.bf16.mxu0 0
    %1062 = vmatpush2.bf16.msra.mxu0 0
    %1063 = vmatprep.subr.bf16.mxu0 0
    %1064 = vmatpush2.bf16.msra.mxu0 0
    %1065 = vmatprep.subr.bf16.mxu0 0
    %1066 = vmatpush2.bf16.msra.mxu0 0
    %1067 = vmatprep.subr.bf16.mxu0 0
    %1068 = vmatpush2.bf16.msra.mxu0 0
    %1069 = vmatprep.subr.bf16.mxu0 0
    %1070 = vmatpush2.bf16.msra.mxu0 0
    %1071 = vmatprep.mubr.bf16.mxu0 0
    %1072 = vmatmul.mubr.bf16.gmra.mxu0 %v1038
    %v1073 = vpop.f32.mrf.mxu0
    %v1074 = vadd.f32 0.0, %v1073
    %v1075 = vpop.f32.mrf.mxu0
    %v1076 = vadd.f32 0.0, %v1075
    %v1077 = vpop.f32.mrf.mxu0
    %v1078 = vpop.f32.mrf.mxu0
    %1079 = vdwg.mxu0
    %1080 = vmatprep.subr.bf16.mxu0 0
    %1081 = vmatpush1.bf16.msra.mxu0 %v586
    %1082 = vmatprep.subr.bf16.mxu0 0
    %1083 = vmatpush1.bf16.msra.mxu0 %v583
    %1084 = vmatprep.subr.bf16.mxu0 0
    %1085 = vmatpush1.bf16.msra.mxu0 %v580
    %1086 = vmatprep.subr.bf16.mxu0 0
    %1087 = vmatpush1.bf16.msra.mxu0 %v577
    %1088 = vmatprep.subr.bf16.mxu0 0
    %1089 = vmatpush1.bf16.msra.mxu0 %v574
    %1090 = vmatprep.subr.bf16.mxu0 0
    %1091 = vmatpush1.bf16.msra.mxu0 %v571
    %1092 = vmatprep.subr.bf16.mxu0 0
    %1093 = vmatpush1.bf16.msra.mxu0 %v568
    %1094 = vmatprep.subr.bf16.mxu0 0
    %1095 = vmatpush1.bf16.msra.mxu0 %v565
    %1096 = vmatprep.subr.bf16.mxu0 0
    %1097 = vmatpush2.bf16.msra.mxu0 0
    %1098 = vmatprep.subr.bf16.mxu0 0
    %1099 = vmatpush2.bf16.msra.mxu0 0
    %1100 = vmatprep.subr.bf16.mxu0 0
    %1101 = vmatpush2.bf16.msra.mxu0 0
    %1102 = vmatprep.subr.bf16.mxu0 0
    %1103 = vmatpush2.bf16.msra.mxu0 0
    %1104 = vmatprep.subr.bf16.mxu0 0
    %1105 = vmatpush2.bf16.msra.mxu0 0
    %1106 = vmatprep.subr.bf16.mxu0 0
    %1107 = vmatpush2.bf16.msra.mxu0 0
    %1108 = vmatprep.subr.bf16.mxu0 0
    %1109 = vmatpush2.bf16.msra.mxu0 0
    %1110 = vmatprep.subr.bf16.mxu0 0
    %1111 = vmatpush2.bf16.msra.mxu0 0
    %1112 = vmatprep.mubr.bf16.mxu0 0
    %1113 = vmatmul.mubr.bf16.gmra.mxu0 %v1038
    %v1114 = vpop.f32.mrf.mxu0
    %v1115 = vadd.f32 0.0, %v1114
    %v1116 = vpop.f32.mrf.mxu0
    %v1117 = vpop.f32.mrf.mxu0
    %v1118 = vpop.f32.mrf.mxu0
    %1119 = vdwg.mxu0
    %v1120 = vadd.f32 %v1035, %v1074
    %v1121 = vxor.u32 %v1120, 2147483648
    %v1122 = vmul.f32 %v1121, 1.442695
    %v1123 = vpow.pop %v1122
    %v1124 = vadd.f32 %v1123, 1.0
    %v1125 = vrcp.pop %v1124
    %v1126 = vmul.f32 1.0, %v1125
    %v1127 = vadd.f32 %v1036, %v1076
    %v1128 = vxor.u32 %v1127, 2147483648
    %v1129 = vmul.f32 %v1128, 1.442695
    %v1130 = vpow.pop %v1129
    %v1131 = vadd.f32 %v1130, 1.0
    %v1132 = vrcp.pop %v1131
    %v1133 = vmul.f32 1.0, %v1132
    %v1134 = vadd.f32 %v1115, %v444
    %v1135 = vmul.f32 %v1126, %v1134
    %v1136 = vadd.f32 %v1037, %v1135
    %v1137 = vtanh.pop %v1136
    %v1138 = vsub.f32 %v1033, %v1137
    %v1139 = vmul.f32 %v1133, %v1138
    %v1140 = vadd.f32 %v1137, %v1139
    %s1141 = scalar_lea.vmem [#allocation2], 120
    %v1142 = vld [vmem:[%s1141] sm:$0xff]
    %v1143 = vld [vmem:[%s1141 + $0x8] sm:$0xff]
    %v1144 = vld [vmem:[%s1141 + $0x10] sm:$0xff]
    %v1145 = vpack.c.bf16 %v1140, %v1140
    %1146 = vmatprep.subr.bf16.mxu0 %v585
    %1147 = vmatpush1.bf16.msra.mxu0 %v584
    %1148 = vmatprep.subr.bf16.mxu0 %v582
    %1149 = vmatpush1.bf16.msra.mxu0 %v581
    %1150 = vmatprep.subr.bf16.mxu0 %v579
    %1151 = vmatpush1.bf16.msra.mxu0 %v578
    %1152 = vmatprep.subr.bf16.mxu0 %v576
    %1153 = vmatpush1.bf16.msra.mxu0 %v575
    %1154 = vmatprep.subr.bf16.mxu0 %v573
    %1155 = vmatpush1.bf16.msra.mxu0 %v572
    %1156 = vmatprep.subr.bf16.mxu0 %v570
    %1157 = vmatpush1.bf16.msra.mxu0 %v569
    %1158 = vmatprep.subr.bf16.mxu0 %v567
    %1159 = vmatpush1.bf16.msra.mxu0 %v566
    %1160 = vmatprep.subr.bf16.mxu0 %v564
    %1161 = vmatpush1.bf16.msra.mxu0 %v563
    %1162 = vmatprep.subr.bf16.mxu0 0
    %1163 = vmatpush2.bf16.msra.mxu0 0
    %1164 = vmatprep.subr.bf16.mxu0 0
    %1165 = vmatpush2.bf16.msra.mxu0 0
    %1166 = vmatprep.subr.bf16.mxu0 0
    %1167 = vmatpush2.bf16.msra.mxu0 0
    %1168 = vmatprep.subr.bf16.mxu0 0
    %1169 = vmatpush2.bf16.msra.mxu0 0
    %1170 = vmatprep.subr.bf16.mxu0 0
    %1171 = vmatpush2.bf16.msra.mxu0 0
    %1172 = vmatprep.subr.bf16.mxu0 0
    %1173 = vmatpush2.bf16.msra.mxu0 0
    %1174 = vmatprep.subr.bf16.mxu0 0
    %1175 = vmatpush2.bf16.msra.mxu0 0
    %1176 = vmatprep.subr.bf16.mxu0 0
    %1177 = vmatpush2.bf16.msra.mxu0 0
    %1178 = vmatprep.mubr.bf16.mxu0 0
    %1179 = vmatmul.mubr.bf16.gmra.mxu0 %v1145
    %v1180 = vpop.f32.mrf.mxu0
    %v1181 = vadd.f32 0.0, %v1180
    %v1182 = vpop.f32.mrf.mxu0
    %v1183 = vadd.f32 0.0, %v1182
    %v1184 = vpop.f32.mrf.mxu0
    %v1185 = vpop.f32.mrf.mxu0
    %1186 = vdwg.mxu0
    %1187 = vmatprep.subr.bf16.mxu0 0
    %1188 = vmatpush1.bf16.msra.mxu0 %v586
    %1189 = vmatprep.subr.bf16.mxu0 0
    %1190 = vmatpush1.bf16.msra.mxu0 %v583
    %1191 = vmatprep.subr.bf16.mxu0 0
    %1192 = vmatpush1.bf16.msra.mxu0 %v580
    %1193 = vmatprep.subr.bf16.mxu0 0
    %1194 = vmatpush1.bf16.msra.mxu0 %v577
    %1195 = vmatprep.subr.bf16.mxu0 0
    %1196 = vmatpush1.bf16.msra.mxu0 %v574
    %1197 = vmatprep.subr.bf16.mxu0 0
    %1198 = vmatpush1.bf16.msra.mxu0 %v571
    %1199 = vmatprep.subr.bf16.mxu0 0
    %1200 = vmatpush1.bf16.msra.mxu0 %v568
    %1201 = vmatprep.subr.bf16.mxu0 0
    %1202 = vmatpush1.bf16.msra.mxu0 %v565
    %1203 = vmatprep.subr.bf16.mxu0 0
    %1204 = vmatpush2.bf16.msra.mxu0 0
    %1205 = vmatprep.subr.bf16.mxu0 0
    %1206 = vmatpush2.bf16.msra.mxu0 0
    %1207 = vmatprep.subr.bf16.mxu0 0
    %1208 = vmatpush2.bf16.msra.mxu0 0
    %1209 = vmatprep.subr.bf16.mxu0 0
    %1210 = vmatpush2.bf16.msra.mxu0 0
    %1211 = vmatprep.subr.bf16.mxu0 0
    %1212 = vmatpush2.bf16.msra.mxu0 0
    %1213 = vmatprep.subr.bf16.mxu0 0
    %1214 = vmatpush2.bf16.msra.mxu0 0
    %1215 = vmatprep.subr.bf16.mxu0 0
    %1216 = vmatpush2.bf16.msra.mxu0 0
    %1217 = vmatprep.subr.bf16.mxu0 0
    %1218 = vmatpush2.bf16.msra.mxu0 0
    %1219 = vmatprep.mubr.bf16.mxu0 0
    %1220 = vmatmul.mubr.bf16.gmra.mxu0 %v1145
    %v1221 = vpop.f32.mrf.mxu0
    %v1222 = vadd.f32 0.0, %v1221
    %v1223 = vpop.f32.mrf.mxu0
    %v1224 = vpop.f32.mrf.mxu0
    %v1225 = vpop.f32.mrf.mxu0
    %1226 = vdwg.mxu0
    %v1227 = vadd.f32 %v1142, %v1181
    %v1228 = vxor.u32 %v1227, 2147483648
    %v1229 = vmul.f32 %v1228, 1.442695
    %v1230 = vpow.pop %v1229
    %v1231 = vadd.f32 %v1230, 1.0
    %v1232 = vrcp.pop %v1231
    %v1233 = vmul.f32 1.0, %v1232
    %v1234 = vadd.f32 %v1143, %v1183
    %v1235 = vxor.u32 %v1234, 2147483648
    %v1236 = vmul.f32 %v1235, 1.442695
    %v1237 = vpow.pop %v1236
    %v1238 = vadd.f32 %v1237, 1.0
    %v1239 = vrcp.pop %v1238
    %v1240 = vmul.f32 1.0, %v1239
    %v1241 = vadd.f32 %v1222, %v444
    %v1242 = vmul.f32 %v1233, %v1241
    %v1243 = vadd.f32 %v1144, %v1242
    %v1244 = vtanh.pop %v1243
    %v1245 = vsub.f32 %v1140, %v1244
    %v1246 = vmul.f32 %v1240, %v1245
    %v1247 = vadd.f32 %v1244, %v1246
    %s1248 = scalar_lea.vmem [#allocation2], 144
    %v1249 = vld [vmem:[%s1248] sm:$0xff]
    %v1250 = vld [vmem:[%s1248 + $0x8] sm:$0xff]
    %v1251 = vld [vmem:[%s1248 + $0x10] sm:$0xff]
    %v1252 = vpack.c.bf16 %v1247, %v1247
    %1253 = vmatprep.subr.bf16.mxu0 %v585
    %1254 = vmatpush1.bf16.msra.mxu0 %v584
    %1255 = vmatprep.subr.bf16.mxu0 %v582
    %1256 = vmatpush1.bf16.msra.mxu0 %v581
    %1257 = vmatprep.subr.bf16.mxu0 %v579
    %1258 = vmatpush1.bf16.msra.mxu0 %v578
    %1259 = vmatprep.subr.bf16.mxu0 %v576
    %1260 = vmatpush1.bf16.msra.mxu0 %v575
    %1261 = vmatprep.subr.bf16.mxu0 %v573
    %1262 = vmatpush1.bf16.msra.mxu0 %v572
    %1263 = vmatprep.subr.bf16.mxu0 %v570
    %1264 = vmatpush1.bf16.msra.mxu0 %v569
    %1265 = vmatprep.subr.bf16.mxu0 %v567
    %1266 = vmatpush1.bf16.msra.mxu0 %v566
    %1267 = vmatprep.subr.bf16.mxu0 %v564
    %1268 = vmatpush1.bf16.msra.mxu0 %v563
    %1269 = vmatprep.subr.bf16.mxu0 0
    %1270 = vmatpush2.bf16.msra.mxu0 0
    %1271 = vmatprep.subr.bf16.mxu0 0
    %1272 = vmatpush2.bf16.msra.mxu0 0
    %1273 = vmatprep.subr.bf16.mxu0 0
    %1274 = vmatpush2.bf16.msra.mxu0 0
    %1275 = vmatprep.subr.bf16.mxu0 0
    %1276 = vmatpush2.bf16.msra.mxu0 0
    %1277 = vmatprep.subr.bf16.mxu0 0
    %1278 = vmatpush2.bf16.msra.mxu0 0
    %1279 = vmatprep.subr.bf16.mxu0 0
    %1280 = vmatpush2.bf16.msra.mxu0 0
    %1281 = vmatprep.subr.bf16.mxu0 0
    %1282 = vmatpush2.bf16.msra.mxu0 0
    %1283 = vmatprep.subr.bf16.mxu0 0
    %1284 = vmatpush2.bf16.msra.mxu0 0
    %1285 = vmatprep.mubr.bf16.mxu0 0
    %1286 = vmatmul.mubr.bf16.gmra.mxu0 %v1252
    %v1287 = vpop.f32.mrf.mxu0
    %v1288 = vadd.f32 0.0, %v1287
    %v1289 = vpop.f32.mrf.mxu0
    %v1290 = vadd.f32 0.0, %v1289
    %v1291 = vpop.f32.mrf.mxu0
    %v1292 = vpop.f32.mrf.mxu0
    %1293 = vdwg.mxu0
    %1294 = vmatprep.subr.bf16.mxu0 0
    %1295 = vmatpush1.bf16.msra.mxu0 %v586
    %1296 = vmatprep.subr.bf16.mxu0 0
    %1297 = vmatpush1.bf16.msra.mxu0 %v583
    %1298 = vmatprep.subr.bf16.mxu0 0
    %1299 = vmatpush1.bf16.msra.mxu0 %v580
    %1300 = vmatprep.subr.bf16.mxu0 0
    %1301 = vmatpush1.bf16.msra.mxu0 %v577
    %1302 = vmatprep.subr.bf16.mxu0 0
    %1303 = vmatpush1.bf16.msra.mxu0 %v574
    %1304 = vmatprep.subr.bf16.mxu0 0
    %1305 = vmatpush1.bf16.msra.mxu0 %v571
    %1306 = vmatprep.subr.bf16.mxu0 0
    %1307 = vmatpush1.bf16.msra.mxu0 %v568
    %1308 = vmatprep.subr.bf16.mxu0 0
    %1309 = vmatpush1.bf16.msra.mxu0 %v565
    %1310 = vmatprep.subr.bf16.mxu0 0
    %1311 = vmatpush2.bf16.msra.mxu0 0
    %1312 = vmatprep.subr.bf16.mxu0 0
    %1313 = vmatpush2.bf16.msra.mxu0 0
    %1314 = vmatprep.subr.bf16.mxu0 0
    %1315 = vmatpush2.bf16.msra.mxu0 0
    %1316 = vmatprep.subr.bf16.mxu0 0
    %1317 = vmatpush2.bf16.msra.mxu0 0
    %1318 = vmatprep.subr.bf16.mxu0 0
    %1319 = vmatpush2.bf16.msra.mxu0 0
    %1320 = vmatprep.subr.bf16.mxu0 0
    %1321 = vmatpush2.bf16.msra.mxu0 0
    %1322 = vmatprep.subr.bf16.mxu0 0
    %1323 = vmatpush2.bf16.msra.mxu0 0
    %1324 = vmatprep.subr.bf16.mxu0 0
    %1325 = vmatpush2.bf16.msra.mxu0 0
    %1326 = vmatprep.mubr.bf16.mxu0 0
    %1327 = vmatmul.mubr.bf16.gmra.mxu0 %v1252
    %v1328 = vpop.f32.mrf.mxu0
    %v1329 = vadd.f32 0.0, %v1328
    %v1330 = vpop.f32.mrf.mxu0
    %v1331 = vpop.f32.mrf.mxu0
    %v1332 = vpop.f32.mrf.mxu0
    %1333 = vdwg.mxu0
    %v1334 = vadd.f32 %v1249, %v1288
    %v1335 = vxor.u32 %v1334, 2147483648
    %v1336 = vmul.f32 %v1335, 1.442695
    %v1337 = vpow.pop %v1336
    %v1338 = vadd.f32 %v1337, 1.0
    %v1339 = vrcp.pop %v1338
    %v1340 = vmul.f32 1.0, %v1339
    %v1341 = vadd.f32 %v1250, %v1290
    %v1342 = vxor.u32 %v1341, 2147483648
    %v1343 = vmul.f32 %v1342, 1.442695
    %v1344 = vpow.pop %v1343
    %v1345 = vadd.f32 %v1344, 1.0
    %v1346 = vrcp.pop %v1345
    %v1347 = vmul.f32 1.0, %v1346
    %v1348 = vadd.f32 %v1329, %v444
    %v1349 = vmul.f32 %v1340, %v1348
    %v1350 = vadd.f32 %v1251, %v1349
    %v1351 = vtanh.pop %v1350
    %v1352 = vsub.f32 %v1247, %v1351
    %v1353 = vmul.f32 %v1347, %v1352
    %v1354 = vadd.f32 %v1351, %v1353
    %s1355 = scalar_lea.vmem [#allocation2], 168
    %v1356 = vld [vmem:[%s1355] sm:$0xff]
    %v1357 = vld [vmem:[%s1355 + $0x8] sm:$0xff]
    %v1358 = vld [vmem:[%s1355 + $0x10] sm:$0xff]
    %v1359 = vpack.c.bf16 %v1354, %v1354
    %1360 = vmatprep.subr.bf16.mxu0 %v585
    %1361 = vmatpush1.bf16.msra.mxu0 %v584
    %1362 = vmatprep.subr.bf16.mxu0 %v582
    %1363 = vmatpush1.bf16.msra.mxu0 %v581
    %1364 = vmatprep.subr.bf16.mxu0 %v579
    %1365 = vmatpush1.bf16.msra.mxu0 %v578
    %1366 = vmatprep.subr.bf16.mxu0 %v576
    %1367 = vmatpush1.bf16.msra.mxu0 %v575
    %1368 = vmatprep.subr.bf16.mxu0 %v573
    %1369 = vmatpush1.bf16.msra.mxu0 %v572
    %1370 = vmatprep.subr.bf16.mxu0 %v570
    %1371 = vmatpush1.bf16.msra.mxu0 %v569
    %1372 = vmatprep.subr.bf16.mxu0 %v567
    %1373 = vmatpush1.bf16.msra.mxu0 %v566
    %1374 = vmatprep.subr.bf16.mxu0 %v564
    %1375 = vmatpush1.bf16.msra.mxu0 %v563
    %1376 = vmatprep.subr.bf16.mxu0 0
    %1377 = vmatpush2.bf16.msra.mxu0 0
    %1378 = vmatprep.subr.bf16.mxu0 0
    %1379 = vmatpush2.bf16.msra.mxu0 0
    %1380 = vmatprep.subr.bf16.mxu0 0
    %1381 = vmatpush2.bf16.msra.mxu0 0
    %1382 = vmatprep.subr.bf16.mxu0 0
    %1383 = vmatpush2.bf16.msra.mxu0 0
    %1384 = vmatprep.subr.bf16.mxu0 0
    %1385 = vmatpush2.bf16.msra.mxu0 0
    %1386 = vmatprep.subr.bf16.mxu0 0
    %1387 = vmatpush2.bf16.msra.mxu0 0
    %1388 = vmatprep.subr.bf16.mxu0 0
    %1389 = vmatpush2.bf16.msra.mxu0 0
    %1390 = vmatprep.subr.bf16.mxu0 0
    %1391 = vmatpush2.bf16.msra.mxu0 0
    %1392 = vmatprep.mubr.bf16.mxu0 0
    %1393 = vmatmul.mubr.bf16.gmra.mxu0 %v1359
    %v1394 = vpop.f32.mrf.mxu0
    %v1395 = vadd.f32 0.0, %v1394
    %v1396 = vpop.f32.mrf.mxu0
    %v1397 = vadd.f32 0.0, %v1396
    %v1398 = vpop.f32.mrf.mxu0
    %v1399 = vpop.f32.mrf.mxu0
    %1400 = vdwg.mxu0
    %1401 = vmatprep.subr.bf16.mxu0 0
    %1402 = vmatpush1.bf16.msra.mxu0 %v586
    %1403 = vmatprep.subr.bf16.mxu0 0
    %1404 = vmatpush1.bf16.msra.mxu0 %v583
    %1405 = vmatprep.subr.bf16.mxu0 0
    %1406 = vmatpush1.bf16.msra.mxu0 %v580
    %1407 = vmatprep.subr.bf16.mxu0 0
    %1408 = vmatpush1.bf16.msra.mxu0 %v577
    %1409 = vmatprep.subr.bf16.mxu0 0
    %1410 = vmatpush1.bf16.msra.mxu0 %v574
    %1411 = vmatprep.subr.bf16.mxu0 0
    %1412 = vmatpush1.bf16.msra.mxu0 %v571
    %1413 = vmatprep.subr.bf16.mxu0 0
    %1414 = vmatpush1.bf16.msra.mxu0 %v568
    %1415 = vmatprep.subr.bf16.mxu0 0
    %1416 = vmatpush1.bf16.msra.mxu0 %v565
    %1417 = vmatprep.subr.bf16.mxu0 0
    %1418 = vmatpush2.bf16.msra.mxu0 0
    %1419 = vmatprep.subr.bf16.mxu0 0
    %1420 = vmatpush2.bf16.msra.mxu0 0
    %1421 = vmatprep.subr.bf16.mxu0 0
    %1422 = vmatpush2.bf16.msra.mxu0 0
    %1423 = vmatprep.subr.bf16.mxu0 0
    %1424 = vmatpush2.bf16.msra.mxu0 0
    %1425 = vmatprep.subr.bf16.mxu0 0
    %1426 = vmatpush2.bf16.msra.mxu0 0
    %1427 = vmatprep.subr.bf16.mxu0 0
    %1428 = vmatpush2.bf16.msra.mxu0 0
    %1429 = vmatprep.subr.bf16.mxu0 0
    %1430 = vmatpush2.bf16.msra.mxu0 0
    %1431 = vmatprep.subr.bf16.mxu0 0
    %1432 = vmatpush2.bf16.msra.mxu0 0
    %1433 = vmatprep.mubr.bf16.mxu0 0
    %1434 = vmatmul.mubr.bf16.gmra.mxu0 %v1359
    %v1435 = vpop.f32.mrf.mxu0
    %v1436 = vadd.f32 0.0, %v1435
    %v1437 = vpop.f32.mrf.mxu0
    %v1438 = vpop.f32.mrf.mxu0
    %v1439 = vpop.f32.mrf.mxu0
    %1440 = vdwg.mxu0
    %v1441 = vadd.f32 %v1356, %v1395
    %v1442 = vxor.u32 %v1441, 2147483648
    %v1443 = vmul.f32 %v1442, 1.442695
    %v1444 = vpow.pop %v1443
    %v1445 = vadd.f32 %v1444, 1.0
    %v1446 = vrcp.pop %v1445
    %v1447 = vmul.f32 1.0, %v1446
    %v1448 = vadd.f32 %v1357, %v1397
    %v1449 = vxor.u32 %v1448, 2147483648
    %v1450 = vmul.f32 %v1449, 1.442695
    %v1451 = vpow.pop %v1450
    %v1452 = vadd.f32 %v1451, 1.0
    %v1453 = vrcp.pop %v1452
    %v1454 = vmul.f32 1.0, %v1453
    %v1455 = vadd.f32 %v1436, %v444
    %v1456 = vmul.f32 %v1447, %v1455
    %v1457 = vadd.f32 %v1358, %v1456
    %v1458 = vtanh.pop %v1457
    %v1459 = vsub.f32 %v1354, %v1458
    %v1460 = vmul.f32 %v1454, %v1459
    %v1461 = vadd.f32 %v1458, %v1460
    %1462 = vst [vmem:[#allocation9] sm:$0xff] %v1461
    // Predicated region
    $region38: #{tpu_custom_call.1} parent=1 // pred_check
      _
    $region39: #{tpu_custom_call.1} parent=1 // pred_check_branch
      %1464 = sbr.rel (0) target = $region41
    $region40: #{tpu_custom_call.1} parent=1 // pred_region
      %s1466 = ssub.s32 128, 128
      %1467 = vsyncadd [#allocation5], %s1466
      %s1469 = sshll.u32 [#allocation9], 4
      %s1470 = int_to_ptr.vmem [resolvable:$true] %s1469
      %1472 = dma.vmem_to_hbm [thread:$0]  %s1470, 128, %s5, [#allocation5]
    $region41: #{tpu_custom_call.1} parent=1 // pred_fallthru
      _
    // Predicated region
    $region42: #{tpu_custom_call.1} parent=1 // pred_check
      _
    $region43: #{tpu_custom_call.1} parent=1 // pred_check_branch
      %1474 = sbr.rel (0) target = $region45
    $region44: #{tpu_custom_call.1} parent=1 // pred_region
      %1475 = dma.done [#allocation5], 128
    $region45: #{tpu_custom_call.1} parent=1 // pred_fallthru
      _
    %1476 = vsyncpa [#allocation4], 1
    %1477 = vsyncpa [#allocation7], 1
    %1478 = vsyncpa [#allocation5], 1

</llo_original>
